<compile_context>
chip_gen: v7x
topology: tpu7x:2x2x1
jax: 0.10.0
libtpu: 0.0.40
codegen_flags: <defaults>
</compile_context>

<pallas_src>
import functools

import jax
import jax.numpy as jnp
from jax import lax
from jax.experimental import pallas as pl
from jax.experimental.pallas import tpu as pltpu

H = W = 32
KH = KW = 5
C_IN, C1, C2 = 3, 6, 16
FC1, FC2, FC3 = 120, 84, 10


# ---------------------------------------------------------------------------
# Fused kernel
# ---------------------------------------------------------------------------
def _cnn_fused_kernel(x_ref, m1_ref, b1_ref, m2_ref, b2_ref,
                      fc1w_ref, fc1b_ref, fc2w_ref, fc2b_ref,
                      fc3w_ref, fc3b_ref, out_ref, *, nb):
    f32, bf16 = jnp.float32, jnp.bfloat16

    def pool_rows(x, n_out):
        # Max of adjacent row groups (2h, 2h+1); compacts 2*n_out -> n_out
        # row groups.  Every slice is nb(=8)-row aligned.
        parts = [jnp.maximum(x[(2 * h) * nb:(2 * h + 1) * nb, :],
                             x[(2 * h + 1) * nb:(2 * h + 2) * nb, :])
                 for h in range(n_out)]
        return jnp.concatenate(parts, axis=0)

    def pool_lanes(x, g):
        # out[:, l] = max(x[:, l], x[:, l + g]).  x is a ReLU output (>= 0),
        # so the zero tail only ever lands on junk lanes.
        shifted = jnp.concatenate(
            [x[:, g:], jnp.zeros((x.shape[0], g), x.dtype)], axis=1)
        return jnp.maximum(x, shifted)

    def banded_matmul_relu(src, wref, bref, n_taps):
        # acc initialized with the first tap's dot (no explicit zero store);
        # static Python loop => fully unrolled, register/VMEM accumulation.
        acc = jnp.dot(src(0), wref[0], preferred_element_type=f32)
        for i in range(1, n_taps):
            acc = acc + jnp.dot(src(i), wref[i], preferred_element_type=f32)
        return jnp.maximum(acc + bref[...], 0.0)

    # conv1 + ReLU: 5 banded matmuls [28*nb,128] x [128,256]
    a1 = banded_matmul_relu(
        lambda i: x_ref[pl.ds(i * nb, 28 * nb), :].astype(bf16),
        m1_ref, b1_ref, KH)
    p1 = pool_lanes(pool_rows(a1, 14), 8)              # pool1 -> [14*nb, 256]

    # conv2 + ReLU: 5 banded matmuls [10*nb,256] x [256,256] (K=256 packed)
    a2 = banded_matmul_relu(
        lambda i: p1[i * nb:(i + 10) * nb, :].astype(bf16),
        m2_ref, b2_ref, KH)
    p2 = pool_lanes(pool_rows(a2, 5), 16)              # pool2 -> [5*nb, 256]

    # fc1: one [nb,256] x [256,128] matmul per pooled row h2 (torch NCHW
    # flatten order is baked into fc1w), then fc2, fc3.
    h = banded_matmul_relu(
        lambda i: p2[i * nb:(i + 1) * nb, :].astype(bf16),
        fc1w_ref, fc1b_ref, 5)
    h = jnp.maximum(
        jnp.dot(h.astype(bf16), fc2w_ref[...], preferred_element_type=f32)
        + fc2b_ref[...], 0.0)
    logits = (jnp.dot(h.astype(bf16), fc3w_ref[...],
                      preferred_element_type=f32) + fc3b_ref[...])
    out_ref[...] = logits.astype(out_ref.dtype)


# ---------------------------------------------------------------------------
# One-time parameter re-layout (banded matrices, done at init)
# ---------------------------------------------------------------------------
def _pad2d(a, rows, cols):
    out = jnp.zeros((rows, cols), jnp.float32)
    return out.at[:a.shape[0], :a.shape[1]].set(a.astype(jnp.float32))


def _banded_conv_weight(w_oihw, w_in, w_out, cin_pad, co_pad):
    """M[i, w*cin_pad + cin, wo*co_pad + co] = w[co, cin, i, w - wo]
    for 0 <= w - wo < KW, zero elsewhere (one banded matrix per kernel row)."""
    co, ci, kh, kw = w_oihw.shape
    wt = jnp.transpose(w_oihw.astype(jnp.float32), (2, 3, 1, 0))  # [i,j,cin,co]
    m = jnp.zeros((kh, w_in, ci, w_out, co), jnp.float32)
    for j in range(kw):
        band = jnp.eye(w_in, w_out, k=-j, dtype=jnp.float32)      # w == wo + j
        m = m + jnp.einsum("wv,icd->iwcvd", band, wt[:, j])
    m = jnp.pad(m, ((0, 0), (0, 0), (0, cin_pad - ci),
                    (0, 0), (0, co_pad - co)))
    return m.reshape(kh, w_in * cin_pad, w_out * co_pad)


def prepare_params(p):
    f32, bf16 = jnp.float32, jnp.bfloat16

    # conv1: rows = w*4+cin (128), cols = wo*8+co (224 -> 256)
    m1 = _banded_conv_weight(p["conv1_w"], 32, 28, 4, 8)
    m1 = jnp.pad(m1, ((0, 0), (0, 0), (0, 256 - 224)))
    b1 = jnp.pad(jnp.tile(jnp.pad(p["conv1_b"].astype(f32), (0, 2)), 28),
                 (0, 256 - 224)).reshape(1, 256)

    # conv2: rows = w*16+cin (224 -> 256), cols = wo*16+co (160 -> 256)
    m2 = _banded_conv_weight(p["conv2_w"], 14, 10, 16, 16)
    m2 = jnp.pad(m2, ((0, 0), (0, 256 - 224), (0, 256 - 160)))
    b2 = jnp.pad(jnp.tile(p["conv2_b"].astype(f32), 10),
                 (0, 256 - 160)).reshape(1, 256)

    # fc1: per pooled row h2: rows = w2*32+co (160 -> 256), cols = f (120->128)
    # torch .view(-1, 400) flattens NCHW: feature = co*25 + h2*5 + w2.
    fw = p["fc1_w"].astype(f32).reshape(FC1, C2, 5, 5)     # [f, co, h2, w2]
    fw = jnp.transpose(fw, (2, 3, 1, 0))                   # [h2, w2, co, f]
    fw = jnp.pad(fw, ((0, 0), (0, 0), (0, 32 - C2), (0, 128 - FC1)))
    fc1w = jnp.pad(fw.reshape(5, 5 * 32, 128), ((0, 0), (0, 256 - 160), (0, 0)))

    return {
        "m1": m1.astype(bf16), "b1": b1,
        "m2": m2.astype(bf16), "b2": b2,
        "fc1w": fc1w.astype(bf16),
        "fc1b": _pad2d(p["fc1_b"].reshape(1, FC1), 1, 128),
        "fc2w": _pad2d(p["fc2_w"].T, 128, 128).astype(bf16),
        "fc2b": _pad2d(p["fc2_b"].reshape(1, FC2), 1, 128),
        "fc3w": _pad2d(p["fc3_w"].T, 128, 128).astype(bf16),
        "fc3b": _pad2d(p["fc3_b"].reshape(1, FC3), 1, 128),
    }


# ---------------------------------------------------------------------------
# Forward pass
# ---------------------------------------------------------------------------
def cnn_forward(x_nchw, prep, block_batch=8):
    """block_batch must be a multiple of 8 (sublane alignment of every row
    slice).  8 keeps v7x (64 MiB VMEM, 2 TCs) happy; 16/32 is fine on
    v5e/v6e's 128 MiB VMEM to amortize per-grid-step overhead."""
    n, c, hh, ww = x_nchw.shape
    assert (c, hh, ww) == (C_IN, H, W), "module requires 3x32x32 inputs"
    nb = block_batch
    assert nb % 8 == 0
    num_blocks = -(-n // nb)
    n_pad = num_blocks * nb

    # NCHW -> per-block row slabs: rows = h*nb + m, lanes = w*4 + c (c 3->4).
    x = x_nchw.astype(jnp.float32)
    if n_pad != n:
        x = jnp.pad(x, ((0, n_pad - n), (0, 0), (0, 0), (0, 0)))
    x = x.reshape(num_blocks, nb, C_IN, H, W)
    x = jnp.transpose(x, (0, 3, 1, 4, 2))                  # (blk, h, m, w, c)
    x = jnp.pad(x, ((0, 0), (0, 0), (0, 0), (0, 0), (0, 1)))
    x = x.reshape(num_blocks * H * nb, W * 4)

    kernel = functools.partial(_cnn_fused_kernel, nb=nb)
    const3 = lambda s: pl.BlockSpec(s, lambda b: (0, 0, 0))
    const2 = lambda s: pl.BlockSpec(s, lambda b: (0, 0))
    out = pl.pallas_call(
        kernel,
        out_shape=jax.ShapeDtypeStruct((num_blocks * nb, 128), jnp.float32),
        grid=(num_blocks,),
        in_specs=[
            pl.BlockSpec((H * nb, 128), lambda b: (b, 0)),   # input slab
            const3((KH, 128, 256)), const2((1, 256)),        # conv1
            const3((KH, 256, 256)), const2((1, 256)),        # conv2
            const3((5, 256, 128)), const2((1, 128)),         # fc1
            const2((128, 128)), const2((1, 128)),            # fc2
            const2((128, 128)), const2((1, 128)),            # fc3
        ],
        out_specs=pl.BlockSpec((nb, 128), lambda b: (b, 0)),
        compiler_params=pltpu.CompilerParams(
            dimension_semantics=("parallel",)),
    )(x, prep["m1"], prep["b1"], prep["m2"], prep["b2"],
      prep["fc1w"], prep["fc1b"], prep["fc2w"], prep["fc2b"],
      prep["fc3w"], prep["fc3b"])
    return out[:n, :FC3]


# ---------------------------------------------------------------------------
# Parameters (deterministic synthetic init, torch layouts)
# ---------------------------------------------------------------------------
def init_params(key):
    ks = jax.random.split(key, 10)

    def u(k, shape, fan_in):
        bound = 1.0 / jnp.sqrt(jnp.float32(fan_in))
        return jax.random.uniform(k, shape, jnp.float32, -bound, bound)

    return {
        "conv1_w": u(ks[0], (C1, C_IN, KH, KW), C_IN * KH * KW),
        "conv1_b": u(ks[1], (C1,), C_IN * KH * KW),
        "conv2_w": u(ks[2], (C2, C1, KH, KW), C1 * KH * KW),
        "conv2_b": u(ks[3], (C2,), C1 * KH * KW),
        "fc1_w": u(ks[4], (FC1, C2 * 5 * 5), C2 * 5 * 5),
        "fc1_b": u(ks[5], (FC1,), C2 * 5 * 5),
        "fc2_w": u(ks[6], (FC2, FC1), FC1),
        "fc2_b": u(ks[7], (FC2,), FC1),
        "fc3_w": u(ks[8], (FC3, FC2), FC2),
        "fc3_b": u(ks[9], (FC3,), FC2),
    }


# ---------------------------------------------------------------------------
# Pure-JAX reference (for correctness check)
# ---------------------------------------------------------------------------
def cnn_reference(x_nchw, p):
    hi = lax.Precision.HIGHEST

    def conv(v, w, b):
        y = lax.conv_general_dilated(
            v, w, window_strides=(1, 1), padding="VALID",
            dimension_numbers=("NCHW", "OIHW", "NCHW"), precision=hi)
        return jax.nn.relu(y + b[None, :, None, None])

    def pool(v):
        return lax.reduce_window(v, -jnp.inf, lax.max,
                                 (1, 1, 2, 2), (1, 1, 2, 2), "VALID")

    out = pool(conv(x_nchw.astype(jnp.float32), p["conv1_w"], p["conv1_b"]))
    out = pool(conv(out, p["conv2_w"], p["conv2_b"]))
    out = out.reshape(out.shape[0], -1)                  # NCHW flatten order
    out = jax.nn.relu(jnp.dot(out, p["fc1_w"].T, precision=hi) + p["fc1_b"])
    out = jax.nn.relu(jnp.dot(out, p["fc2_w"].T, precision=hi) + p["fc2_b"])
    return jnp.dot(out, p["fc3_w"].T, precision=hi) + p["fc3_b"]


if __name__ == "__main__":
    key = jax.random.PRNGKey(0)
    k_x, k_p = jax.random.split(key)
    # fc1 = Linear(16*5*5, 120) pins the input to 3x32x32; batch kept small.
    x = jax.random.normal(k_x, (2, 3, 32, 32), dtype=jnp.float32)
    params = init_params(k_p)
    prep = prepare_params(params)

    fwd = jax.jit(cnn_forward)
    logits = fwd(x, prep)
    jax.block_until_ready(logits)
    assert logits.shape == (2, 10) and logits.dtype == jnp.float32

    ref = cnn_reference(x, params)
    err = float(jnp.max(jnp.abs(logits - ref)))
    # bf16 matmul operands (f32 accumulation) vs. f32 HIGHEST reference.
    assert err < 2e-2, f"kernel/reference mismatch: max abs err {err}"
    print("KERNEL_OK")
</pallas_src>

<mosaic_0001>
module attributes {stable_mosaic.version = 11 : i64} {
  func.func @_cnn_fused_kernel(%arg0: i32, %arg1: memref<256x128xf32, #tpu.memory_space<vmem>>, %arg2: memref<5x128x256xbf16, #tpu.memory_space<vmem>>, %arg3: memref<1x256xf32, #tpu.memory_space<vmem>>, %arg4: memref<5x256x256xbf16, #tpu.memory_space<vmem>>, %arg5: memref<1x256xf32, #tpu.memory_space<vmem>>, %arg6: memref<5x256x128xbf16, #tpu.memory_space<vmem>>, %arg7: memref<1x128xf32, #tpu.memory_space<vmem>>, %arg8: memref<128x128xbf16, #tpu.memory_space<vmem>>, %arg9: memref<1x128xf32, #tpu.memory_space<vmem>>, %arg10: memref<128x128xbf16, #tpu.memory_space<vmem>>, %arg11: memref<1x128xf32, #tpu.memory_space<vmem>>, %arg12: memref<8x128xf32, #tpu.memory_space<vmem>>) attributes {dimension_semantics = [#tpu.dimension_semantics<parallel>], iteration_bounds = array<i64: 1>, scalar_prefetch = 0 : i64, scratch_operands = 0 : i64, tpu.core_type = #tpu.core_type<tc>, window_params = [{transform_indices = @transform_0, window_bounds = array<i64: 256, 128>}, {pipeline_mode = #tpu.pipeline_mode<synchronous>, transform_indices = @transform_1, window_bounds = array<i64: 5, 128, 256>}, {pipeline_mode = #tpu.pipeline_mode<synchronous>, transform_indices = @transform_2, window_bounds = array<i64: 1, 256>}, {pipeline_mode = #tpu.pipeline_mode<synchronous>, transform_indices = @transform_3, window_bounds = array<i64: 5, 256, 256>}, {pipeline_mode = #tpu.pipeline_mode<synchronous>, transform_indices = @transform_4, window_bounds = array<i64: 1, 256>}, {pipeline_mode = #tpu.pipeline_mode<synchronous>, transform_indices = @transform_5, window_bounds = array<i64: 5, 256, 128>}, {pipeline_mode = #tpu.pipeline_mode<synchronous>, transform_indices = @transform_6, window_bounds = array<i64: 1, 128>}, {pipeline_mode = #tpu.pipeline_mode<synchronous>, transform_indices = @transform_7, window_bounds = array<i64: 128, 128>}, {pipeline_mode = #tpu.pipeline_mode<synchronous>, transform_indices = @transform_8, window_bounds = array<i64: 1, 128>}, {pipeline_mode = #tpu.pipeline_mode<synchronous>, transform_indices = @transform_9, window_bounds = array<i64: 128, 128>}, {pipeline_mode = #tpu.pipeline_mode<synchronous>, transform_indices = @transform_10, window_bounds = array<i64: 1, 128>}, {transform_indices = @transform_11, window_bounds = array<i64: 8, 128>}]} {
    %c0 = arith.constant 0 : index
    %c0_0 = arith.constant 0 : index
    %0 = vector.load %arg1[%c0, %c0_0] : memref<256x128xf32, #tpu.memory_space<vmem>>, vector<224x128xf32>
    %1 = arith.truncf %0 : vector<224x128xf32> to vector<224x128xbf16>
    %c0_1 = arith.constant 0 : index
    %c0_2 = arith.constant 0 : index
    %c0_3 = arith.constant 0 : index
    %2 = vector.load %arg2[%c0_1, %c0_2, %c0_3] : memref<5x128x256xbf16, #tpu.memory_space<vmem>>, vector<1x128x256xbf16>
    %3 = vector.shape_cast %2 : vector<1x128x256xbf16> to vector<128x256xbf16>
    %cst = arith.constant dense<0.000000e+00> : vector<224x256xf32>
    %4 = tpu.matmul %1, %3, %cst {dimension_numbers = #tpu.dot_dimension_numbers<[1], [0], [0], [1], [0, 0, 1, 1], [], []>} : vector<224x128xbf16>, vector<128x256xbf16>, vector<224x256xf32> -> vector<224x256xf32>
    %c8 = arith.constant 8 : index
    %c0_4 = arith.constant 0 : index
    %5 = vector.load %arg1[%c8, %c0_4] : memref<256x128xf32, #tpu.memory_space<vmem>>, vector<224x128xf32>
    %6 = arith.truncf %5 : vector<224x128xf32> to vector<224x128xbf16>
    %c1 = arith.constant 1 : index
    %c0_5 = arith.constant 0 : index
    %c0_6 = arith.constant 0 : index
    %7 = vector.load %arg2[%c1, %c0_5, %c0_6] : memref<5x128x256xbf16, #tpu.memory_space<vmem>>, vector<1x128x256xbf16>
    %8 = vector.shape_cast %7 : vector<1x128x256xbf16> to vector<128x256xbf16>
    %cst_7 = arith.constant dense<0.000000e+00> : vector<224x256xf32>
    %9 = tpu.matmul %6, %8, %cst_7 {dimension_numbers = #tpu.dot_dimension_numbers<[1], [0], [0], [1], [0, 0, 1, 1], [], []>} : vector<224x128xbf16>, vector<128x256xbf16>, vector<224x256xf32> -> vector<224x256xf32>
    %10 = arith.addf %4, %9 : vector<224x256xf32>
    %c16 = arith.constant 16 : index
    %c0_8 = arith.constant 0 : index
    %11 = vector.load %arg1[%c16, %c0_8] : memref<256x128xf32, #tpu.memory_space<vmem>>, vector<224x128xf32>
    %12 = arith.truncf %11 : vector<224x128xf32> to vector<224x128xbf16>
    %c2 = arith.constant 2 : index
    %c0_9 = arith.constant 0 : index
    %c0_10 = arith.constant 0 : index
    %13 = vector.load %arg2[%c2, %c0_9, %c0_10] : memref<5x128x256xbf16, #tpu.memory_space<vmem>>, vector<1x128x256xbf16>
    %14 = vector.shape_cast %13 : vector<1x128x256xbf16> to vector<128x256xbf16>
    %cst_11 = arith.constant dense<0.000000e+00> : vector<224x256xf32>
    %15 = tpu.matmul %12, %14, %cst_11 {dimension_numbers = #tpu.dot_dimension_numbers<[1], [0], [0], [1], [0, 0, 1, 1], [], []>} : vector<224x128xbf16>, vector<128x256xbf16>, vector<224x256xf32> -> vector<224x256xf32>
    %16 = arith.addf %10, %15 : vector<224x256xf32>
    %c24 = arith.constant 24 : index
    %c0_12 = arith.constant 0 : index
    %17 = vector.load %arg1[%c24, %c0_12] : memref<256x128xf32, #tpu.memory_space<vmem>>, vector<224x128xf32>
    %18 = arith.truncf %17 : vector<224x128xf32> to vector<224x128xbf16>
    %c3 = arith.constant 3 : index
    %c0_13 = arith.constant 0 : index
    %c0_14 = arith.constant 0 : index
    %19 = vector.load %arg2[%c3, %c0_13, %c0_14] : memref<5x128x256xbf16, #tpu.memory_space<vmem>>, vector<1x128x256xbf16>
    %20 = vector.shape_cast %19 : vector<1x128x256xbf16> to vector<128x256xbf16>
    %cst_15 = arith.constant dense<0.000000e+00> : vector<224x256xf32>
    %21 = tpu.matmul %18, %20, %cst_15 {dimension_numbers = #tpu.dot_dimension_numbers<[1], [0], [0], [1], [0, 0, 1, 1], [], []>} : vector<224x128xbf16>, vector<128x256xbf16>, vector<224x256xf32> -> vector<224x256xf32>
    %22 = arith.addf %16, %21 : vector<224x256xf32>
    %c32 = arith.constant 32 : index
    %c0_16 = arith.constant 0 : index
    %23 = vector.load %arg1[%c32, %c0_16] : memref<256x128xf32, #tpu.memory_space<vmem>>, vector<224x128xf32>
    %24 = arith.truncf %23 : vector<224x128xf32> to vector<224x128xbf16>
    %c4 = arith.constant 4 : index
    %c0_17 = arith.constant 0 : index
    %c0_18 = arith.constant 0 : index
    %25 = vector.load %arg2[%c4, %c0_17, %c0_18] : memref<5x128x256xbf16, #tpu.memory_space<vmem>>, vector<1x128x256xbf16>
    %26 = vector.shape_cast %25 : vector<1x128x256xbf16> to vector<128x256xbf16>
    %cst_19 = arith.constant dense<0.000000e+00> : vector<224x256xf32>
    %27 = tpu.matmul %24, %26, %cst_19 {dimension_numbers = #tpu.dot_dimension_numbers<[1], [0], [0], [1], [0, 0, 1, 1], [], []>} : vector<224x128xbf16>, vector<128x256xbf16>, vector<224x256xf32> -> vector<224x256xf32>
    %28 = arith.addf %22, %27 : vector<224x256xf32>
    %c0_20 = arith.constant 0 : index
    %c0_21 = arith.constant 0 : index
    %29 = vector.load %arg3[%c0_20, %c0_21] : memref<1x256xf32, #tpu.memory_space<vmem>>, vector<1x256xf32>
    %30 = vector.broadcast %29 : vector<1x256xf32> to vector<224x256xf32>
    %31 = arith.addf %28, %30 : vector<224x256xf32>
    %cst_22 = arith.constant 0.000000e+00 : f32
    %32 = vector.broadcast %cst_22 : f32 to vector<224x256xf32>
    %33 = arith.maximumf %31, %32 : vector<224x256xf32>
    %34 = vector.extract_strided_slice %33 {offsets = [0, 0], sizes = [8, 256], strides = [1, 1]} : vector<224x256xf32> to vector<8x256xf32>
    %35 = vector.extract_strided_slice %33 {offsets = [8, 0], sizes = [8, 256], strides = [1, 1]} : vector<224x256xf32> to vector<8x256xf32>
    %36 = arith.maximumf %34, %35 : vector<8x256xf32>
    %37 = vector.extract_strided_slice %33 {offsets = [16, 0], sizes = [8, 256], strides = [1, 1]} : vector<224x256xf32> to vector<8x256xf32>
    %38 = vector.extract_strided_slice %33 {offsets = [24, 0], sizes = [8, 256], strides = [1, 1]} : vector<224x256xf32> to vector<8x256xf32>
    %39 = arith.maximumf %37, %38 : vector<8x256xf32>
    %40 = vector.extract_strided_slice %33 {offsets = [32, 0], sizes = [8, 256], strides = [1, 1]} : vector<224x256xf32> to vector<8x256xf32>
    %41 = vector.extract_strided_slice %33 {offsets = [40, 0], sizes = [8, 256], strides = [1, 1]} : vector<224x256xf32> to vector<8x256xf32>
    %42 = arith.maximumf %40, %41 : vector<8x256xf32>
    %43 = vector.extract_strided_slice %33 {offsets = [48, 0], sizes = [8, 256], strides = [1, 1]} : vector<224x256xf32> to vector<8x256xf32>
    %44 = vector.extract_strided_slice %33 {offsets = [56, 0], sizes = [8, 256], strides = [1, 1]} : vector<224x256xf32> to vector<8x256xf32>
    %45 = arith.maximumf %43, %44 : vector<8x256xf32>
    %46 = vector.extract_strided_slice %33 {offsets = [64, 0], sizes = [8, 256], strides = [1, 1]} : vector<224x256xf32> to vector<8x256xf32>
    %47 = vector.extract_strided_slice %33 {offsets = [72, 0], sizes = [8, 256], strides = [1, 1]} : vector<224x256xf32> to vector<8x256xf32>
    %48 = arith.maximumf %46, %47 : vector<8x256xf32>
    %49 = vector.extract_strided_slice %33 {offsets = [80, 0], sizes = [8, 256], strides = [1, 1]} : vector<224x256xf32> to vector<8x256xf32>
    %50 = vector.extract_strided_slice %33 {offsets = [88, 0], sizes = [8, 256], strides = [1, 1]} : vector<224x256xf32> to vector<8x256xf32>
    %51 = arith.maximumf %49, %50 : vector<8x256xf32>
    %52 = vector.extract_strided_slice %33 {offsets = [96, 0], sizes = [8, 256], strides = [1, 1]} : vector<224x256xf32> to vector<8x256xf32>
    %53 = vector.extract_strided_slice %33 {offsets = [104, 0], sizes = [8, 256], strides = [1, 1]} : vector<224x256xf32> to vector<8x256xf32>
    %54 = arith.maximumf %52, %53 : vector<8x256xf32>
    %55 = vector.extract_strided_slice %33 {offsets = [112, 0], sizes = [8, 256], strides = [1, 1]} : vector<224x256xf32> to vector<8x256xf32>
    %56 = vector.extract_strided_slice %33 {offsets = [120, 0], sizes = [8, 256], strides = [1, 1]} : vector<224x256xf32> to vector<8x256xf32>
    %57 = arith.maximumf %55, %56 : vector<8x256xf32>
    %58 = vector.extract_strided_slice %33 {offsets = [128, 0], sizes = [8, 256], strides = [1, 1]} : vector<224x256xf32> to vector<8x256xf32>
    %59 = vector.extract_strided_slice %33 {offsets = [136, 0], sizes = [8, 256], strides = [1, 1]} : vector<224x256xf32> to vector<8x256xf32>
    %60 = arith.maximumf %58, %59 : vector<8x256xf32>
    %61 = vector.extract_strided_slice %33 {offsets = [144, 0], sizes = [8, 256], strides = [1, 1]} : vector<224x256xf32> to vector<8x256xf32>
    %62 = vector.extract_strided_slice %33 {offsets = [152, 0], sizes = [8, 256], strides = [1, 1]} : vector<224x256xf32> to vector<8x256xf32>
    %63 = arith.maximumf %61, %62 : vector<8x256xf32>
    %64 = vector.extract_strided_slice %33 {offsets = [160, 0], sizes = [8, 256], strides = [1, 1]} : vector<224x256xf32> to vector<8x256xf32>
    %65 = vector.extract_strided_slice %33 {offsets = [168, 0], sizes = [8, 256], strides = [1, 1]} : vector<224x256xf32> to vector<8x256xf32>
    %66 = arith.maximumf %64, %65 : vector<8x256xf32>
    %67 = vector.extract_strided_slice %33 {offsets = [176, 0], sizes = [8, 256], strides = [1, 1]} : vector<224x256xf32> to vector<8x256xf32>
    %68 = vector.extract_strided_slice %33 {offsets = [184, 0], sizes = [8, 256], strides = [1, 1]} : vector<224x256xf32> to vector<8x256xf32>
    %69 = arith.maximumf %67, %68 : vector<8x256xf32>
    %70 = vector.extract_strided_slice %33 {offsets = [192, 0], sizes = [8, 256], strides = [1, 1]} : vector<224x256xf32> to vector<8x256xf32>
    %71 = vector.extract_strided_slice %33 {offsets = [200, 0], sizes = [8, 256], strides = [1, 1]} : vector<224x256xf32> to vector<8x256xf32>
    %72 = arith.maximumf %70, %71 : vector<8x256xf32>
    %73 = vector.extract_strided_slice %33 {offsets = [208, 0], sizes = [8, 256], strides = [1, 1]} : vector<224x256xf32> to vector<8x256xf32>
    %74 = vector.extract_strided_slice %33 {offsets = [216, 0], sizes = [8, 256], strides = [1, 1]} : vector<224x256xf32> to vector<8x256xf32>
    %75 = arith.maximumf %73, %74 : vector<8x256xf32>
    %76 = tpu.concatenate %36, %39, %42, %45, %48, %51, %54, %57, %60, %63, %66, %69, %72, %75 in 0 : vector<8x256xf32>, vector<8x256xf32>, vector<8x256xf32>, vector<8x256xf32>, vector<8x256xf32>, vector<8x256xf32>, vector<8x256xf32>, vector<8x256xf32>, vector<8x256xf32>, vector<8x256xf32>, vector<8x256xf32>, vector<8x256xf32>, vector<8x256xf32>, vector<8x256xf32> -> vector<112x256xf32>
    %77 = vector.extract_strided_slice %76 {offsets = [0, 8], sizes = [112, 248], strides = [1, 1]} : vector<112x256xf32> to vector<112x248xf32>
    %cst_23 = arith.constant 0.000000e+00 : f32
    %78 = vector.broadcast %cst_23 : f32 to vector<112x8xf32>
    %79 = tpu.concatenate %77, %78 in 1 : vector<112x248xf32>, vector<112x8xf32> -> vector<112x256xf32>
    %80 = arith.maximumf %76, %79 : vector<112x256xf32>
    %81 = vector.extract_strided_slice %80 {offsets = [0, 0], sizes = [80, 256], strides = [1, 1]} : vector<112x256xf32> to vector<80x256xf32>
    %82 = arith.truncf %81 : vector<80x256xf32> to vector<80x256xbf16>
    %c0_24 = arith.constant 0 : index
    %c0_25 = arith.constant 0 : index
    %c0_26 = arith.constant 0 : index
    %83 = vector.load %arg4[%c0_24, %c0_25, %c0_26] : memref<5x256x256xbf16, #tpu.memory_space<vmem>>, vector<1x256x256xbf16>
    %84 = vector.shape_cast %83 : vector<1x256x256xbf16> to vector<256x256xbf16>
    %cst_27 = arith.constant dense<0.000000e+00> : vector<80x256xf32>
    %85 = tpu.matmul %82, %84, %cst_27 {dimension_numbers = #tpu.dot_dimension_numbers<[1], [0], [0], [1], [0, 0, 1, 1], [], []>} : vector<80x256xbf16>, vector<256x256xbf16>, vector<80x256xf32> -> vector<80x256xf32>
    %86 = vector.extract_strided_slice %80 {offsets = [8, 0], sizes = [80, 256], strides = [1, 1]} : vector<112x256xf32> to vector<80x256xf32>
    %87 = arith.truncf %86 : vector<80x256xf32> to vector<80x256xbf16>
    %c1_28 = arith.constant 1 : index
    %c0_29 = arith.constant 0 : index
    %c0_30 = arith.constant 0 : index
    %88 = vector.load %arg4[%c1_28, %c0_29, %c0_30] : memref<5x256x256xbf16, #tpu.memory_space<vmem>>, vector<1x256x256xbf16>
    %89 = vector.shape_cast %88 : vector<1x256x256xbf16> to vector<256x256xbf16>
    %cst_31 = arith.constant dense<0.000000e+00> : vector<80x256xf32>
    %90 = tpu.matmul %87, %89, %cst_31 {dimension_numbers = #tpu.dot_dimension_numbers<[1], [0], [0], [1], [0, 0, 1, 1], [], []>} : vector<80x256xbf16>, vector<256x256xbf16>, vector<80x256xf32> -> vector<80x256xf32>
    %91 = arith.addf %85, %90 : vector<80x256xf32>
    %92 = vector.extract_strided_slice %80 {offsets = [16, 0], sizes = [80, 256], strides = [1, 1]} : vector<112x256xf32> to vector<80x256xf32>
    %93 = arith.truncf %92 : vector<80x256xf32> to vector<80x256xbf16>
    %c2_32 = arith.constant 2 : index
    %c0_33 = arith.constant 0 : index
    %c0_34 = arith.constant 0 : index
    %94 = vector.load %arg4[%c2_32, %c0_33, %c0_34] : memref<5x256x256xbf16, #tpu.memory_space<vmem>>, vector<1x256x256xbf16>
    %95 = vector.shape_cast %94 : vector<1x256x256xbf16> to vector<256x256xbf16>
    %cst_35 = arith.constant dense<0.000000e+00> : vector<80x256xf32>
    %96 = tpu.matmul %93, %95, %cst_35 {dimension_numbers = #tpu.dot_dimension_numbers<[1], [0], [0], [1], [0, 0, 1, 1], [], []>} : vector<80x256xbf16>, vector<256x256xbf16>, vector<80x256xf32> -> vector<80x256xf32>
    %97 = arith.addf %91, %96 : vector<80x256xf32>
    %98 = vector.extract_strided_slice %80 {offsets = [24, 0], sizes = [80, 256], strides = [1, 1]} : vector<112x256xf32> to vector<80x256xf32>
    %99 = arith.truncf %98 : vector<80x256xf32> to vector<80x256xbf16>
    %c3_36 = arith.constant 3 : index
    %c0_37 = arith.constant 0 : index
    %c0_38 = arith.constant 0 : index
    %100 = vector.load %arg4[%c3_36, %c0_37, %c0_38] : memref<5x256x256xbf16, #tpu.memory_space<vmem>>, vector<1x256x256xbf16>
    %101 = vector.shape_cast %100 : vector<1x256x256xbf16> to vector<256x256xbf16>
    %cst_39 = arith.constant dense<0.000000e+00> : vector<80x256xf32>
    %102 = tpu.matmul %99, %101, %cst_39 {dimension_numbers = #tpu.dot_dimension_numbers<[1], [0], [0], [1], [0, 0, 1, 1], [], []>} : vector<80x256xbf16>, vector<256x256xbf16>, vector<80x256xf32> -> vector<80x256xf32>
    %103 = arith.addf %97, %102 : vector<80x256xf32>
    %104 = vector.extract_strided_slice %80 {offsets = [32, 0], sizes = [80, 256], strides = [1, 1]} : vector<112x256xf32> to vector<80x256xf32>
    %105 = arith.truncf %104 : vector<80x256xf32> to vector<80x256xbf16>
    %c4_40 = arith.constant 4 : index
    %c0_41 = arith.constant 0 : index
    %c0_42 = arith.constant 0 : index
    %106 = vector.load %arg4[%c4_40, %c0_41, %c0_42] : memref<5x256x256xbf16, #tpu.memory_space<vmem>>, vector<1x256x256xbf16>
    %107 = vector.shape_cast %106 : vector<1x256x256xbf16> to vector<256x256xbf16>
    %cst_43 = arith.constant dense<0.000000e+00> : vector<80x256xf32>
    %108 = tpu.matmul %105, %107, %cst_43 {dimension_numbers = #tpu.dot_dimension_numbers<[1], [0], [0], [1], [0, 0, 1, 1], [], []>} : vector<80x256xbf16>, vector<256x256xbf16>, vector<80x256xf32> -> vector<80x256xf32>
    %109 = arith.addf %103, %108 : vector<80x256xf32>
    %c0_44 = arith.constant 0 : index
    %c0_45 = arith.constant 0 : index
    %110 = vector.load %arg5[%c0_44, %c0_45] : memref<1x256xf32, #tpu.memory_space<vmem>>, vector<1x256xf32>
    %111 = vector.broadcast %110 : vector<1x256xf32> to vector<80x256xf32>
    %112 = arith.addf %109, %111 : vector<80x256xf32>
    %cst_46 = arith.constant 0.000000e+00 : f32
    %113 = vector.broadcast %cst_46 : f32 to vector<80x256xf32>
    %114 = arith.maximumf %112, %113 : vector<80x256xf32>
    %115 = vector.extract_strided_slice %114 {offsets = [0, 0], sizes = [8, 256], strides = [1, 1]} : vector<80x256xf32> to vector<8x256xf32>
    %116 = vector.extract_strided_slice %114 {offsets = [8, 0], sizes = [8, 256], strides = [1, 1]} : vector<80x256xf32> to vector<8x256xf32>
    %117 = arith.maximumf %115, %116 : vector<8x256xf32>
    %118 = vector.extract_strided_slice %114 {offsets = [16, 0], sizes = [8, 256], strides = [1, 1]} : vector<80x256xf32> to vector<8x256xf32>
    %119 = vector.extract_strided_slice %114 {offsets = [24, 0], sizes = [8, 256], strides = [1, 1]} : vector<80x256xf32> to vector<8x256xf32>
    %120 = arith.maximumf %118, %119 : vector<8x256xf32>
    %121 = vector.extract_strided_slice %114 {offsets = [32, 0], sizes = [8, 256], strides = [1, 1]} : vector<80x256xf32> to vector<8x256xf32>
    %122 = vector.extract_strided_slice %114 {offsets = [40, 0], sizes = [8, 256], strides = [1, 1]} : vector<80x256xf32> to vector<8x256xf32>
    %123 = arith.maximumf %121, %122 : vector<8x256xf32>
    %124 = vector.extract_strided_slice %114 {offsets = [48, 0], sizes = [8, 256], strides = [1, 1]} : vector<80x256xf32> to vector<8x256xf32>
    %125 = vector.extract_strided_slice %114 {offsets = [56, 0], sizes = [8, 256], strides = [1, 1]} : vector<80x256xf32> to vector<8x256xf32>
    %126 = arith.maximumf %124, %125 : vector<8x256xf32>
    %127 = vector.extract_strided_slice %114 {offsets = [64, 0], sizes = [8, 256], strides = [1, 1]} : vector<80x256xf32> to vector<8x256xf32>
    %128 = vector.extract_strided_slice %114 {offsets = [72, 0], sizes = [8, 256], strides = [1, 1]} : vector<80x256xf32> to vector<8x256xf32>
    %129 = arith.maximumf %127, %128 : vector<8x256xf32>
    %130 = tpu.concatenate %117, %120, %123, %126, %129 in 0 : vector<8x256xf32>, vector<8x256xf32>, vector<8x256xf32>, vector<8x256xf32>, vector<8x256xf32> -> vector<40x256xf32>
    %131 = vector.extract_strided_slice %130 {offsets = [0, 16], sizes = [40, 240], strides = [1, 1]} : vector<40x256xf32> to vector<40x240xf32>
    %cst_47 = arith.constant 0.000000e+00 : f32
    %132 = vector.broadcast %cst_47 : f32 to vector<40x16xf32>
    %133 = tpu.concatenate %131, %132 in 1 : vector<40x240xf32>, vector<40x16xf32> -> vector<40x256xf32>
    %134 = arith.maximumf %130, %133 : vector<40x256xf32>
    %135 = vector.extract_strided_slice %134 {offsets = [0, 0], sizes = [8, 256], strides = [1, 1]} : vector<40x256xf32> to vector<8x256xf32>
    %136 = arith.truncf %135 : vector<8x256xf32> to vector<8x256xbf16>
    %c0_48 = arith.constant 0 : index
    %c0_49 = arith.constant 0 : index
    %c0_50 = arith.constant 0 : index
    %137 = vector.load %arg6[%c0_48, %c0_49, %c0_50] : memref<5x256x128xbf16, #tpu.memory_space<vmem>>, vector<1x256x128xbf16>
    %138 = vector.shape_cast %137 : vector<1x256x128xbf16> to vector<256x128xbf16>
    %cst_51 = arith.constant dense<0.000000e+00> : vector<8x128xf32>
    %139 = tpu.matmul %136, %138, %cst_51 {dimension_numbers = #tpu.dot_dimension_numbers<[1], [0], [0], [1], [0, 0, 1, 1], [], []>} : vector<8x256xbf16>, vector<256x128xbf16>, vector<8x128xf32> -> vector<8x128xf32>
    %140 = vector.extract_strided_slice %134 {offsets = [8, 0], sizes = [8, 256], strides = [1, 1]} : vector<40x256xf32> to vector<8x256xf32>
    %141 = arith.truncf %140 : vector<8x256xf32> to vector<8x256xbf16>
    %c1_52 = arith.constant 1 : index
    %c0_53 = arith.constant 0 : index
    %c0_54 = arith.constant 0 : index
    %142 = vector.load %arg6[%c1_52, %c0_53, %c0_54] : memref<5x256x128xbf16, #tpu.memory_space<vmem>>, vector<1x256x128xbf16>
    %143 = vector.shape_cast %142 : vector<1x256x128xbf16> to vector<256x128xbf16>
    %cst_55 = arith.constant dense<0.000000e+00> : vector<8x128xf32>
    %144 = tpu.matmul %141, %143, %cst_55 {dimension_numbers = #tpu.dot_dimension_numbers<[1], [0], [0], [1], [0, 0, 1, 1], [], []>} : vector<8x256xbf16>, vector<256x128xbf16>, vector<8x128xf32> -> vector<8x128xf32>
    %145 = arith.addf %139, %144 : vector<8x128xf32>
    %146 = vector.extract_strided_slice %134 {offsets = [16, 0], sizes = [8, 256], strides = [1, 1]} : vector<40x256xf32> to vector<8x256xf32>
    %147 = arith.truncf %146 : vector<8x256xf32> to vector<8x256xbf16>
    %c2_56 = arith.constant 2 : index
    %c0_57 = arith.constant 0 : index
    %c0_58 = arith.constant 0 : index
    %148 = vector.load %arg6[%c2_56, %c0_57, %c0_58] : memref<5x256x128xbf16, #tpu.memory_space<vmem>>, vector<1x256x128xbf16>
    %149 = vector.shape_cast %148 : vector<1x256x128xbf16> to vector<256x128xbf16>
    %cst_59 = arith.constant dense<0.000000e+00> : vector<8x128xf32>
    %150 = tpu.matmul %147, %149, %cst_59 {dimension_numbers = #tpu.dot_dimension_numbers<[1], [0], [0], [1], [0, 0, 1, 1], [], []>} : vector<8x256xbf16>, vector<256x128xbf16>, vector<8x128xf32> -> vector<8x128xf32>
    %151 = arith.addf %145, %150 : vector<8x128xf32>
    %152 = vector.extract_strided_slice %134 {offsets = [24, 0], sizes = [8, 256], strides = [1, 1]} : vector<40x256xf32> to vector<8x256xf32>
    %153 = arith.truncf %152 : vector<8x256xf32> to vector<8x256xbf16>
    %c3_60 = arith.constant 3 : index
    %c0_61 = arith.constant 0 : index
    %c0_62 = arith.constant 0 : index
    %154 = vector.load %arg6[%c3_60, %c0_61, %c0_62] : memref<5x256x128xbf16, #tpu.memory_space<vmem>>, vector<1x256x128xbf16>
    %155 = vector.shape_cast %154 : vector<1x256x128xbf16> to vector<256x128xbf16>
    %cst_63 = arith.constant dense<0.000000e+00> : vector<8x128xf32>
    %156 = tpu.matmul %153, %155, %cst_63 {dimension_numbers = #tpu.dot_dimension_numbers<[1], [0], [0], [1], [0, 0, 1, 1], [], []>} : vector<8x256xbf16>, vector<256x128xbf16>, vector<8x128xf32> -> vector<8x128xf32>
    %157 = arith.addf %151, %156 : vector<8x128xf32>
    %158 = vector.extract_strided_slice %134 {offsets = [32, 0], sizes = [8, 256], strides = [1, 1]} : vector<40x256xf32> to vector<8x256xf32>
    %159 = arith.truncf %158 : vector<8x256xf32> to vector<8x256xbf16>
    %c4_64 = arith.constant 4 : index
    %c0_65 = arith.constant 0 : index
    %c0_66 = arith.constant 0 : index
    %160 = vector.load %arg6[%c4_64, %c0_65, %c0_66] : memref<5x256x128xbf16, #tpu.memory_space<vmem>>, vector<1x256x128xbf16>
    %161 = vector.shape_cast %160 : vector<1x256x128xbf16> to vector<256x128xbf16>
    %cst_67 = arith.constant dense<0.000000e+00> : vector<8x128xf32>
    %162 = tpu.matmul %159, %161, %cst_67 {dimension_numbers = #tpu.dot_dimension_numbers<[1], [0], [0], [1], [0, 0, 1, 1], [], []>} : vector<8x256xbf16>, vector<256x128xbf16>, vector<8x128xf32> -> vector<8x128xf32>
    %163 = arith.addf %157, %162 : vector<8x128xf32>
    %c0_68 = arith.constant 0 : index
    %c0_69 = arith.constant 0 : index
    %164 = vector.load %arg7[%c0_68, %c0_69] : memref<1x128xf32, #tpu.memory_space<vmem>>, vector<1x128xf32>
    %165 = vector.broadcast %164 : vector<1x128xf32> to vector<8x128xf32>
    %166 = arith.addf %163, %165 : vector<8x128xf32>
    %cst_70 = arith.constant 0.000000e+00 : f32
    %167 = vector.broadcast %cst_70 : f32 to vector<8x128xf32>
    %168 = arith.maximumf %166, %167 : vector<8x128xf32>
    %169 = arith.truncf %168 : vector<8x128xf32> to vector<8x128xbf16>
    %c0_71 = arith.constant 0 : index
    %c0_72 = arith.constant 0 : index
    %170 = vector.load %arg8[%c0_71, %c0_72] : memref<128x128xbf16, #tpu.memory_space<vmem>>, vector<128x128xbf16>
    %cst_73 = arith.constant dense<0.000000e+00> : vector<8x128xf32>
    %171 = tpu.matmul %169, %170, %cst_73 {dimension_numbers = #tpu.dot_dimension_numbers<[1], [0], [0], [1], [0, 0, 1, 1], [], []>} : vector<8x128xbf16>, vector<128x128xbf16>, vector<8x128xf32> -> vector<8x128xf32>
    %c0_74 = arith.constant 0 : index
    %c0_75 = arith.constant 0 : index
    %172 = vector.load %arg9[%c0_74, %c0_75] : memref<1x128xf32, #tpu.memory_space<vmem>>, vector<1x128xf32>
    %173 = vector.broadcast %172 : vector<1x128xf32> to vector<8x128xf32>
    %174 = arith.addf %171, %173 : vector<8x128xf32>
    %cst_76 = arith.constant 0.000000e+00 : f32
    %175 = vector.broadcast %cst_76 : f32 to vector<8x128xf32>
    %176 = arith.maximumf %174, %175 : vector<8x128xf32>
    %177 = arith.truncf %176 : vector<8x128xf32> to vector<8x128xbf16>
    %c0_77 = arith.constant 0 : index
    %c0_78 = arith.constant 0 : index
    %178 = vector.load %arg10[%c0_77, %c0_78] : memref<128x128xbf16, #tpu.memory_space<vmem>>, vector<128x128xbf16>
    %cst_79 = arith.constant dense<0.000000e+00> : vector<8x128xf32>
    %179 = tpu.matmul %177, %178, %cst_79 {dimension_numbers = #tpu.dot_dimension_numbers<[1], [0], [0], [1], [0, 0, 1, 1], [], []>} : vector<8x128xbf16>, vector<128x128xbf16>, vector<8x128xf32> -> vector<8x128xf32>
    %c0_80 = arith.constant 0 : index
    %c0_81 = arith.constant 0 : index
    %180 = vector.load %arg11[%c0_80, %c0_81] : memref<1x128xf32, #tpu.memory_space<vmem>>, vector<1x128xf32>
    %181 = vector.broadcast %180 : vector<1x128xf32> to vector<8x128xf32>
    %182 = arith.addf %179, %181 : vector<8x128xf32>
    %c0_82 = arith.constant 0 : index
    %c0_83 = arith.constant 0 : index
    %183 = vector.load %arg12[%c0_82, %c0_83] : memref<8x128xf32, #tpu.memory_space<vmem>>, vector<8x128xf32>
    tpu.vector_store %arg12[%c0_82, %c0_83], %182 {strides = array<i32>} : memref<8x128xf32, #tpu.memory_space<vmem>>, vector<8x128xf32>,
    return
  }
  func.func @transform_0(%arg0: i32) -> (i32, i32) {
    %c0_i32 = arith.constant 0 : i32
    %c0_i32_0 = arith.constant 0 : i32
    return %arg0, %c0_i32 : i32, i32
  }
  func.func @transform_1(%arg0: i32) -> (i32, i32, i32) {
    %c0_i32 = arith.constant 0 : i32
    %c0_i32_0 = arith.constant 0 : i32
    %c0_i32_1 = arith.constant 0 : i32
    %c0_i32_2 = arith.constant 0 : i32
    return %c0_i32, %c0_i32_0, %c0_i32_1 : i32, i32, i32
  }
  func.func @transform_2(%arg0: i32) -> (i32, i32) {
    %c0_i32 = arith.constant 0 : i32
    %c0_i32_0 = arith.constant 0 : i32
    %c0_i32_1 = arith.constant 0 : i32
    return %c0_i32, %c0_i32_0 : i32, i32
  }
  func.func @transform_3(%arg0: i32) -> (i32, i32, i32) {
    %c0_i32 = arith.constant 0 : i32
    %c0_i32_0 = arith.constant 0 : i32
    %c0_i32_1 = arith.constant 0 : i32
    %c0_i32_2 = arith.constant 0 : i32
    return %c0_i32, %c0_i32_0, %c0_i32_1 : i32, i32, i32
  }
  func.func @transform_4(%arg0: i32) -> (i32, i32) {
    %c0_i32 = arith.constant 0 : i32
    %c0_i32_0 = arith.constant 0 : i32
    %c0_i32_1 = arith.constant 0 : i32
    return %c0_i32, %c0_i32_0 : i32, i32
  }
  func.func @transform_5(%arg0: i32) -> (i32, i32, i32) {
    %c0_i32 = arith.constant 0 : i32
    %c0_i32_0 = arith.constant 0 : i32
    %c0_i32_1 = arith.constant 0 : i32
    %c0_i32_2 = arith.constant 0 : i32
    return %c0_i32, %c0_i32_0, %c0_i32_1 : i32, i32, i32
  }
  func.func @transform_6(%arg0: i32) -> (i32, i32) {
    %c0_i32 = arith.constant 0 : i32
    %c0_i32_0 = arith.constant 0 : i32
    %c0_i32_1 = arith.constant 0 : i32
    return %c0_i32, %c0_i32_0 : i32, i32
  }
  func.func @transform_7(%arg0: i32) -> (i32, i32) {
    %c0_i32 = arith.constant 0 : i32
    %c0_i32_0 = arith.constant 0 : i32
    %c0_i32_1 = arith.constant 0 : i32
    return %c0_i32, %c0_i32_0 : i32, i32
  }
  func.func @transform_8(%arg0: i32) -> (i32, i32) {
    %c0_i32 = arith.constant 0 : i32
    %c0_i32_0 = arith.constant 0 : i32
    %c0_i32_1 = arith.constant 0 : i32
    return %c0_i32, %c0_i32_0 : i32, i32
  }
  func.func @transform_9(%arg0: i32) -> (i32, i32) {
    %c0_i32 = arith.constant 0 : i32
    %c0_i32_0 = arith.constant 0 : i32
    %c0_i32_1 = arith.constant 0 : i32
    return %c0_i32, %c0_i32_0 : i32, i32
  }
  func.func @transform_10(%arg0: i32) -> (i32, i32) {
    %c0_i32 = arith.constant 0 : i32
    %c0_i32_0 = arith.constant 0 : i32
    %c0_i32_1 = arith.constant 0 : i32
    return %c0_i32, %c0_i32_0 : i32, i32
  }
  func.func @transform_11(%arg0: i32) -> (i32, i32) {
    %c0_i32 = arith.constant 0 : i32
    %c0_i32_0 = arith.constant 0 : i32
    return %arg0, %c0_i32 : i32, i32
  }
}

</mosaic_0001>

<llo_original>
// kernel: cnn_forward.1
$region0: #{cnn_forward.1}
  #allocation0 [shape = 'u32[]', space=smem, size = 0x4, offset = 0x4, fixed_abs, tag = 'smem constant byte address 0x4 - core index']
  #allocation1 [shape = 'u32[144,128]{1,0:T(1,128)}', space=vmem, size = 0x12000, scoped, tag = 'internal scratch']
  %s0 = inlined_call_operand.vmem [shape: f32[256,128], index: 0, kind: input, shape index: {}]
  %s1 = inlined_call_operand.vmem [shape: bf16[5,128,256], index: 1, kind: input, shape index: {}]
  %s2 = inlined_call_operand.vmem [shape: f32[1,256], index: 2, kind: input, shape index: {}]
  %s3 = inlined_call_operand.vmem [shape: bf16[5,256,256], index: 3, kind: input, shape index: {}]
  %s4 = inlined_call_operand.vmem [shape: f32[1,256], index: 4, kind: input, shape index: {}]
  %s5 = inlined_call_operand.vmem [shape: bf16[5,256,128], index: 5, kind: input, shape index: {}]
  %s6 = inlined_call_operand.vmem [shape: f32[1,128], index: 6, kind: input, shape index: {}]
  %s7 = inlined_call_operand.vmem [shape: bf16[128,128], index: 7, kind: input, shape index: {}]
  %s8 = inlined_call_operand.vmem [shape: f32[1,128], index: 8, kind: input, shape index: {}]
  %s9 = inlined_call_operand.vmem [shape: bf16[128,128], index: 9, kind: input, shape index: {}]
  %s10 = inlined_call_operand.vmem [shape: f32[1,128], index: 10, kind: input, shape index: {}]
  %s11 = inlined_call_operand.vmem [shape: f32[8,128], index: 11, kind: output, shape index: {}]
  %s12 = sld [smem:[#allocation0]]
  $region54: #{cnn_forward.1} parent=0
    _
  %s14 = ssub.s32 1, %s12
  %s15 = scalar_select 0, %s14, %s12
  // Predicated region
  $region2: #{cnn_forward.1} parent=0 // pred_check
    _
  $region3: #{cnn_forward.1} parent=0 // pred_check_branch
    %17 = sbr.rel (0) target = $region5
  $region4: #{cnn_forward.1} parent=0 // pred_region
    _
  $region5: #{cnn_forward.1} parent=0 // pred_fallthru
    _
  // Predicated region
  $region6: #{cnn_forward.1} parent=0 // pred_check
    _
  $region7: #{cnn_forward.1} parent=0 // pred_check_branch
    %19 = sbr.rel (0) target = $region9
  $region8: #{cnn_forward.1} parent=0 // pred_region
    _
  $region9: #{cnn_forward.1} parent=0 // pred_fallthru
    _
  // Predicated region
  $region10: #{cnn_forward.1} parent=0 // pred_check
    _
  $region11: #{cnn_forward.1} parent=0 // pred_check_branch
    %21 = sbr.rel (0) target = $region13
  $region12: #{cnn_forward.1} parent=0 // pred_region
    _
  $region13: #{cnn_forward.1} parent=0 // pred_fallthru
    _
  // Predicated region
  $region14: #{cnn_forward.1} parent=0 // pred_check
    _
  $region15: #{cnn_forward.1} parent=0 // pred_check_branch
    %23 = sbr.rel (0) target = $region17
  $region16: #{cnn_forward.1} parent=0 // pred_region
    _
  $region17: #{cnn_forward.1} parent=0 // pred_fallthru
    _
  // Predicated region
  $region18: #{cnn_forward.1} parent=0 // pred_check
    _
  $region19: #{cnn_forward.1} parent=0 // pred_check_branch
    %25 = sbr.rel (0) target = $region21
  $region20: #{cnn_forward.1} parent=0 // pred_region
    _
  $region21: #{cnn_forward.1} parent=0 // pred_fallthru
    _
  // Predicated region
  $region22: #{cnn_forward.1} parent=0 // pred_check
    _
  $region23: #{cnn_forward.1} parent=0 // pred_check_branch
    %27 = sbr.rel (0) target = $region25
  $region24: #{cnn_forward.1} parent=0 // pred_region
    _
  $region25: #{cnn_forward.1} parent=0 // pred_fallthru
    _
  // Predicated region
  $region26: #{cnn_forward.1} parent=0 // pred_check
    _
  $region27: #{cnn_forward.1} parent=0 // pred_check_branch
    %29 = sbr.rel (0) target = $region29
  $region28: #{cnn_forward.1} parent=0 // pred_region
    _
  $region29: #{cnn_forward.1} parent=0 // pred_fallthru
    _
  // Predicated region
  $region30: #{cnn_forward.1} parent=0 // pred_check
    _
  $region31: #{cnn_forward.1} parent=0 // pred_check_branch
    %31 = sbr.rel (0) target = $region33
  $region32: #{cnn_forward.1} parent=0 // pred_region
    _
  $region33: #{cnn_forward.1} parent=0 // pred_fallthru
    _
  // Predicated region
  $region34: #{cnn_forward.1} parent=0 // pred_check
    _
  $region35: #{cnn_forward.1} parent=0 // pred_check_branch
    %33 = sbr.rel (0) target = $region37
  $region36: #{cnn_forward.1} parent=0 // pred_region
    _
  $region37: #{cnn_forward.1} parent=0 // pred_fallthru
    _
  // Predicated region
  $region38: #{cnn_forward.1} parent=0 // pred_check
    _
  $region39: #{cnn_forward.1} parent=0 // pred_check_branch
    %35 = sbr.rel (0) target = $region41
  $region40: #{cnn_forward.1} parent=0 // pred_region
    _
  $region41: #{cnn_forward.1} parent=0 // pred_fallthru
    _
  // Predicated region
  $region42: #{cnn_forward.1} parent=0 // pred_check
    _
  $region43: #{cnn_forward.1} parent=0 // pred_check_branch
    %37 = sbr.rel (0) target = $region45
  $region44: #{cnn_forward.1} parent=0 // pred_region
    _
  $region45: #{cnn_forward.1} parent=0 // pred_fallthru
    _
  %v39 = vld [vmem:[%s0] sm:$0xff]
  %v40 = vld [vmem:[%s0 + $0x8] sm:$0xff]
  %v41 = vld [vmem:[%s0 + $0x10] sm:$0xff]
  %v42 = vld [vmem:[%s0 + $0x18] sm:$0xff]
  %v43 = vld [vmem:[%s0 + $0x20] sm:$0xff]
  %v44 = vld [vmem:[%s0 + $0x28] sm:$0xff]
  %v45 = vld [vmem:[%s0 + $0x30] sm:$0xff]
  %v46 = vld [vmem:[%s0 + $0x38] sm:$0xff]
  %v47 = vld [vmem:[%s0 + $0x40] sm:$0xff]
  %v48 = vld [vmem:[%s0 + $0x48] sm:$0xff]
  %v49 = vld [vmem:[%s0 + $0x50] sm:$0xff]
  %v50 = vld [vmem:[%s0 + $0x58] sm:$0xff]
  %v51 = vld [vmem:[%s0 + $0x60] sm:$0xff]
  %v52 = vld [vmem:[%s0 + $0x68] sm:$0xff]
  %v53 = vld [vmem:[%s0 + $0x70] sm:$0xff]
  %v54 = vld [vmem:[%s0 + $0x78] sm:$0xff]
  %v55 = vld [vmem:[%s0 + $0x80] sm:$0xff]
  %v56 = vld [vmem:[%s0 + $0x88] sm:$0xff]
  %v57 = vld [vmem:[%s0 + $0x90] sm:$0xff]
  %v58 = vld [vmem:[%s0 + $0x98] sm:$0xff]
  %v59 = vld [vmem:[%s0 + $0xa0] sm:$0xff]
  %v60 = vld [vmem:[%s0 + $0xa8] sm:$0xff]
  %v61 = vld [vmem:[%s0 + $0xb0] sm:$0xff]
  %v62 = vld [vmem:[%s0 + $0xb8] sm:$0xff]
  %v63 = vld [vmem:[%s0 + $0xc0] sm:$0xff]
  %v64 = vld [vmem:[%s0 + $0xc8] sm:$0xff]
  %v65 = vld [vmem:[%s0 + $0xd0] sm:$0xff]
  %v66 = vld [vmem:[%s0 + $0xd8] sm:$0xff]
  %v67 = vpack.c.bf16 %v40, %v39
  %v68 = vpack.c.bf16 %v42, %v41
  %v69 = vpack.c.bf16 %v44, %v43
  %v70 = vpack.c.bf16 %v46, %v45
  %v71 = vpack.c.bf16 %v48, %v47
  %v72 = vpack.c.bf16 %v50, %v49
  %v73 = vpack.c.bf16 %v52, %v51
  %v74 = vpack.c.bf16 %v54, %v53
  %v75 = vpack.c.bf16 %v56, %v55
  %v76 = vpack.c.bf16 %v58, %v57
  %v77 = vpack.c.bf16 %v60, %v59
  %v78 = vpack.c.bf16 %v62, %v61
  %v79 = vpack.c.bf16 %v64, %v63
  %v80 = vpack.c.bf16 %v66, %v65
  %v81 = vld [vmem:[%s1] sm:$0xff]
  %v82 = vld [vmem:[%s1 + $0x8] sm:$0xff]
  %v83 = vld [vmem:[%s1 + $0x10] sm:$0xff]
  %v84 = vld [vmem:[%s1 + $0x18] sm:$0xff]
  %v85 = vld [vmem:[%s1 + $0x20] sm:$0xff]
  %v86 = vld [vmem:[%s1 + $0x28] sm:$0xff]
  %v87 = vld [vmem:[%s1 + $0x30] sm:$0xff]
  %v88 = vld [vmem:[%s1 + $0x38] sm:$0xff]
  %v89 = vld [vmem:[%s1 + $0x40] sm:$0xff]
  %v90 = vld [vmem:[%s1 + $0x48] sm:$0xff]
  %v91 = vld [vmem:[%s1 + $0x50] sm:$0xff]
  %v92 = vld [vmem:[%s1 + $0x58] sm:$0xff]
  %v93 = vld [vmem:[%s1 + $0x60] sm:$0xff]
  %v94 = vld [vmem:[%s1 + $0x68] sm:$0xff]
  %v95 = vld [vmem:[%s1 + $0x70] sm:$0xff]
  %v96 = vld [vmem:[%s1 + $0x78] sm:$0xff]
  %v97 = vld [vmem:[%s0 + $0xe0] sm:$0xff]
  %v98 = vpack.c.bf16 %v41, %v40
  %v99 = vpack.c.bf16 %v43, %v42
  %v100 = vpack.c.bf16 %v45, %v44
  %v101 = vpack.c.bf16 %v47, %v46
  %v102 = vpack.c.bf16 %v49, %v48
  %v103 = vpack.c.bf16 %v51, %v50
  %v104 = vpack.c.bf16 %v53, %v52
  %v105 = vpack.c.bf16 %v55, %v54
  %v106 = vpack.c.bf16 %v57, %v56
  %v107 = vpack.c.bf16 %v59, %v58
  %v108 = vpack.c.bf16 %v61, %v60
  %v109 = vpack.c.bf16 %v63, %v62
  %v110 = vpack.c.bf16 %v65, %v64
  %v111 = vpack.c.bf16 %v97, %v66
  %s112 = scalar_lea.vmem %s1, 128
  %v113 = vld [vmem:[%s112] sm:$0xff]
  %v114 = vld [vmem:[%s112 + $0x8] sm:$0xff]
  %v115 = vld [vmem:[%s112 + $0x10] sm:$0xff]
  %v116 = vld [vmem:[%s112 + $0x18] sm:$0xff]
  %v117 = vld [vmem:[%s112 + $0x20] sm:$0xff]
  %v118 = vld [vmem:[%s112 + $0x28] sm:$0xff]
  %v119 = vld [vmem:[%s112 + $0x30] sm:$0xff]
  %v120 = vld [vmem:[%s112 + $0x38] sm:$0xff]
  %v121 = vld [vmem:[%s112 + $0x40] sm:$0xff]
  %v122 = vld [vmem:[%s112 + $0x48] sm:$0xff]
  %v123 = vld [vmem:[%s112 + $0x50] sm:$0xff]
  %v124 = vld [vmem:[%s112 + $0x58] sm:$0xff]
  %v125 = vld [vmem:[%s112 + $0x60] sm:$0xff]
  %v126 = vld [vmem:[%s112 + $0x68] sm:$0xff]
  %v127 = vld [vmem:[%s112 + $0x70] sm:$0xff]
  %v128 = vld [vmem:[%s112 + $0x78] sm:$0xff]
  %v145 = vunpack.c.l.b16 %v113
  %v146 = vunpack.c.h.b16 %v113
  %v147 = vunpack.c.l.b16 %v114
  %v148 = vunpack.c.h.b16 %v114
  %v149 = vunpack.c.l.b16 %v115
  %v150 = vunpack.c.h.b16 %v115
  %v151 = vunpack.c.l.b16 %v116
  %v152 = vunpack.c.h.b16 %v116
  %v153 = vunpack.c.l.b16 %v117
  %v154 = vunpack.c.h.b16 %v117
  %v155 = vunpack.c.l.b16 %v118
  %v156 = vunpack.c.h.b16 %v118
  %v157 = vunpack.c.l.b16 %v119
  %v158 = vunpack.c.h.b16 %v119
  %v159 = vunpack.c.l.b16 %v120
  %v160 = vunpack.c.h.b16 %v120
  %v161 = vunpack.c.l.b16 %v121
  %v162 = vunpack.c.h.b16 %v121
  %v163 = vunpack.c.l.b16 %v122
  %v164 = vunpack.c.h.b16 %v122
  %v165 = vunpack.c.l.b16 %v123
  %v166 = vunpack.c.h.b16 %v123
  %v167 = vunpack.c.l.b16 %v124
  %v168 = vunpack.c.h.b16 %v124
  %v169 = vunpack.c.l.b16 %v125
  %v170 = vunpack.c.h.b16 %v125
  %v171 = vunpack.c.l.b16 %v126
  %v172 = vunpack.c.h.b16 %v126
  %v173 = vunpack.c.l.b16 %v127
  %v174 = vunpack.c.h.b16 %v127
  %v175 = vunpack.c.l.b16 %v128
  %v176 = vunpack.c.h.b16 %v128
  %v177 = vpack.c.b16 %v147, %v145
  %v178 = vpack.c.b16 %v148, %v146
  %v179 = vpack.c.b16 %v151, %v149
  %v180 = vpack.c.b16 %v152, %v150
  %v181 = vpack.c.b16 %v155, %v153
  %v182 = vpack.c.b16 %v156, %v154
  %v183 = vpack.c.b16 %v159, %v157
  %v184 = vpack.c.b16 %v160, %v158
  %v185 = vpack.c.b16 %v163, %v161
  %v186 = vpack.c.b16 %v164, %v162
  %v187 = vpack.c.b16 %v167, %v165
  %v188 = vpack.c.b16 %v168, %v166
  %v189 = vpack.c.b16 %v171, %v169
  %v190 = vpack.c.b16 %v172, %v170
  %v191 = vpack.c.b16 %v175, %v173
  %v192 = vpack.c.b16 %v176, %v174
  %209 = vmatprep.subr.bf16.mxu0 %v178
  %210 = vmatpush1.bf16.msra.mxu0 %v177
  %211 = vmatprep.subr.bf16.mxu0 %v180
  %212 = vmatpush1.bf16.msra.mxu0 %v179
  %213 = vmatprep.subr.bf16.mxu0 %v182
  %214 = vmatpush1.bf16.msra.mxu0 %v181
  %215 = vmatprep.subr.bf16.mxu0 %v184
  %216 = vmatpush1.bf16.msra.mxu0 %v183
  %217 = vmatprep.subr.bf16.mxu0 %v186
  %218 = vmatpush1.bf16.msra.mxu0 %v185
  %219 = vmatprep.subr.bf16.mxu0 %v188
  %220 = vmatpush1.bf16.msra.mxu0 %v187
  %221 = vmatprep.subr.bf16.mxu0 %v190
  %222 = vmatpush1.bf16.msra.mxu0 %v189
  %223 = vmatprep.subr.bf16.mxu0 %v192
  %224 = vmatpush1.bf16.msra.mxu0 %v191
  %225 = vmatprep.subr.bf16.mxu0 0
  %226 = vmatpush1.bf16.msra.mxu0 0
  %227 = vmatprep.subr.bf16.mxu0 0
  %228 = vmatpush1.bf16.msra.mxu0 0
  %229 = vmatprep.subr.bf16.mxu0 0
  %230 = vmatpush1.bf16.msra.mxu0 0
  %231 = vmatprep.subr.bf16.mxu0 0
  %232 = vmatpush1.bf16.msra.mxu0 0
  %233 = vmatprep.subr.bf16.mxu0 0
  %234 = vmatpush1.bf16.msra.mxu0 0
  %235 = vmatprep.subr.bf16.mxu0 0
  %236 = vmatpush1.bf16.msra.mxu0 0
  %237 = vmatprep.subr.bf16.mxu0 0
  %238 = vmatpush1.bf16.msra.mxu0 0
  %239 = vmatprep.subr.bf16.mxu0 0
  %240 = vmatpush1.bf16.msra.mxu0 0
  %241 = vmatprep.mubr.bf16.mxu0 0
  %242 = vmatmul.mubr.bf16.gmra.mrb[0].mxu0 %v98
  %v243 = vpop.f32.mrb[0].mxu0
  %v244 = vadd.f32 0.0, %v243
  %v245 = vpop.f32.mrb[0].mxu0
  %v246 = vadd.f32 0.0, %v245
  %v247 = vpop.f32.mrb[0].mxu0
  %v248 = vadd.f32 0.0, %v247
  %v249 = vpop.f32.mrb[0].mxu0
  %v250 = vadd.f32 0.0, %v249
  %251 = vmatprep.mubr.bf16.mxu0 0
  %252 = vmatmul.mubr.bf16.gmra.mrb[0].mxu0 %v99
  %v253 = vpop.f32.mrb[0].mxu0
  %v254 = vadd.f32 0.0, %v253
  %v255 = vpop.f32.mrb[0].mxu0
  %v256 = vadd.f32 0.0, %v255
  %v257 = vpop.f32.mrb[0].mxu0
  %v258 = vadd.f32 0.0, %v257
  %v259 = vpop.f32.mrb[0].mxu0
  %v260 = vadd.f32 0.0, %v259
  %261 = vmatprep.mubr.bf16.mxu0 0
  %262 = vmatmul.mubr.bf16.gmra.mrb[0].mxu0 %v100
  %v263 = vpop.f32.mrb[0].mxu0
  %v264 = vadd.f32 0.0, %v263
  %v265 = vpop.f32.mrb[0].mxu0
  %v266 = vadd.f32 0.0, %v265
  %v267 = vpop.f32.mrb[0].mxu0
  %v268 = vadd.f32 0.0, %v267
  %v269 = vpop.f32.mrb[0].mxu0
  %v270 = vadd.f32 0.0, %v269
  %271 = vmatprep.mubr.bf16.mxu0 0
  %272 = vmatmul.mubr.bf16.gmra.mrb[0].mxu0 %v101
  %v273 = vpop.f32.mrb[0].mxu0
  %v274 = vadd.f32 0.0, %v273
  %v275 = vpop.f32.mrb[0].mxu0
  %v276 = vadd.f32 0.0, %v275
  %v277 = vpop.f32.mrb[0].mxu0
  %v278 = vadd.f32 0.0, %v277
  %v279 = vpop.f32.mrb[0].mxu0
  %v280 = vadd.f32 0.0, %v279
  %281 = vmatprep.mubr.bf16.mxu0 0
  %282 = vmatmul.mubr.bf16.gmra.mrb[0].mxu0 %v102
  %v283 = vpop.f32.mrb[0].mxu0
  %v284 = vadd.f32 0.0, %v283
  %v285 = vpop.f32.mrb[0].mxu0
  %v286 = vadd.f32 0.0, %v285
  %v287 = vpop.f32.mrb[0].mxu0
  %v288 = vadd.f32 0.0, %v287
  %v289 = vpop.f32.mrb[0].mxu0
  %v290 = vadd.f32 0.0, %v289
  %291 = vmatprep.mubr.bf16.mxu0 0
  %292 = vmatmul.mubr.bf16.gmra.mrb[0].mxu0 %v103
  %v293 = vpop.f32.mrb[0].mxu0
  %v294 = vadd.f32 0.0, %v293
  %v295 = vpop.f32.mrb[0].mxu0
  %v296 = vadd.f32 0.0, %v295
  %v297 = vpop.f32.mrb[0].mxu0
  %v298 = vadd.f32 0.0, %v297
  %v299 = vpop.f32.mrb[0].mxu0
  %v300 = vadd.f32 0.0, %v299
  %301 = vmatprep.mubr.bf16.mxu0 0
  %302 = vmatmul.mubr.bf16.gmra.mrb[0].mxu0 %v104
  %v303 = vpop.f32.mrb[0].mxu0
  %v304 = vadd.f32 0.0, %v303
  %v305 = vpop.f32.mrb[0].mxu0
  %v306 = vadd.f32 0.0, %v305
  %v307 = vpop.f32.mrb[0].mxu0
  %v308 = vadd.f32 0.0, %v307
  %v309 = vpop.f32.mrb[0].mxu0
  %v310 = vadd.f32 0.0, %v309
  %311 = vmatprep.mubr.bf16.mxu0 0
  %312 = vmatmul.mubr.bf16.gmra.mrb[0].mxu0 %v105
  %v313 = vpop.f32.mrb[0].mxu0
  %v314 = vadd.f32 0.0, %v313
  %v315 = vpop.f32.mrb[0].mxu0
  %v316 = vadd.f32 0.0, %v315
  %v317 = vpop.f32.mrb[0].mxu0
  %v318 = vadd.f32 0.0, %v317
  %v319 = vpop.f32.mrb[0].mxu0
  %v320 = vadd.f32 0.0, %v319
  %321 = vmatprep.mubr.bf16.mxu0 0
  %322 = vmatmul.mubr.bf16.gmra.mrb[0].mxu0 %v106
  %v323 = vpop.f32.mrb[0].mxu0
  %v324 = vadd.f32 0.0, %v323
  %v325 = vpop.f32.mrb[0].mxu0
  %v326 = vadd.f32 0.0, %v325
  %v327 = vpop.f32.mrb[0].mxu0
  %v328 = vadd.f32 0.0, %v327
  %v329 = vpop.f32.mrb[0].mxu0
  %v330 = vadd.f32 0.0, %v329
  %331 = vmatprep.mubr.bf16.mxu0 0
  %332 = vmatmul.mubr.bf16.gmra.mrb[0].mxu0 %v107
  %v333 = vpop.f32.mrb[0].mxu0
  %v334 = vadd.f32 0.0, %v333
  %v335 = vpop.f32.mrb[0].mxu0
  %v336 = vadd.f32 0.0, %v335
  %v337 = vpop.f32.mrb[0].mxu0
  %v338 = vadd.f32 0.0, %v337
  %v339 = vpop.f32.mrb[0].mxu0
  %v340 = vadd.f32 0.0, %v339
  %341 = vmatprep.mubr.bf16.mxu0 0
  %342 = vmatmul.mubr.bf16.gmra.mrb[0].mxu0 %v108
  %v343 = vpop.f32.mrb[0].mxu0
  %v344 = vadd.f32 0.0, %v343
  %v345 = vpop.f32.mrb[0].mxu0
  %v346 = vadd.f32 0.0, %v345
  %v347 = vpop.f32.mrb[0].mxu0
  %v348 = vadd.f32 0.0, %v347
  %v349 = vpop.f32.mrb[0].mxu0
  %v350 = vadd.f32 0.0, %v349
  %351 = vmatprep.mubr.bf16.mxu0 0
  %352 = vmatmul.mubr.bf16.gmra.mrb[0].mxu0 %v109
  %v353 = vpop.f32.mrb[0].mxu0
  %v354 = vadd.f32 0.0, %v353
  %v355 = vpop.f32.mrb[0].mxu0
  %v356 = vadd.f32 0.0, %v355
  %v357 = vpop.f32.mrb[0].mxu0
  %v358 = vadd.f32 0.0, %v357
  %v359 = vpop.f32.mrb[0].mxu0
  %v360 = vadd.f32 0.0, %v359
  %361 = vmatprep.mubr.bf16.mxu0 0
  %362 = vmatmul.mubr.bf16.gmra.mrb[0].mxu0 %v110
  %v363 = vpop.f32.mrb[0].mxu0
  %v364 = vadd.f32 0.0, %v363
  %v365 = vpop.f32.mrb[0].mxu0
  %v366 = vadd.f32 0.0, %v365
  %v367 = vpop.f32.mrb[0].mxu0
  %v368 = vadd.f32 0.0, %v367
  %v369 = vpop.f32.mrb[0].mxu0
  %v370 = vadd.f32 0.0, %v369
  %371 = vmatprep.mubr.bf16.mxu0 0
  %372 = vmatmul.mubr.bf16.gmra.mrb[0].mxu0 %v111
  %v373 = vpop.f32.mrb[0].mxu0
  %v374 = vadd.f32 0.0, %v373
  %v375 = vpop.f32.mrb[0].mxu0
  %v376 = vadd.f32 0.0, %v375
  %v377 = vpop.f32.mrb[0].mxu0
  %v378 = vadd.f32 0.0, %v377
  %v379 = vpop.f32.mrb[0].mxu0
  %v380 = vadd.f32 0.0, %v379
  %381 = vdwg.mxu0
  %v398 = vunpack.c.l.b16 %v81
  %v399 = vunpack.c.h.b16 %v81
  %v400 = vunpack.c.l.b16 %v82
  %v401 = vunpack.c.h.b16 %v82
  %v402 = vunpack.c.l.b16 %v83
  %v403 = vunpack.c.h.b16 %v83
  %v404 = vunpack.c.l.b16 %v84
  %v405 = vunpack.c.h.b16 %v84
  %v406 = vunpack.c.l.b16 %v85
  %v407 = vunpack.c.h.b16 %v85
  %v408 = vunpack.c.l.b16 %v86
  %v409 = vunpack.c.h.b16 %v86
  %v410 = vunpack.c.l.b16 %v87
  %v411 = vunpack.c.h.b16 %v87
  %v412 = vunpack.c.l.b16 %v88
  %v413 = vunpack.c.h.b16 %v88
  %v414 = vunpack.c.l.b16 %v89
  %v415 = vunpack.c.h.b16 %v89
  %v416 = vunpack.c.l.b16 %v90
  %v417 = vunpack.c.h.b16 %v90
  %v418 = vunpack.c.l.b16 %v91
  %v419 = vunpack.c.h.b16 %v91
  %v420 = vunpack.c.l.b16 %v92
  %v421 = vunpack.c.h.b16 %v92
  %v422 = vunpack.c.l.b16 %v93
  %v423 = vunpack.c.h.b16 %v93
  %v424 = vunpack.c.l.b16 %v94
  %v425 = vunpack.c.h.b16 %v94
  %v426 = vunpack.c.l.b16 %v95
  %v427 = vunpack.c.h.b16 %v95
  %v428 = vunpack.c.l.b16 %v96
  %v429 = vunpack.c.h.b16 %v96
  %v430 = vpack.c.b16 %v400, %v398
  %v431 = vpack.c.b16 %v401, %v399
  %v432 = vpack.c.b16 %v404, %v402
  %v433 = vpack.c.b16 %v405, %v403
  %v434 = vpack.c.b16 %v408, %v406
  %v435 = vpack.c.b16 %v409, %v407
  %v436 = vpack.c.b16 %v412, %v410
  %v437 = vpack.c.b16 %v413, %v411
  %v438 = vpack.c.b16 %v416, %v414
  %v439 = vpack.c.b16 %v417, %v415
  %v440 = vpack.c.b16 %v420, %v418
  %v441 = vpack.c.b16 %v421, %v419
  %v442 = vpack.c.b16 %v424, %v422
  %v443 = vpack.c.b16 %v425, %v423
  %v444 = vpack.c.b16 %v428, %v426
  %v445 = vpack.c.b16 %v429, %v427
  %462 = vmatprep.subr.bf16.mxu0 %v431
  %463 = vmatpush1.bf16.msra.mxu0 %v430
  %464 = vmatprep.subr.bf16.mxu0 %v433
  %465 = vmatpush1.bf16.msra.mxu0 %v432
  %466 = vmatprep.subr.bf16.mxu0 %v435
  %467 = vmatpush1.bf16.msra.mxu0 %v434
  %468 = vmatprep.subr.bf16.mxu0 %v437
  %469 = vmatpush1.bf16.msra.mxu0 %v436
  %470 = vmatprep.subr.bf16.mxu0 %v439
  %471 = vmatpush1.bf16.msra.mxu0 %v438
  %472 = vmatprep.subr.bf16.mxu0 %v441
  %473 = vmatpush1.bf16.msra.mxu0 %v440
  %474 = vmatprep.subr.bf16.mxu0 %v443
  %475 = vmatpush1.bf16.msra.mxu0 %v442
  %476 = vmatprep.subr.bf16.mxu0 %v445
  %477 = vmatpush1.bf16.msra.mxu0 %v444
  %478 = vmatprep.subr.bf16.mxu0 0
  %479 = vmatpush1.bf16.msra.mxu0 0
  %480 = vmatprep.subr.bf16.mxu0 0
  %481 = vmatpush1.bf16.msra.mxu0 0
  %482 = vmatprep.subr.bf16.mxu0 0
  %483 = vmatpush1.bf16.msra.mxu0 0
  %484 = vmatprep.subr.bf16.mxu0 0
  %485 = vmatpush1.bf16.msra.mxu0 0
  %486 = vmatprep.subr.bf16.mxu0 0
  %487 = vmatpush1.bf16.msra.mxu0 0
  %488 = vmatprep.subr.bf16.mxu0 0
  %489 = vmatpush1.bf16.msra.mxu0 0
  %490 = vmatprep.subr.bf16.mxu0 0
  %491 = vmatpush1.bf16.msra.mxu0 0
  %492 = vmatprep.subr.bf16.mxu0 0
  %493 = vmatpush1.bf16.msra.mxu0 0
  %494 = vmatprep.mubr.bf16.mxu0 0
  %495 = vmatmul.mubr.bf16.gmra.mrb[0].mxu0 %v67
  %v496 = vpop.f32.mrb[0].mxu0
  %v497 = vadd.f32 %v244, %v496
  %v498 = vpop.f32.mrb[0].mxu0
  %v499 = vadd.f32 %v246, %v498
  %v500 = vpop.f32.mrb[0].mxu0
  %v501 = vadd.f32 %v248, %v500
  %v502 = vpop.f32.mrb[0].mxu0
  %v503 = vadd.f32 %v250, %v502
  %504 = vmatprep.mubr.bf16.mxu0 0
  %505 = vmatmul.mubr.bf16.gmra.mrb[0].mxu0 %v68
  %v506 = vpop.f32.mrb[0].mxu0
  %v507 = vadd.f32 %v254, %v506
  %v508 = vpop.f32.mrb[0].mxu0
  %v509 = vadd.f32 %v256, %v508
  %v510 = vpop.f32.mrb[0].mxu0
  %v511 = vadd.f32 %v258, %v510
  %v512 = vpop.f32.mrb[0].mxu0
  %v513 = vadd.f32 %v260, %v512
  %514 = vmatprep.mubr.bf16.mxu0 0
  %515 = vmatmul.mubr.bf16.gmra.mrb[0].mxu0 %v69
  %v516 = vpop.f32.mrb[0].mxu0
  %v517 = vadd.f32 %v264, %v516
  %v518 = vpop.f32.mrb[0].mxu0
  %v519 = vadd.f32 %v266, %v518
  %v520 = vpop.f32.mrb[0].mxu0
  %v521 = vadd.f32 %v268, %v520
  %v522 = vpop.f32.mrb[0].mxu0
  %v523 = vadd.f32 %v270, %v522
  %524 = vmatprep.mubr.bf16.mxu0 0
  %525 = vmatmul.mubr.bf16.gmra.mrb[0].mxu0 %v70
  %v526 = vpop.f32.mrb[0].mxu0
  %v527 = vadd.f32 %v274, %v526
  %v528 = vpop.f32.mrb[0].mxu0
  %v529 = vadd.f32 %v276, %v528
  %v530 = vpop.f32.mrb[0].mxu0
  %v531 = vadd.f32 %v278, %v530
  %v532 = vpop.f32.mrb[0].mxu0
  %v533 = vadd.f32 %v280, %v532
  %534 = vmatprep.mubr.bf16.mxu0 0
  %535 = vmatmul.mubr.bf16.gmra.mrb[0].mxu0 %v71
  %v536 = vpop.f32.mrb[0].mxu0
  %v537 = vadd.f32 %v284, %v536
  %v538 = vpop.f32.mrb[0].mxu0
  %v539 = vadd.f32 %v286, %v538
  %v540 = vpop.f32.mrb[0].mxu0
  %v541 = vadd.f32 %v288, %v540
  %v542 = vpop.f32.mrb[0].mxu0
  %v543 = vadd.f32 %v290, %v542
  %544 = vmatprep.mubr.bf16.mxu0 0
  %545 = vmatmul.mubr.bf16.gmra.mrb[0].mxu0 %v72
  %v546 = vpop.f32.mrb[0].mxu0
  %v547 = vadd.f32 %v294, %v546
  %v548 = vpop.f32.mrb[0].mxu0
  %v549 = vadd.f32 %v296, %v548
  %v550 = vpop.f32.mrb[0].mxu0
  %v551 = vadd.f32 %v298, %v550
  %v552 = vpop.f32.mrb[0].mxu0
  %v553 = vadd.f32 %v300, %v552
  %554 = vmatprep.mubr.bf16.mxu0 0
  %555 = vmatmul.mubr.bf16.gmra.mrb[0].mxu0 %v73
  %v556 = vpop.f32.mrb[0].mxu0
  %v557 = vadd.f32 %v304, %v556
  %v558 = vpop.f32.mrb[0].mxu0
  %v559 = vadd.f32 %v306, %v558
  %v560 = vpop.f32.mrb[0].mxu0
  %v561 = vadd.f32 %v308, %v560
  %v562 = vpop.f32.mrb[0].mxu0
  %v563 = vadd.f32 %v310, %v562
  %564 = vmatprep.mubr.bf16.mxu0 0
  %565 = vmatmul.mubr.bf16.gmra.mrb[0].mxu0 %v74
  %v566 = vpop.f32.mrb[0].mxu0
  %v567 = vadd.f32 %v314, %v566
  %v568 = vpop.f32.mrb[0].mxu0
  %v569 = vadd.f32 %v316, %v568
  %v570 = vpop.f32.mrb[0].mxu0
  %v571 = vadd.f32 %v318, %v570
  %v572 = vpop.f32.mrb[0].mxu0
  %v573 = vadd.f32 %v320, %v572
  %574 = vmatprep.mubr.bf16.mxu0 0
  %575 = vmatmul.mubr.bf16.gmra.mrb[0].mxu0 %v75
  %v576 = vpop.f32.mrb[0].mxu0
  %v577 = vadd.f32 %v324, %v576
  %v578 = vpop.f32.mrb[0].mxu0
  %v579 = vadd.f32 %v326, %v578
  %v580 = vpop.f32.mrb[0].mxu0
  %v581 = vadd.f32 %v328, %v580
  %v582 = vpop.f32.mrb[0].mxu0
  %v583 = vadd.f32 %v330, %v582
  %584 = vmatprep.mubr.bf16.mxu0 0
  %585 = vmatmul.mubr.bf16.gmra.mrb[0].mxu0 %v76
  %v586 = vpop.f32.mrb[0].mxu0
  %v587 = vadd.f32 %v334, %v586
  %v588 = vpop.f32.mrb[0].mxu0
  %v589 = vadd.f32 %v336, %v588
  %v590 = vpop.f32.mrb[0].mxu0
  %v591 = vadd.f32 %v338, %v590
  %v592 = vpop.f32.mrb[0].mxu0
  %v593 = vadd.f32 %v340, %v592
  %594 = vmatprep.mubr.bf16.mxu0 0
  %595 = vmatmul.mubr.bf16.gmra.mrb[0].mxu0 %v77
  %v596 = vpop.f32.mrb[0].mxu0
  %v597 = vadd.f32 %v344, %v596
  %v598 = vpop.f32.mrb[0].mxu0
  %v599 = vadd.f32 %v346, %v598
  %v600 = vpop.f32.mrb[0].mxu0
  %v601 = vadd.f32 %v348, %v600
  %v602 = vpop.f32.mrb[0].mxu0
  %v603 = vadd.f32 %v350, %v602
  %604 = vmatprep.mubr.bf16.mxu0 0
  %605 = vmatmul.mubr.bf16.gmra.mrb[0].mxu0 %v78
  %v606 = vpop.f32.mrb[0].mxu0
  %v607 = vadd.f32 %v354, %v606
  %v608 = vpop.f32.mrb[0].mxu0
  %v609 = vadd.f32 %v356, %v608
  %v610 = vpop.f32.mrb[0].mxu0
  %v611 = vadd.f32 %v358, %v610
  %v612 = vpop.f32.mrb[0].mxu0
  %v613 = vadd.f32 %v360, %v612
  %614 = vmatprep.mubr.bf16.mxu0 0
  %615 = vmatmul.mubr.bf16.gmra.mrb[0].mxu0 %v79
  %v616 = vpop.f32.mrb[0].mxu0
  %v617 = vadd.f32 %v364, %v616
  %v618 = vpop.f32.mrb[0].mxu0
  %v619 = vadd.f32 %v366, %v618
  %v620 = vpop.f32.mrb[0].mxu0
  %v621 = vadd.f32 %v368, %v620
  %v622 = vpop.f32.mrb[0].mxu0
  %v623 = vadd.f32 %v370, %v622
  %624 = vmatprep.mubr.bf16.mxu0 0
  %625 = vmatmul.mubr.bf16.gmra.mrb[0].mxu0 %v80
  %v626 = vpop.f32.mrb[0].mxu0
  %v627 = vadd.f32 %v374, %v626
  %v628 = vpop.f32.mrb[0].mxu0
  %v629 = vadd.f32 %v376, %v628
  %v630 = vpop.f32.mrb[0].mxu0
  %v631 = vadd.f32 %v378, %v630
  %v632 = vpop.f32.mrb[0].mxu0
  %v633 = vadd.f32 %v380, %v632
  %634 = vdwg.mxu0
  %v635 = vld [vmem:[%s0 + $0x10] sm:$0xff]
  %v636 = vld [vmem:[%s0 + $0x18] sm:$0xff]
  %v637 = vld [vmem:[%s0 + $0x20] sm:$0xff]
  %v638 = vld [vmem:[%s0 + $0x28] sm:$0xff]
  %v639 = vld [vmem:[%s0 + $0x30] sm:$0xff]
  %v640 = vld [vmem:[%s0 + $0x38] sm:$0xff]
  %v641 = vld [vmem:[%s0 + $0x40] sm:$0xff]
  %v642 = vld [vmem:[%s0 + $0x48] sm:$0xff]
  %v643 = vld [vmem:[%s0 + $0x50] sm:$0xff]
  %v644 = vld [vmem:[%s0 + $0x58] sm:$0xff]
  %v645 = vld [vmem:[%s0 + $0x60] sm:$0xff]
  %v646 = vld [vmem:[%s0 + $0x68] sm:$0xff]
  %v647 = vld [vmem:[%s0 + $0x70] sm:$0xff]
  %v648 = vld [vmem:[%s0 + $0x78] sm:$0xff]
  %v649 = vld [vmem:[%s0 + $0x80] sm:$0xff]
  %v650 = vld [vmem:[%s0 + $0x88] sm:$0xff]
  %v651 = vld [vmem:[%s0 + $0x90] sm:$0xff]
  %v652 = vld [vmem:[%s0 + $0x98] sm:$0xff]
  %v653 = vld [vmem:[%s0 + $0xa0] sm:$0xff]
  %v654 = vld [vmem:[%s0 + $0xa8] sm:$0xff]
  %v655 = vld [vmem:[%s0 + $0xb0] sm:$0xff]
  %v656 = vld [vmem:[%s0 + $0xb8] sm:$0xff]
  %v657 = vld [vmem:[%s0 + $0xc0] sm:$0xff]
  %v658 = vld [vmem:[%s0 + $0xc8] sm:$0xff]
  %v659 = vld [vmem:[%s0 + $0xd0] sm:$0xff]
  %v660 = vld [vmem:[%s0 + $0xd8] sm:$0xff]
  %v661 = vld [vmem:[%s0 + $0xe0] sm:$0xff]
  %v662 = vld [vmem:[%s0 + $0xe8] sm:$0xff]
  %v663 = vpack.c.bf16 %v636, %v635
  %v664 = vpack.c.bf16 %v638, %v637
  %v665 = vpack.c.bf16 %v640, %v639
  %v666 = vpack.c.bf16 %v642, %v641
  %v667 = vpack.c.bf16 %v644, %v643
  %v668 = vpack.c.bf16 %v646, %v645
  %v669 = vpack.c.bf16 %v648, %v647
  %v670 = vpack.c.bf16 %v650, %v649
  %v671 = vpack.c.bf16 %v652, %v651
  %v672 = vpack.c.bf16 %v654, %v653
  %v673 = vpack.c.bf16 %v656, %v655
  %v674 = vpack.c.bf16 %v658, %v657
  %v675 = vpack.c.bf16 %v660, %v659
  %v676 = vpack.c.bf16 %v662, %v661
  %s677 = scalar_lea.vmem %s1, 256
  %v678 = vld [vmem:[%s677] sm:$0xff]
  %v679 = vld [vmem:[%s677 + $0x8] sm:$0xff]
  %v680 = vld [vmem:[%s677 + $0x10] sm:$0xff]
  %v681 = vld [vmem:[%s677 + $0x18] sm:$0xff]
  %v682 = vld [vmem:[%s677 + $0x20] sm:$0xff]
  %v683 = vld [vmem:[%s677 + $0x28] sm:$0xff]
  %v684 = vld [vmem:[%s677 + $0x30] sm:$0xff]
  %v685 = vld [vmem:[%s677 + $0x38] sm:$0xff]
  %v686 = vld [vmem:[%s677 + $0x40] sm:$0xff]
  %v687 = vld [vmem:[%s677 + $0x48] sm:$0xff]
  %v688 = vld [vmem:[%s677 + $0x50] sm:$0xff]
  %v689 = vld [vmem:[%s677 + $0x58] sm:$0xff]
  %v690 = vld [vmem:[%s677 + $0x60] sm:$0xff]
  %v691 = vld [vmem:[%s677 + $0x68] sm:$0xff]
  %v692 = vld [vmem:[%s677 + $0x70] sm:$0xff]
  %v693 = vld [vmem:[%s677 + $0x78] sm:$0xff]
  %v710 = vunpack.c.l.b16 %v678
  %v711 = vunpack.c.h.b16 %v678
  %v712 = vunpack.c.l.b16 %v679
  %v713 = vunpack.c.h.b16 %v679
  %v714 = vunpack.c.l.b16 %v680
  %v715 = vunpack.c.h.b16 %v680
  %v716 = vunpack.c.l.b16 %v681
  %v717 = vunpack.c.h.b16 %v681
  %v718 = vunpack.c.l.b16 %v682
  %v719 = vunpack.c.h.b16 %v682
  %v720 = vunpack.c.l.b16 %v683
  %v721 = vunpack.c.h.b16 %v683
  %v722 = vunpack.c.l.b16 %v684
  %v723 = vunpack.c.h.b16 %v684
  %v724 = vunpack.c.l.b16 %v685
  %v725 = vunpack.c.h.b16 %v685
  %v726 = vunpack.c.l.b16 %v686
  %v727 = vunpack.c.h.b16 %v686
  %v728 = vunpack.c.l.b16 %v687
  %v729 = vunpack.c.h.b16 %v687
  %v730 = vunpack.c.l.b16 %v688
  %v731 = vunpack.c.h.b16 %v688
  %v732 = vunpack.c.l.b16 %v689
  %v733 = vunpack.c.h.b16 %v689
  %v734 = vunpack.c.l.b16 %v690
  %v735 = vunpack.c.h.b16 %v690
  %v736 = vunpack.c.l.b16 %v691
  %v737 = vunpack.c.h.b16 %v691
  %v738 = vunpack.c.l.b16 %v692
  %v739 = vunpack.c.h.b16 %v692
  %v740 = vunpack.c.l.b16 %v693
  %v741 = vunpack.c.h.b16 %v693
  %v742 = vpack.c.b16 %v712, %v710
  %v743 = vpack.c.b16 %v713, %v711
  %v744 = vpack.c.b16 %v716, %v714
  %v745 = vpack.c.b16 %v717, %v715
  %v746 = vpack.c.b16 %v720, %v718
  %v747 = vpack.c.b16 %v721, %v719
  %v748 = vpack.c.b16 %v724, %v722
  %v749 = vpack.c.b16 %v725, %v723
  %v750 = vpack.c.b16 %v728, %v726
  %v751 = vpack.c.b16 %v729, %v727
  %v752 = vpack.c.b16 %v732, %v730
  %v753 = vpack.c.b16 %v733, %v731
  %v754 = vpack.c.b16 %v736, %v734
  %v755 = vpack.c.b16 %v737, %v735
  %v756 = vpack.c.b16 %v740, %v738
  %v757 = vpack.c.b16 %v741, %v739
  %774 = vmatprep.subr.bf16.mxu0 %v743
  %775 = vmatpush1.bf16.msra.mxu0 %v742
  %776 = vmatprep.subr.bf16.mxu0 %v745
  %777 = vmatpush1.bf16.msra.mxu0 %v744
  %778 = vmatprep.subr.bf16.mxu0 %v747
  %779 = vmatpush1.bf16.msra.mxu0 %v746
  %780 = vmatprep.subr.bf16.mxu0 %v749
  %781 = vmatpush1.bf16.msra.mxu0 %v748
  %782 = vmatprep.subr.bf16.mxu0 %v751
  %783 = vmatpush1.bf16.msra.mxu0 %v750
  %784 = vmatprep.subr.bf16.mxu0 %v753
  %785 = vmatpush1.bf16.msra.mxu0 %v752
  %786 = vmatprep.subr.bf16.mxu0 %v755
  %787 = vmatpush1.bf16.msra.mxu0 %v754
  %788 = vmatprep.subr.bf16.mxu0 %v757
  %789 = vmatpush1.bf16.msra.mxu0 %v756
  %790 = vmatprep.subr.bf16.mxu0 0
  %791 = vmatpush1.bf16.msra.mxu0 0
  %792 = vmatprep.subr.bf16.mxu0 0
  %793 = vmatpush1.bf16.msra.mxu0 0
  %794 = vmatprep.subr.bf16.mxu0 0
  %795 = vmatpush1.bf16.msra.mxu0 0
  %796 = vmatprep.subr.bf16.mxu0 0
  %797 = vmatpush1.bf16.msra.mxu0 0
  %798 = vmatprep.subr.bf16.mxu0 0
  %799 = vmatpush1.bf16.msra.mxu0 0
  %800 = vmatprep.subr.bf16.mxu0 0
  %801 = vmatpush1.bf16.msra.mxu0 0
  %802 = vmatprep.subr.bf16.mxu0 0
  %803 = vmatpush1.bf16.msra.mxu0 0
  %804 = vmatprep.subr.bf16.mxu0 0
  %805 = vmatpush1.bf16.msra.mxu0 0
  %806 = vmatprep.mubr.bf16.mxu0 0
  %807 = vmatmul.mubr.bf16.gmra.mrb[0].mxu0 %v663
  %v808 = vpop.f32.mrb[0].mxu0
  %v809 = vadd.f32 0.0, %v808
  %v810 = vpop.f32.mrb[0].mxu0
  %v811 = vadd.f32 0.0, %v810
  %v812 = vpop.f32.mrb[0].mxu0
  %v813 = vadd.f32 0.0, %v812
  %v814 = vpop.f32.mrb[0].mxu0
  %v815 = vadd.f32 0.0, %v814
  %816 = vmatprep.mubr.bf16.mxu0 0
  %817 = vmatmul.mubr.bf16.gmra.mrb[0].mxu0 %v664
  %v818 = vpop.f32.mrb[0].mxu0
  %v819 = vadd.f32 0.0, %v818
  %v820 = vpop.f32.mrb[0].mxu0
  %v821 = vadd.f32 0.0, %v820
  %v822 = vpop.f32.mrb[0].mxu0
  %v823 = vadd.f32 0.0, %v822
  %v824 = vpop.f32.mrb[0].mxu0
  %v825 = vadd.f32 0.0, %v824
  %826 = vmatprep.mubr.bf16.mxu0 0
  %827 = vmatmul.mubr.bf16.gmra.mrb[0].mxu0 %v665
  %v828 = vpop.f32.mrb[0].mxu0
  %v829 = vadd.f32 0.0, %v828
  %v830 = vpop.f32.mrb[0].mxu0
  %v831 = vadd.f32 0.0, %v830
  %v832 = vpop.f32.mrb[0].mxu0
  %v833 = vadd.f32 0.0, %v832
  %v834 = vpop.f32.mrb[0].mxu0
  %v835 = vadd.f32 0.0, %v834
  %836 = vmatprep.mubr.bf16.mxu0 0
  %837 = vmatmul.mubr.bf16.gmra.mrb[0].mxu0 %v666
  %v838 = vpop.f32.mrb[0].mxu0
  %v839 = vadd.f32 0.0, %v838
  %v840 = vpop.f32.mrb[0].mxu0
  %v841 = vadd.f32 0.0, %v840
  %v842 = vpop.f32.mrb[0].mxu0
  %v843 = vadd.f32 0.0, %v842
  %v844 = vpop.f32.mrb[0].mxu0
  %v845 = vadd.f32 0.0, %v844
  %846 = vmatprep.mubr.bf16.mxu0 0
  %847 = vmatmul.mubr.bf16.gmra.mrb[0].mxu0 %v667
  %v848 = vpop.f32.mrb[0].mxu0
  %v849 = vadd.f32 0.0, %v848
  %v850 = vpop.f32.mrb[0].mxu0
  %v851 = vadd.f32 0.0, %v850
  %v852 = vpop.f32.mrb[0].mxu0
  %v853 = vadd.f32 0.0, %v852
  %v854 = vpop.f32.mrb[0].mxu0
  %v855 = vadd.f32 0.0, %v854
  %856 = vmatprep.mubr.bf16.mxu0 0
  %857 = vmatmul.mubr.bf16.gmra.mrb[0].mxu0 %v668
  %v858 = vpop.f32.mrb[0].mxu0
  %v859 = vadd.f32 0.0, %v858
  %v860 = vpop.f32.mrb[0].mxu0
  %v861 = vadd.f32 0.0, %v860
  %v862 = vpop.f32.mrb[0].mxu0
  %v863 = vadd.f32 0.0, %v862
  %v864 = vpop.f32.mrb[0].mxu0
  %v865 = vadd.f32 0.0, %v864
  %866 = vmatprep.mubr.bf16.mxu0 0
  %867 = vmatmul.mubr.bf16.gmra.mrb[0].mxu0 %v669
  %v868 = vpop.f32.mrb[0].mxu0
  %v869 = vadd.f32 0.0, %v868
  %v870 = vpop.f32.mrb[0].mxu0
  %v871 = vadd.f32 0.0, %v870
  %v872 = vpop.f32.mrb[0].mxu0
  %v873 = vadd.f32 0.0, %v872
  %v874 = vpop.f32.mrb[0].mxu0
  %v875 = vadd.f32 0.0, %v874
  %876 = vmatprep.mubr.bf16.mxu0 0
  %877 = vmatmul.mubr.bf16.gmra.mrb[0].mxu0 %v670
  %v878 = vpop.f32.mrb[0].mxu0
  %v879 = vadd.f32 0.0, %v878
  %v880 = vpop.f32.mrb[0].mxu0
  %v881 = vadd.f32 0.0, %v880
  %v882 = vpop.f32.mrb[0].mxu0
  %v883 = vadd.f32 0.0, %v882
  %v884 = vpop.f32.mrb[0].mxu0
  %v885 = vadd.f32 0.0, %v884
  %886 = vmatprep.mubr.bf16.mxu0 0
  %887 = vmatmul.mubr.bf16.gmra.mrb[0].mxu0 %v671
  %v888 = vpop.f32.mrb[0].mxu0
  %v889 = vadd.f32 0.0, %v888
  %v890 = vpop.f32.mrb[0].mxu0
  %v891 = vadd.f32 0.0, %v890
  %v892 = vpop.f32.mrb[0].mxu0
  %v893 = vadd.f32 0.0, %v892
  %v894 = vpop.f32.mrb[0].mxu0
  %v895 = vadd.f32 0.0, %v894
  %896 = vmatprep.mubr.bf16.mxu0 0
  %897 = vmatmul.mubr.bf16.gmra.mrb[0].mxu0 %v672
  %v898 = vpop.f32.mrb[0].mxu0
  %v899 = vadd.f32 0.0, %v898
  %v900 = vpop.f32.mrb[0].mxu0
  %v901 = vadd.f32 0.0, %v900
  %v902 = vpop.f32.mrb[0].mxu0
  %v903 = vadd.f32 0.0, %v902
  %v904 = vpop.f32.mrb[0].mxu0
  %v905 = vadd.f32 0.0, %v904
  %906 = vmatprep.mubr.bf16.mxu0 0
  %907 = vmatmul.mubr.bf16.gmra.mrb[0].mxu0 %v673
  %v908 = vpop.f32.mrb[0].mxu0
  %v909 = vadd.f32 0.0, %v908
  %v910 = vpop.f32.mrb[0].mxu0
  %v911 = vadd.f32 0.0, %v910
  %v912 = vpop.f32.mrb[0].mxu0
  %v913 = vadd.f32 0.0, %v912
  %v914 = vpop.f32.mrb[0].mxu0
  %v915 = vadd.f32 0.0, %v914
  %916 = vmatprep.mubr.bf16.mxu0 0
  %917 = vmatmul.mubr.bf16.gmra.mrb[0].mxu0 %v674
  %v918 = vpop.f32.mrb[0].mxu0
  %v919 = vadd.f32 0.0, %v918
  %v920 = vpop.f32.mrb[0].mxu0
  %v921 = vadd.f32 0.0, %v920
  %v922 = vpop.f32.mrb[0].mxu0
  %v923 = vadd.f32 0.0, %v922
  %v924 = vpop.f32.mrb[0].mxu0
  %v925 = vadd.f32 0.0, %v924
  %926 = vmatprep.mubr.bf16.mxu0 0
  %927 = vmatmul.mubr.bf16.gmra.mrb[0].mxu0 %v675
  %v928 = vpop.f32.mrb[0].mxu0
  %v929 = vadd.f32 0.0, %v928
  %v930 = vpop.f32.mrb[0].mxu0
  %v931 = vadd.f32 0.0, %v930
  %v932 = vpop.f32.mrb[0].mxu0
  %v933 = vadd.f32 0.0, %v932
  %v934 = vpop.f32.mrb[0].mxu0
  %v935 = vadd.f32 0.0, %v934
  %936 = vmatprep.mubr.bf16.mxu0 0
  %937 = vmatmul.mubr.bf16.gmra.mrb[0].mxu0 %v676
  %v938 = vpop.f32.mrb[0].mxu0
  %v939 = vadd.f32 0.0, %v938
  %v940 = vpop.f32.mrb[0].mxu0
  %v941 = vadd.f32 0.0, %v940
  %v942 = vpop.f32.mrb[0].mxu0
  %v943 = vadd.f32 0.0, %v942
  %v944 = vpop.f32.mrb[0].mxu0
  %v945 = vadd.f32 0.0, %v944
  %946 = vdwg.mxu0
  %v947 = vadd.f32 %v497, %v809
  %v948 = vadd.f32 %v499, %v811
  %v949 = vadd.f32 %v501, %v813
  %v950 = vadd.f32 %v503, %v815
  %v951 = vadd.f32 %v507, %v819
  %v952 = vadd.f32 %v509, %v821
  %v953 = vadd.f32 %v511, %v823
  %v954 = vadd.f32 %v513, %v825
  %v955 = vadd.f32 %v517, %v829
  %v956 = vadd.f32 %v519, %v831
  %v957 = vadd.f32 %v521, %v833
  %v958 = vadd.f32 %v523, %v835
  %v959 = vadd.f32 %v527, %v839
  %v960 = vadd.f32 %v529, %v841
  %v961 = vadd.f32 %v531, %v843
  %v962 = vadd.f32 %v533, %v845
  %v963 = vadd.f32 %v537, %v849
  %v964 = vadd.f32 %v539, %v851
  %v965 = vadd.f32 %v541, %v853
  %v966 = vadd.f32 %v543, %v855
  %v967 = vadd.f32 %v547, %v859
  %v968 = vadd.f32 %v549, %v861
  %v969 = vadd.f32 %v551, %v863
  %v970 = vadd.f32 %v553, %v865
  %v971 = vadd.f32 %v557, %v869
  %v972 = vadd.f32 %v559, %v871
  %v973 = vadd.f32 %v561, %v873
  %v974 = vadd.f32 %v563, %v875
  %v975 = vadd.f32 %v567, %v879
  %v976 = vadd.f32 %v569, %v881
  %v977 = vadd.f32 %v571, %v883
  %v978 = vadd.f32 %v573, %v885
  %v979 = vadd.f32 %v577, %v889
  %v980 = vadd.f32 %v579, %v891
  %v981 = vadd.f32 %v581, %v893
  %v982 = vadd.f32 %v583, %v895
  %v983 = vadd.f32 %v587, %v899
  %v984 = vadd.f32 %v589, %v901
  %v985 = vadd.f32 %v591, %v903
  %v986 = vadd.f32 %v593, %v905
  %v987 = vadd.f32 %v597, %v909
  %v988 = vadd.f32 %v599, %v911
  %v989 = vadd.f32 %v601, %v913
  %v990 = vadd.f32 %v603, %v915
  %v991 = vadd.f32 %v607, %v919
  %v992 = vadd.f32 %v609, %v921
  %v993 = vadd.f32 %v611, %v923
  %v994 = vadd.f32 %v613, %v925
  %v995 = vadd.f32 %v617, %v929
  %v996 = vadd.f32 %v619, %v931
  %v997 = vadd.f32 %v621, %v933
  %v998 = vadd.f32 %v623, %v935
  %v999 = vadd.f32 %v627, %v939
  %v1000 = vadd.f32 %v629, %v941
  %v1001 = vadd.f32 %v631, %v943
  %v1002 = vadd.f32 %v633, %v945
  %v1003 = vld [vmem:[%s0 + $0x18] sm:$0xff]
  %v1004 = vld [vmem:[%s0 + $0x20] sm:$0xff]
  %v1005 = vld [vmem:[%s0 + $0x28] sm:$0xff]
  %v1006 = vld [vmem:[%s0 + $0x30] sm:$0xff]
  %v1007 = vld [vmem:[%s0 + $0x38] sm:$0xff]
  %v1008 = vld [vmem:[%s0 + $0x40] sm:$0xff]
  %v1009 = vld [vmem:[%s0 + $0x48] sm:$0xff]
  %v1010 = vld [vmem:[%s0 + $0x50] sm:$0xff]
  %v1011 = vld [vmem:[%s0 + $0x58] sm:$0xff]
  %v1012 = vld [vmem:[%s0 + $0x60] sm:$0xff]
  %v1013 = vld [vmem:[%s0 + $0x68] sm:$0xff]
  %v1014 = vld [vmem:[%s0 + $0x70] sm:$0xff]
  %v1015 = vld [vmem:[%s0 + $0x78] sm:$0xff]
  %v1016 = vld [vmem:[%s0 + $0x80] sm:$0xff]
  %v1017 = vld [vmem:[%s0 + $0x88] sm:$0xff]
  %v1018 = vld [vmem:[%s0 + $0x90] sm:$0xff]
  %v1019 = vld [vmem:[%s0 + $0x98] sm:$0xff]
  %v1020 = vld [vmem:[%s0 + $0xa0] sm:$0xff]
  %v1021 = vld [vmem:[%s0 + $0xa8] sm:$0xff]
  %v1022 = vld [vmem:[%s0 + $0xb0] sm:$0xff]
  %v1023 = vld [vmem:[%s0 + $0xb8] sm:$0xff]
  %v1024 = vld [vmem:[%s0 + $0xc0] sm:$0xff]
  %v1025 = vld [vmem:[%s0 + $0xc8] sm:$0xff]
  %v1026 = vld [vmem:[%s0 + $0xd0] sm:$0xff]
  %v1027 = vld [vmem:[%s0 + $0xd8] sm:$0xff]
  %v1028 = vld [vmem:[%s0 + $0xe0] sm:$0xff]
  %v1029 = vld [vmem:[%s0 + $0xe8] sm:$0xff]
  %v1030 = vld [vmem:[%s0 + $0xf0] sm:$0xff]
  %v1031 = vpack.c.bf16 %v1004, %v1003
  %v1032 = vpack.c.bf16 %v1006, %v1005
  %v1033 = vpack.c.bf16 %v1008, %v1007
  %v1034 = vpack.c.bf16 %v1010, %v1009
  %v1035 = vpack.c.bf16 %v1012, %v1011
  %v1036 = vpack.c.bf16 %v1014, %v1013
  %v1037 = vpack.c.bf16 %v1016, %v1015
  %v1038 = vpack.c.bf16 %v1018, %v1017
  %v1039 = vpack.c.bf16 %v1020, %v1019
  %v1040 = vpack.c.bf16 %v1022, %v1021
  %v1041 = vpack.c.bf16 %v1024, %v1023
  %v1042 = vpack.c.bf16 %v1026, %v1025
  %v1043 = vpack.c.bf16 %v1028, %v1027
  %v1044 = vpack.c.bf16 %v1030, %v1029
  %s1045 = scalar_lea.vmem %s1, 384
  %v1046 = vld [vmem:[%s1045] sm:$0xff]
  %v1047 = vld [vmem:[%s1045 + $0x8] sm:$0xff]
  %v1048 = vld [vmem:[%s1045 + $0x10] sm:$0xff]
  %v1049 = vld [vmem:[%s1045 + $0x18] sm:$0xff]
  %v1050 = vld [vmem:[%s1045 + $0x20] sm:$0xff]
  %v1051 = vld [vmem:[%s1045 + $0x28] sm:$0xff]
  %v1052 = vld [vmem:[%s1045 + $0x30] sm:$0xff]
  %v1053 = vld [vmem:[%s1045 + $0x38] sm:$0xff]
  %v1054 = vld [vmem:[%s1045 + $0x40] sm:$0xff]
  %v1055 = vld [vmem:[%s1045 + $0x48] sm:$0xff]
  %v1056 = vld [vmem:[%s1045 + $0x50] sm:$0xff]
  %v1057 = vld [vmem:[%s1045 + $0x58] sm:$0xff]
  %v1058 = vld [vmem:[%s1045 + $0x60] sm:$0xff]
  %v1059 = vld [vmem:[%s1045 + $0x68] sm:$0xff]
  %v1060 = vld [vmem:[%s1045 + $0x70] sm:$0xff]
  %v1061 = vld [vmem:[%s1045 + $0x78] sm:$0xff]
  %v1078 = vunpack.c.l.b16 %v1046
  %v1079 = vunpack.c.h.b16 %v1046
  %v1080 = vunpack.c.l.b16 %v1047
  %v1081 = vunpack.c.h.b16 %v1047
  %v1082 = vunpack.c.l.b16 %v1048
  %v1083 = vunpack.c.h.b16 %v1048
  %v1084 = vunpack.c.l.b16 %v1049
  %v1085 = vunpack.c.h.b16 %v1049
  %v1086 = vunpack.c.l.b16 %v1050
  %v1087 = vunpack.c.h.b16 %v1050
  %v1088 = vunpack.c.l.b16 %v1051
  %v1089 = vunpack.c.h.b16 %v1051
  %v1090 = vunpack.c.l.b16 %v1052
  %v1091 = vunpack.c.h.b16 %v1052
  %v1092 = vunpack.c.l.b16 %v1053
  %v1093 = vunpack.c.h.b16 %v1053
  %v1094 = vunpack.c.l.b16 %v1054
  %v1095 = vunpack.c.h.b16 %v1054
  %v1096 = vunpack.c.l.b16 %v1055
  %v1097 = vunpack.c.h.b16 %v1055
  %v1098 = vunpack.c.l.b16 %v1056
  %v1099 = vunpack.c.h.b16 %v1056
  %v1100 = vunpack.c.l.b16 %v1057
  %v1101 = vunpack.c.h.b16 %v1057
  %v1102 = vunpack.c.l.b16 %v1058
  %v1103 = vunpack.c.h.b16 %v1058
  %v1104 = vunpack.c.l.b16 %v1059
  %v1105 = vunpack.c.h.b16 %v1059
  %v1106 = vunpack.c.l.b16 %v1060
  %v1107 = vunpack.c.h.b16 %v1060
  %v1108 = vunpack.c.l.b16 %v1061
  %v1109 = vunpack.c.h.b16 %v1061
  %v1110 = vpack.c.b16 %v1080, %v1078
  %v1111 = vpack.c.b16 %v1081, %v1079
  %v1112 = vpack.c.b16 %v1084, %v1082
  %v1113 = vpack.c.b16 %v1085, %v1083
  %v1114 = vpack.c.b16 %v1088, %v1086
  %v1115 = vpack.c.b16 %v1089, %v1087
  %v1116 = vpack.c.b16 %v1092, %v1090
  %v1117 = vpack.c.b16 %v1093, %v1091
  %v1118 = vpack.c.b16 %v1096, %v1094
  %v1119 = vpack.c.b16 %v1097, %v1095
  %v1120 = vpack.c.b16 %v1100, %v1098
  %v1121 = vpack.c.b16 %v1101, %v1099
  %v1122 = vpack.c.b16 %v1104, %v1102
  %v1123 = vpack.c.b16 %v1105, %v1103
  %v1124 = vpack.c.b16 %v1108, %v1106
  %v1125 = vpack.c.b16 %v1109, %v1107
  %1142 = vmatprep.subr.bf16.mxu0 %v1111
  %1143 = vmatpush1.bf16.msra.mxu0 %v1110
  %1144 = vmatprep.subr.bf16.mxu0 %v1113
  %1145 = vmatpush1.bf16.msra.mxu0 %v1112
  %1146 = vmatprep.subr.bf16.mxu0 %v1115
  %1147 = vmatpush1.bf16.msra.mxu0 %v1114
  %1148 = vmatprep.subr.bf16.mxu0 %v1117
  %1149 = vmatpush1.bf16.msra.mxu0 %v1116
  %1150 = vmatprep.subr.bf16.mxu0 %v1119
  %1151 = vmatpush1.bf16.msra.mxu0 %v1118
  %1152 = vmatprep.subr.bf16.mxu0 %v1121
  %1153 = vmatpush1.bf16.msra.mxu0 %v1120
  %1154 = vmatprep.subr.bf16.mxu0 %v1123
  %1155 = vmatpush1.bf16.msra.mxu0 %v1122
  %1156 = vmatprep.subr.bf16.mxu0 %v1125
  %1157 = vmatpush1.bf16.msra.mxu0 %v1124
  %1158 = vmatprep.subr.bf16.mxu0 0
  %1159 = vmatpush1.bf16.msra.mxu0 0
  %1160 = vmatprep.subr.bf16.mxu0 0
  %1161 = vmatpush1.bf16.msra.mxu0 0
  %1162 = vmatprep.subr.bf16.mxu0 0
  %1163 = vmatpush1.bf16.msra.mxu0 0
  %1164 = vmatprep.subr.bf16.mxu0 0
  %1165 = vmatpush1.bf16.msra.mxu0 0
  %1166 = vmatprep.subr.bf16.mxu0 0
  %1167 = vmatpush1.bf16.msra.mxu0 0
  %1168 = vmatprep.subr.bf16.mxu0 0
  %1169 = vmatpush1.bf16.msra.mxu0 0
  %1170 = vmatprep.subr.bf16.mxu0 0
  %1171 = vmatpush1.bf16.msra.mxu0 0
  %1172 = vmatprep.subr.bf16.mxu0 0
  %1173 = vmatpush1.bf16.msra.mxu0 0
  %1174 = vmatprep.mubr.bf16.mxu0 0
  %1175 = vmatmul.mubr.bf16.gmra.mrb[0].mxu0 %v1031
  %v1176 = vpop.f32.mrb[0].mxu0
  %v1177 = vadd.f32 0.0, %v1176
  %v1178 = vpop.f32.mrb[0].mxu0
  %v1179 = vadd.f32 0.0, %v1178
  %v1180 = vpop.f32.mrb[0].mxu0
  %v1181 = vadd.f32 0.0, %v1180
  %v1182 = vpop.f32.mrb[0].mxu0
  %v1183 = vadd.f32 0.0, %v1182
  %1184 = vmatprep.mubr.bf16.mxu0 0
  %1185 = vmatmul.mubr.bf16.gmra.mrb[0].mxu0 %v1032
  %v1186 = vpop.f32.mrb[0].mxu0
  %v1187 = vadd.f32 0.0, %v1186
  %v1188 = vpop.f32.mrb[0].mxu0
  %v1189 = vadd.f32 0.0, %v1188
  %v1190 = vpop.f32.mrb[0].mxu0
  %v1191 = vadd.f32 0.0, %v1190
  %v1192 = vpop.f32.mrb[0].mxu0
  %v1193 = vadd.f32 0.0, %v1192
  %1194 = vmatprep.mubr.bf16.mxu0 0
  %1195 = vmatmul.mubr.bf16.gmra.mrb[0].mxu0 %v1033
  %v1196 = vpop.f32.mrb[0].mxu0
  %v1197 = vadd.f32 0.0, %v1196
  %v1198 = vpop.f32.mrb[0].mxu0
  %v1199 = vadd.f32 0.0, %v1198
  %v1200 = vpop.f32.mrb[0].mxu0
  %v1201 = vadd.f32 0.0, %v1200
  %v1202 = vpop.f32.mrb[0].mxu0
  %v1203 = vadd.f32 0.0, %v1202
  %1204 = vmatprep.mubr.bf16.mxu0 0
  %1205 = vmatmul.mubr.bf16.gmra.mrb[0].mxu0 %v1034
  %v1206 = vpop.f32.mrb[0].mxu0
  %v1207 = vadd.f32 0.0, %v1206
  %v1208 = vpop.f32.mrb[0].mxu0
  %v1209 = vadd.f32 0.0, %v1208
  %v1210 = vpop.f32.mrb[0].mxu0
  %v1211 = vadd.f32 0.0, %v1210
  %v1212 = vpop.f32.mrb[0].mxu0
  %v1213 = vadd.f32 0.0, %v1212
  %1214 = vmatprep.mubr.bf16.mxu0 0
  %1215 = vmatmul.mubr.bf16.gmra.mrb[0].mxu0 %v1035
  %v1216 = vpop.f32.mrb[0].mxu0
  %v1217 = vadd.f32 0.0, %v1216
  %v1218 = vpop.f32.mrb[0].mxu0
  %v1219 = vadd.f32 0.0, %v1218
  %v1220 = vpop.f32.mrb[0].mxu0
  %v1221 = vadd.f32 0.0, %v1220
  %v1222 = vpop.f32.mrb[0].mxu0
  %v1223 = vadd.f32 0.0, %v1222
  %1224 = vmatprep.mubr.bf16.mxu0 0
  %1225 = vmatmul.mubr.bf16.gmra.mrb[0].mxu0 %v1036
  %v1226 = vpop.f32.mrb[0].mxu0
  %v1227 = vadd.f32 0.0, %v1226
  %v1228 = vpop.f32.mrb[0].mxu0
  %v1229 = vadd.f32 0.0, %v1228
  %v1230 = vpop.f32.mrb[0].mxu0
  %v1231 = vadd.f32 0.0, %v1230
  %v1232 = vpop.f32.mrb[0].mxu0
  %v1233 = vadd.f32 0.0, %v1232
  %1234 = vmatprep.mubr.bf16.mxu0 0
  %1235 = vmatmul.mubr.bf16.gmra.mrb[0].mxu0 %v1037
  %v1236 = vpop.f32.mrb[0].mxu0
  %v1237 = vadd.f32 0.0, %v1236
  %v1238 = vpop.f32.mrb[0].mxu0
  %v1239 = vadd.f32 0.0, %v1238
  %v1240 = vpop.f32.mrb[0].mxu0
  %v1241 = vadd.f32 0.0, %v1240
  %v1242 = vpop.f32.mrb[0].mxu0
  %v1243 = vadd.f32 0.0, %v1242
  %1244 = vmatprep.mubr.bf16.mxu0 0
  %1245 = vmatmul.mubr.bf16.gmra.mrb[0].mxu0 %v1038
  %v1246 = vpop.f32.mrb[0].mxu0
  %v1247 = vadd.f32 0.0, %v1246
  %v1248 = vpop.f32.mrb[0].mxu0
  %v1249 = vadd.f32 0.0, %v1248
  %v1250 = vpop.f32.mrb[0].mxu0
  %v1251 = vadd.f32 0.0, %v1250
  %v1252 = vpop.f32.mrb[0].mxu0
  %v1253 = vadd.f32 0.0, %v1252
  %1254 = vmatprep.mubr.bf16.mxu0 0
  %1255 = vmatmul.mubr.bf16.gmra.mrb[0].mxu0 %v1039
  %v1256 = vpop.f32.mrb[0].mxu0
  %v1257 = vadd.f32 0.0, %v1256
  %v1258 = vpop.f32.mrb[0].mxu0
  %v1259 = vadd.f32 0.0, %v1258
  %v1260 = vpop.f32.mrb[0].mxu0
  %v1261 = vadd.f32 0.0, %v1260
  %v1262 = vpop.f32.mrb[0].mxu0
  %v1263 = vadd.f32 0.0, %v1262
  %1264 = vmatprep.mubr.bf16.mxu0 0
  %1265 = vmatmul.mubr.bf16.gmra.mrb[0].mxu0 %v1040
  %v1266 = vpop.f32.mrb[0].mxu0
  %v1267 = vadd.f32 0.0, %v1266
  %v1268 = vpop.f32.mrb[0].mxu0
  %v1269 = vadd.f32 0.0, %v1268
  %v1270 = vpop.f32.mrb[0].mxu0
  %v1271 = vadd.f32 0.0, %v1270
  %v1272 = vpop.f32.mrb[0].mxu0
  %v1273 = vadd.f32 0.0, %v1272
  %1274 = vmatprep.mubr.bf16.mxu0 0
  %1275 = vmatmul.mubr.bf16.gmra.mrb[0].mxu0 %v1041
  %v1276 = vpop.f32.mrb[0].mxu0
  %v1277 = vadd.f32 0.0, %v1276
  %v1278 = vpop.f32.mrb[0].mxu0
  %v1279 = vadd.f32 0.0, %v1278
  %v1280 = vpop.f32.mrb[0].mxu0
  %v1281 = vadd.f32 0.0, %v1280
  %v1282 = vpop.f32.mrb[0].mxu0
  %v1283 = vadd.f32 0.0, %v1282
  %1284 = vmatprep.mubr.bf16.mxu0 0
  %1285 = vmatmul.mubr.bf16.gmra.mrb[0].mxu0 %v1042
  %v1286 = vpop.f32.mrb[0].mxu0
  %v1287 = vadd.f32 0.0, %v1286
  %v1288 = vpop.f32.mrb[0].mxu0
  %v1289 = vadd.f32 0.0, %v1288
  %v1290 = vpop.f32.mrb[0].mxu0
  %v1291 = vadd.f32 0.0, %v1290
  %v1292 = vpop.f32.mrb[0].mxu0
  %v1293 = vadd.f32 0.0, %v1292
  %1294 = vmatprep.mubr.bf16.mxu0 0
  %1295 = vmatmul.mubr.bf16.gmra.mrb[0].mxu0 %v1043
  %v1296 = vpop.f32.mrb[0].mxu0
  %v1297 = vadd.f32 0.0, %v1296
  %v1298 = vpop.f32.mrb[0].mxu0
  %v1299 = vadd.f32 0.0, %v1298
  %v1300 = vpop.f32.mrb[0].mxu0
  %v1301 = vadd.f32 0.0, %v1300
  %v1302 = vpop.f32.mrb[0].mxu0
  %v1303 = vadd.f32 0.0, %v1302
  %1304 = vmatprep.mubr.bf16.mxu0 0
  %1305 = vmatmul.mubr.bf16.gmra.mrb[0].mxu0 %v1044
  %v1306 = vpop.f32.mrb[0].mxu0
  %v1307 = vadd.f32 0.0, %v1306
  %v1308 = vpop.f32.mrb[0].mxu0
  %v1309 = vadd.f32 0.0, %v1308
  %v1310 = vpop.f32.mrb[0].mxu0
  %v1311 = vadd.f32 0.0, %v1310
  %v1312 = vpop.f32.mrb[0].mxu0
  %v1313 = vadd.f32 0.0, %v1312
  %1314 = vdwg.mxu0
  %v1315 = vadd.f32 %v947, %v1177
  %v1316 = vadd.f32 %v948, %v1179
  %v1317 = vadd.f32 %v949, %v1181
  %v1318 = vadd.f32 %v950, %v1183
  %v1319 = vadd.f32 %v951, %v1187
  %v1320 = vadd.f32 %v952, %v1189
  %v1321 = vadd.f32 %v953, %v1191
  %v1322 = vadd.f32 %v954, %v1193
  %v1323 = vadd.f32 %v955, %v1197
  %v1324 = vadd.f32 %v956, %v1199
  %v1325 = vadd.f32 %v957, %v1201
  %v1326 = vadd.f32 %v958, %v1203
  %v1327 = vadd.f32 %v959, %v1207
  %v1328 = vadd.f32 %v960, %v1209
  %v1329 = vadd.f32 %v961, %v1211
  %v1330 = vadd.f32 %v962, %v1213
  %v1331 = vadd.f32 %v963, %v1217
  %v1332 = vadd.f32 %v964, %v1219
  %v1333 = vadd.f32 %v965, %v1221
  %v1334 = vadd.f32 %v966, %v1223
  %v1335 = vadd.f32 %v967, %v1227
  %v1336 = vadd.f32 %v968, %v1229
  %v1337 = vadd.f32 %v969, %v1231
  %v1338 = vadd.f32 %v970, %v1233
  %v1339 = vadd.f32 %v971, %v1237
  %v1340 = vadd.f32 %v972, %v1239
  %v1341 = vadd.f32 %v973, %v1241
  %v1342 = vadd.f32 %v974, %v1243
  %v1343 = vadd.f32 %v975, %v1247
  %v1344 = vadd.f32 %v976, %v1249
  %v1345 = vadd.f32 %v977, %v1251
  %v1346 = vadd.f32 %v978, %v1253
  %v1347 = vadd.f32 %v979, %v1257
  %v1348 = vadd.f32 %v980, %v1259
  %v1349 = vadd.f32 %v981, %v1261
  %v1350 = vadd.f32 %v982, %v1263
  %v1351 = vadd.f32 %v983, %v1267
  %v1352 = vadd.f32 %v984, %v1269
  %v1353 = vadd.f32 %v985, %v1271
  %v1354 = vadd.f32 %v986, %v1273
  %v1355 = vadd.f32 %v987, %v1277
  %v1356 = vadd.f32 %v988, %v1279
  %v1357 = vadd.f32 %v989, %v1281
  %v1358 = vadd.f32 %v990, %v1283
  %v1359 = vadd.f32 %v991, %v1287
  %v1360 = vadd.f32 %v992, %v1289
  %v1361 = vadd.f32 %v993, %v1291
  %v1362 = vadd.f32 %v994, %v1293
  %v1363 = vadd.f32 %v995, %v1297
  %v1364 = vadd.f32 %v996, %v1299
  %v1365 = vadd.f32 %v997, %v1301
  %v1366 = vadd.f32 %v998, %v1303
  %v1367 = vadd.f32 %v999, %v1307
  %v1368 = vadd.f32 %v1000, %v1309
  %v1369 = vadd.f32 %v1001, %v1311
  %v1370 = vadd.f32 %v1002, %v1313
  %v1371 = vld [vmem:[%s0 + $0x20] sm:$0xff]
  %v1372 = vld [vmem:[%s0 + $0x28] sm:$0xff]
  %v1373 = vld [vmem:[%s0 + $0x30] sm:$0xff]
  %v1374 = vld [vmem:[%s0 + $0x38] sm:$0xff]
  %v1375 = vld [vmem:[%s0 + $0x40] sm:$0xff]
  %v1376 = vld [vmem:[%s0 + $0x48] sm:$0xff]
  %v1377 = vld [vmem:[%s0 + $0x50] sm:$0xff]
  %v1378 = vld [vmem:[%s0 + $0x58] sm:$0xff]
  %v1379 = vld [vmem:[%s0 + $0x60] sm:$0xff]
  %v1380 = vld [vmem:[%s0 + $0x68] sm:$0xff]
  %v1381 = vld [vmem:[%s0 + $0x70] sm:$0xff]
  %v1382 = vld [vmem:[%s0 + $0x78] sm:$0xff]
  %v1383 = vld [vmem:[%s0 + $0x80] sm:$0xff]
  %v1384 = vld [vmem:[%s0 + $0x88] sm:$0xff]
  %v1385 = vld [vmem:[%s0 + $0x90] sm:$0xff]
  %v1386 = vld [vmem:[%s0 + $0x98] sm:$0xff]
  %v1387 = vld [vmem:[%s0 + $0xa0] sm:$0xff]
  %v1388 = vld [vmem:[%s0 + $0xa8] sm:$0xff]
  %v1389 = vld [vmem:[%s0 + $0xb0] sm:$0xff]
  %v1390 = vld [vmem:[%s0 + $0xb8] sm:$0xff]
  %v1391 = vld [vmem:[%s0 + $0xc0] sm:$0xff]
  %v1392 = vld [vmem:[%s0 + $0xc8] sm:$0xff]
  %v1393 = vld [vmem:[%s0 + $0xd0] sm:$0xff]
  %v1394 = vld [vmem:[%s0 + $0xd8] sm:$0xff]
  %v1395 = vld [vmem:[%s0 + $0xe0] sm:$0xff]
  %v1396 = vld [vmem:[%s0 + $0xe8] sm:$0xff]
  %v1397 = vld [vmem:[%s0 + $0xf0] sm:$0xff]
  %v1398 = vld [vmem:[%s0 + $0xf8] sm:$0xff]
  %v1399 = vpack.c.bf16 %v1372, %v1371
  %v1400 = vpack.c.bf16 %v1374, %v1373
  %v1401 = vpack.c.bf16 %v1376, %v1375
  %v1402 = vpack.c.bf16 %v1378, %v1377
  %v1403 = vpack.c.bf16 %v1380, %v1379
  %v1404 = vpack.c.bf16 %v1382, %v1381
  %v1405 = vpack.c.bf16 %v1384, %v1383
  %v1406 = vpack.c.bf16 %v1386, %v1385
  %v1407 = vpack.c.bf16 %v1388, %v1387
  %v1408 = vpack.c.bf16 %v1390, %v1389
  %v1409 = vpack.c.bf16 %v1392, %v1391
  %v1410 = vpack.c.bf16 %v1394, %v1393
  %v1411 = vpack.c.bf16 %v1396, %v1395
  %v1412 = vpack.c.bf16 %v1398, %v1397
  %s1413 = scalar_lea.vmem %s1, 512
  %v1414 = vld [vmem:[%s1413] sm:$0xff]
  %v1415 = vld [vmem:[%s1413 + $0x8] sm:$0xff]
  %v1416 = vld [vmem:[%s1413 + $0x10] sm:$0xff]
  %v1417 = vld [vmem:[%s1413 + $0x18] sm:$0xff]
  %v1418 = vld [vmem:[%s1413 + $0x20] sm:$0xff]
  %v1419 = vld [vmem:[%s1413 + $0x28] sm:$0xff]
  %v1420 = vld [vmem:[%s1413 + $0x30] sm:$0xff]
  %v1421 = vld [vmem:[%s1413 + $0x38] sm:$0xff]
  %v1422 = vld [vmem:[%s1413 + $0x40] sm:$0xff]
  %v1423 = vld [vmem:[%s1413 + $0x48] sm:$0xff]
  %v1424 = vld [vmem:[%s1413 + $0x50] sm:$0xff]
  %v1425 = vld [vmem:[%s1413 + $0x58] sm:$0xff]
  %v1426 = vld [vmem:[%s1413 + $0x60] sm:$0xff]
  %v1427 = vld [vmem:[%s1413 + $0x68] sm:$0xff]
  %v1428 = vld [vmem:[%s1413 + $0x70] sm:$0xff]
  %v1429 = vld [vmem:[%s1413 + $0x78] sm:$0xff]
  %v1446 = vunpack.c.l.b16 %v1414
  %v1447 = vunpack.c.h.b16 %v1414
  %v1448 = vunpack.c.l.b16 %v1415
  %v1449 = vunpack.c.h.b16 %v1415
  %v1450 = vunpack.c.l.b16 %v1416
  %v1451 = vunpack.c.h.b16 %v1416
  %v1452 = vunpack.c.l.b16 %v1417
  %v1453 = vunpack.c.h.b16 %v1417
  %v1454 = vunpack.c.l.b16 %v1418
  %v1455 = vunpack.c.h.b16 %v1418
  %v1456 = vunpack.c.l.b16 %v1419
  %v1457 = vunpack.c.h.b16 %v1419
  %v1458 = vunpack.c.l.b16 %v1420
  %v1459 = vunpack.c.h.b16 %v1420
  %v1460 = vunpack.c.l.b16 %v1421
  %v1461 = vunpack.c.h.b16 %v1421
  %v1462 = vunpack.c.l.b16 %v1422
  %v1463 = vunpack.c.h.b16 %v1422
  %v1464 = vunpack.c.l.b16 %v1423
  %v1465 = vunpack.c.h.b16 %v1423
  %v1466 = vunpack.c.l.b16 %v1424
  %v1467 = vunpack.c.h.b16 %v1424
  %v1468 = vunpack.c.l.b16 %v1425
  %v1469 = vunpack.c.h.b16 %v1425
  %v1470 = vunpack.c.l.b16 %v1426
  %v1471 = vunpack.c.h.b16 %v1426
  %v1472 = vunpack.c.l.b16 %v1427
  %v1473 = vunpack.c.h.b16 %v1427
  %v1474 = vunpack.c.l.b16 %v1428
  %v1475 = vunpack.c.h.b16 %v1428
  %v1476 = vunpack.c.l.b16 %v1429
  %v1477 = vunpack.c.h.b16 %v1429
  %v1478 = vpack.c.b16 %v1448, %v1446
  %v1479 = vpack.c.b16 %v1449, %v1447
  %v1480 = vpack.c.b16 %v1452, %v1450
  %v1481 = vpack.c.b16 %v1453, %v1451
  %v1482 = vpack.c.b16 %v1456, %v1454
  %v1483 = vpack.c.b16 %v1457, %v1455
  %v1484 = vpack.c.b16 %v1460, %v1458
  %v1485 = vpack.c.b16 %v1461, %v1459
  %v1486 = vpack.c.b16 %v1464, %v1462
  %v1487 = vpack.c.b16 %v1465, %v1463
  %v1488 = vpack.c.b16 %v1468, %v1466
  %v1489 = vpack.c.b16 %v1469, %v1467
  %v1490 = vpack.c.b16 %v1472, %v1470
  %v1491 = vpack.c.b16 %v1473, %v1471
  %v1492 = vpack.c.b16 %v1476, %v1474
  %v1493 = vpack.c.b16 %v1477, %v1475
  %1510 = vmatprep.subr.bf16.mxu0 %v1479
  %1511 = vmatpush1.bf16.msra.mxu0 %v1478
  %1512 = vmatprep.subr.bf16.mxu0 %v1481
  %1513 = vmatpush1.bf16.msra.mxu0 %v1480
  %1514 = vmatprep.subr.bf16.mxu0 %v1483
  %1515 = vmatpush1.bf16.msra.mxu0 %v1482
  %1516 = vmatprep.subr.bf16.mxu0 %v1485
  %1517 = vmatpush1.bf16.msra.mxu0 %v1484
  %1518 = vmatprep.subr.bf16.mxu0 %v1487
  %1519 = vmatpush1.bf16.msra.mxu0 %v1486
  %1520 = vmatprep.subr.bf16.mxu0 %v1489
  %1521 = vmatpush1.bf16.msra.mxu0 %v1488
  %1522 = vmatprep.subr.bf16.mxu0 %v1491
  %1523 = vmatpush1.bf16.msra.mxu0 %v1490
  %1524 = vmatprep.subr.bf16.mxu0 %v1493
  %1525 = vmatpush1.bf16.msra.mxu0 %v1492
  %1526 = vmatprep.subr.bf16.mxu0 0
  %1527 = vmatpush1.bf16.msra.mxu0 0
  %1528 = vmatprep.subr.bf16.mxu0 0
  %1529 = vmatpush1.bf16.msra.mxu0 0
  %1530 = vmatprep.subr.bf16.mxu0 0
  %1531 = vmatpush1.bf16.msra.mxu0 0
  %1532 = vmatprep.subr.bf16.mxu0 0
  %1533 = vmatpush1.bf16.msra.mxu0 0
  %1534 = vmatprep.subr.bf16.mxu0 0
  %1535 = vmatpush1.bf16.msra.mxu0 0
  %1536 = vmatprep.subr.bf16.mxu0 0
  %1537 = vmatpush1.bf16.msra.mxu0 0
  %1538 = vmatprep.subr.bf16.mxu0 0
  %1539 = vmatpush1.bf16.msra.mxu0 0
  %1540 = vmatprep.subr.bf16.mxu0 0
  %1541 = vmatpush1.bf16.msra.mxu0 0
  %1542 = vmatprep.mubr.bf16.mxu0 0
  %1543 = vmatmul.mubr.bf16.gmra.mrb[0].mxu0 %v1399
  %v1544 = vpop.f32.mrb[0].mxu0
  %v1545 = vadd.f32 0.0, %v1544
  %v1546 = vpop.f32.mrb[0].mxu0
  %v1547 = vadd.f32 0.0, %v1546
  %v1548 = vpop.f32.mrb[0].mxu0
  %v1549 = vadd.f32 0.0, %v1548
  %v1550 = vpop.f32.mrb[0].mxu0
  %v1551 = vadd.f32 0.0, %v1550
  %1552 = vmatprep.mubr.bf16.mxu0 0
  %1553 = vmatmul.mubr.bf16.gmra.mrb[0].mxu0 %v1400
  %v1554 = vpop.f32.mrb[0].mxu0
  %v1555 = vadd.f32 0.0, %v1554
  %v1556 = vpop.f32.mrb[0].mxu0
  %v1557 = vadd.f32 0.0, %v1556
  %v1558 = vpop.f32.mrb[0].mxu0
  %v1559 = vadd.f32 0.0, %v1558
  %v1560 = vpop.f32.mrb[0].mxu0
  %v1561 = vadd.f32 0.0, %v1560
  %1562 = vmatprep.mubr.bf16.mxu0 0
  %1563 = vmatmul.mubr.bf16.gmra.mrb[0].mxu0 %v1401
  %v1564 = vpop.f32.mrb[0].mxu0
  %v1565 = vadd.f32 0.0, %v1564
  %v1566 = vpop.f32.mrb[0].mxu0
  %v1567 = vadd.f32 0.0, %v1566
  %v1568 = vpop.f32.mrb[0].mxu0
  %v1569 = vadd.f32 0.0, %v1568
  %v1570 = vpop.f32.mrb[0].mxu0
  %v1571 = vadd.f32 0.0, %v1570
  %1572 = vmatprep.mubr.bf16.mxu0 0
  %1573 = vmatmul.mubr.bf16.gmra.mrb[0].mxu0 %v1402
  %v1574 = vpop.f32.mrb[0].mxu0
  %v1575 = vadd.f32 0.0, %v1574
  %v1576 = vpop.f32.mrb[0].mxu0
  %v1577 = vadd.f32 0.0, %v1576
  %v1578 = vpop.f32.mrb[0].mxu0
  %v1579 = vadd.f32 0.0, %v1578
  %v1580 = vpop.f32.mrb[0].mxu0
  %v1581 = vadd.f32 0.0, %v1580
  %1582 = vmatprep.mubr.bf16.mxu0 0
  %1583 = vmatmul.mubr.bf16.gmra.mrb[0].mxu0 %v1403
  %v1584 = vpop.f32.mrb[0].mxu0
  %v1585 = vadd.f32 0.0, %v1584
  %v1586 = vpop.f32.mrb[0].mxu0
  %v1587 = vadd.f32 0.0, %v1586
  %v1588 = vpop.f32.mrb[0].mxu0
  %v1589 = vadd.f32 0.0, %v1588
  %v1590 = vpop.f32.mrb[0].mxu0
  %v1591 = vadd.f32 0.0, %v1590
  %1592 = vmatprep.mubr.bf16.mxu0 0
  %1593 = vmatmul.mubr.bf16.gmra.mrb[0].mxu0 %v1404
  %v1594 = vpop.f32.mrb[0].mxu0
  %v1595 = vadd.f32 0.0, %v1594
  %v1596 = vpop.f32.mrb[0].mxu0
  %v1597 = vadd.f32 0.0, %v1596
  %v1598 = vpop.f32.mrb[0].mxu0
  %v1599 = vadd.f32 0.0, %v1598
  %v1600 = vpop.f32.mrb[0].mxu0
  %v1601 = vadd.f32 0.0, %v1600
  %1602 = vmatprep.mubr.bf16.mxu0 0
  %1603 = vmatmul.mubr.bf16.gmra.mrb[0].mxu0 %v1405
  %v1604 = vpop.f32.mrb[0].mxu0
  %v1605 = vadd.f32 0.0, %v1604
  %v1606 = vpop.f32.mrb[0].mxu0
  %v1607 = vadd.f32 0.0, %v1606
  %v1608 = vpop.f32.mrb[0].mxu0
  %v1609 = vadd.f32 0.0, %v1608
  %v1610 = vpop.f32.mrb[0].mxu0
  %v1611 = vadd.f32 0.0, %v1610
  %1612 = vmatprep.mubr.bf16.mxu0 0
  %1613 = vmatmul.mubr.bf16.gmra.mrb[0].mxu0 %v1406
  %v1614 = vpop.f32.mrb[0].mxu0
  %v1615 = vadd.f32 0.0, %v1614
  %v1616 = vpop.f32.mrb[0].mxu0
  %v1617 = vadd.f32 0.0, %v1616
  %v1618 = vpop.f32.mrb[0].mxu0
  %v1619 = vadd.f32 0.0, %v1618
  %v1620 = vpop.f32.mrb[0].mxu0
  %v1621 = vadd.f32 0.0, %v1620
  %1622 = vmatprep.mubr.bf16.mxu0 0
  %1623 = vmatmul.mubr.bf16.gmra.mrb[0].mxu0 %v1407
  %v1624 = vpop.f32.mrb[0].mxu0
  %v1625 = vadd.f32 0.0, %v1624
  %v1626 = vpop.f32.mrb[0].mxu0
  %v1627 = vadd.f32 0.0, %v1626
  %v1628 = vpop.f32.mrb[0].mxu0
  %v1629 = vadd.f32 0.0, %v1628
  %v1630 = vpop.f32.mrb[0].mxu0
  %v1631 = vadd.f32 0.0, %v1630
  %1632 = vmatprep.mubr.bf16.mxu0 0
  %1633 = vmatmul.mubr.bf16.gmra.mrb[0].mxu0 %v1408
  %v1634 = vpop.f32.mrb[0].mxu0
  %v1635 = vadd.f32 0.0, %v1634
  %v1636 = vpop.f32.mrb[0].mxu0
  %v1637 = vadd.f32 0.0, %v1636
  %v1638 = vpop.f32.mrb[0].mxu0
  %v1639 = vadd.f32 0.0, %v1638
  %v1640 = vpop.f32.mrb[0].mxu0
  %v1641 = vadd.f32 0.0, %v1640
  %1642 = vmatprep.mubr.bf16.mxu0 0
  %1643 = vmatmul.mubr.bf16.gmra.mrb[0].mxu0 %v1409
  %v1644 = vpop.f32.mrb[0].mxu0
  %v1645 = vadd.f32 0.0, %v1644
  %v1646 = vpop.f32.mrb[0].mxu0
  %v1647 = vadd.f32 0.0, %v1646
  %v1648 = vpop.f32.mrb[0].mxu0
  %v1649 = vadd.f32 0.0, %v1648
  %v1650 = vpop.f32.mrb[0].mxu0
  %v1651 = vadd.f32 0.0, %v1650
  %1652 = vmatprep.mubr.bf16.mxu0 0
  %1653 = vmatmul.mubr.bf16.gmra.mrb[0].mxu0 %v1410
  %v1654 = vpop.f32.mrb[0].mxu0
  %v1655 = vadd.f32 0.0, %v1654
  %v1656 = vpop.f32.mrb[0].mxu0
  %v1657 = vadd.f32 0.0, %v1656
  %v1658 = vpop.f32.mrb[0].mxu0
  %v1659 = vadd.f32 0.0, %v1658
  %v1660 = vpop.f32.mrb[0].mxu0
  %v1661 = vadd.f32 0.0, %v1660
  %1662 = vmatprep.mubr.bf16.mxu0 0
  %1663 = vmatmul.mubr.bf16.gmra.mrb[0].mxu0 %v1411
  %v1664 = vpop.f32.mrb[0].mxu0
  %v1665 = vadd.f32 0.0, %v1664
  %v1666 = vpop.f32.mrb[0].mxu0
  %v1667 = vadd.f32 0.0, %v1666
  %v1668 = vpop.f32.mrb[0].mxu0
  %v1669 = vadd.f32 0.0, %v1668
  %v1670 = vpop.f32.mrb[0].mxu0
  %v1671 = vadd.f32 0.0, %v1670
  %1672 = vmatprep.mubr.bf16.mxu0 0
  %1673 = vmatmul.mubr.bf16.gmra.mrb[0].mxu0 %v1412
  %v1674 = vpop.f32.mrb[0].mxu0
  %v1675 = vadd.f32 0.0, %v1674
  %v1676 = vpop.f32.mrb[0].mxu0
  %v1677 = vadd.f32 0.0, %v1676
  %v1678 = vpop.f32.mrb[0].mxu0
  %v1679 = vadd.f32 0.0, %v1678
  %v1680 = vpop.f32.mrb[0].mxu0
  %v1681 = vadd.f32 0.0, %v1680
  %1682 = vdwg.mxu0
  %v1683 = vadd.f32 %v1315, %v1545
  %v1684 = vadd.f32 %v1316, %v1547
  %v1685 = vadd.f32 %v1317, %v1549
  %v1686 = vadd.f32 %v1318, %v1551
  %v1687 = vadd.f32 %v1319, %v1555
  %v1688 = vadd.f32 %v1320, %v1557
  %v1689 = vadd.f32 %v1321, %v1559
  %v1690 = vadd.f32 %v1322, %v1561
  %v1691 = vadd.f32 %v1323, %v1565
  %v1692 = vadd.f32 %v1324, %v1567
  %v1693 = vadd.f32 %v1325, %v1569
  %v1694 = vadd.f32 %v1326, %v1571
  %v1695 = vadd.f32 %v1327, %v1575
  %v1696 = vadd.f32 %v1328, %v1577
  %v1697 = vadd.f32 %v1329, %v1579
  %v1698 = vadd.f32 %v1330, %v1581
  %v1699 = vadd.f32 %v1331, %v1585
  %v1700 = vadd.f32 %v1332, %v1587
  %v1701 = vadd.f32 %v1333, %v1589
  %v1702 = vadd.f32 %v1334, %v1591
  %v1703 = vadd.f32 %v1335, %v1595
  %v1704 = vadd.f32 %v1336, %v1597
  %v1705 = vadd.f32 %v1337, %v1599
  %v1706 = vadd.f32 %v1338, %v1601
  %v1707 = vadd.f32 %v1339, %v1605
  %v1708 = vadd.f32 %v1340, %v1607
  %v1709 = vadd.f32 %v1341, %v1609
  %v1710 = vadd.f32 %v1342, %v1611
  %v1711 = vadd.f32 %v1343, %v1615
  %v1712 = vadd.f32 %v1344, %v1617
  %v1713 = vadd.f32 %v1345, %v1619
  %v1714 = vadd.f32 %v1346, %v1621
  %v1715 = vadd.f32 %v1347, %v1625
  %v1716 = vadd.f32 %v1348, %v1627
  %v1717 = vadd.f32 %v1349, %v1629
  %v1718 = vadd.f32 %v1350, %v1631
  %v1719 = vadd.f32 %v1351, %v1635
  %v1720 = vadd.f32 %v1352, %v1637
  %v1721 = vadd.f32 %v1353, %v1639
  %v1722 = vadd.f32 %v1354, %v1641
  %v1723 = vadd.f32 %v1355, %v1645
  %v1724 = vadd.f32 %v1356, %v1647
  %v1725 = vadd.f32 %v1357, %v1649
  %v1726 = vadd.f32 %v1358, %v1651
  %v1727 = vadd.f32 %v1359, %v1655
  %v1728 = vadd.f32 %v1360, %v1657
  %v1729 = vadd.f32 %v1361, %v1659
  %v1730 = vadd.f32 %v1362, %v1661
  %v1731 = vadd.f32 %v1363, %v1665
  %v1732 = vadd.f32 %v1364, %v1667
  %v1733 = vadd.f32 %v1365, %v1669
  %v1734 = vadd.f32 %v1366, %v1671
  %v1735 = vadd.f32 %v1367, %v1675
  %v1736 = vadd.f32 %v1368, %v1677
  %v1737 = vadd.f32 %v1369, %v1679
  %v1738 = vadd.f32 %v1370, %v1681
  %v1739 = vld [vmem:[%s2] sm:$0x3]
  %v1741 = vlaneseq
  %v1742 = vshrl.u32 %v1741, 7
  %v1743 = vsub.s32 0, %v1742
  %v1744 = vrot.slane %v1739, %v1743
  %v1745 = vlaneseq
  %v1746 = vshrl.u32 %v1745, 7
  %v1747 = vsub.s32 1, %v1746
  %v1748 = vrot.slane %v1739, %v1747
  %v1751 = vadd.f32 %v1683, %v1744
  %v1752 = vadd.f32 %v1684, %v1748
  %v1753 = vadd.f32 %v1685, %v1744
  %v1754 = vadd.f32 %v1686, %v1748
  %v1755 = vadd.f32 %v1687, %v1744
  %v1756 = vadd.f32 %v1688, %v1748
  %v1757 = vadd.f32 %v1689, %v1744
  %v1758 = vadd.f32 %v1690, %v1748
  %v1759 = vadd.f32 %v1691, %v1744
  %v1760 = vadd.f32 %v1692, %v1748
  %v1761 = vadd.f32 %v1693, %v1744
  %v1762 = vadd.f32 %v1694, %v1748
  %v1763 = vadd.f32 %v1695, %v1744
  %v1764 = vadd.f32 %v1696, %v1748
  %v1765 = vadd.f32 %v1697, %v1744
  %v1766 = vadd.f32 %v1698, %v1748
  %v1767 = vadd.f32 %v1699, %v1744
  %v1768 = vadd.f32 %v1700, %v1748
  %v1769 = vadd.f32 %v1701, %v1744
  %v1770 = vadd.f32 %v1702, %v1748
  %v1771 = vadd.f32 %v1703, %v1744
  %v1772 = vadd.f32 %v1704, %v1748
  %v1773 = vadd.f32 %v1705, %v1744
  %v1774 = vadd.f32 %v1706, %v1748
  %v1775 = vadd.f32 %v1707, %v1744
  %v1776 = vadd.f32 %v1708, %v1748
  %v1777 = vadd.f32 %v1709, %v1744
  %v1778 = vadd.f32 %v1710, %v1748
  %v1779 = vadd.f32 %v1711, %v1744
  %v1780 = vadd.f32 %v1712, %v1748
  %v1781 = vadd.f32 %v1713, %v1744
  %v1782 = vadd.f32 %v1714, %v1748
  %v1783 = vadd.f32 %v1715, %v1744
  %v1784 = vadd.f32 %v1716, %v1748
  %v1785 = vadd.f32 %v1717, %v1744
  %v1786 = vadd.f32 %v1718, %v1748
  %v1787 = vadd.f32 %v1719, %v1744
  %v1788 = vadd.f32 %v1720, %v1748
  %v1789 = vadd.f32 %v1721, %v1744
  %v1790 = vadd.f32 %v1722, %v1748
  %v1791 = vadd.f32 %v1723, %v1744
  %v1792 = vadd.f32 %v1724, %v1748
  %v1793 = vadd.f32 %v1725, %v1744
  %v1794 = vadd.f32 %v1726, %v1748
  %v1795 = vadd.f32 %v1727, %v1744
  %v1796 = vadd.f32 %v1728, %v1748
  %v1797 = vadd.f32 %v1729, %v1744
  %v1798 = vadd.f32 %v1730, %v1748
  %v1799 = vadd.f32 %v1731, %v1744
  %v1800 = vadd.f32 %v1732, %v1748
  %v1801 = vadd.f32 %v1733, %v1744
  %v1802 = vadd.f32 %v1734, %v1748
  %v1803 = vadd.f32 %v1735, %v1744
  %v1804 = vadd.f32 %v1736, %v1748
  %v1805 = vadd.f32 %v1737, %v1744
  %v1806 = vadd.f32 %v1738, %v1748
  %v1807 = vmax.f32 %v1751, 0.0
  %v1808 = vmax.f32 %v1752, 0.0
  %v1809 = vmax.f32 %v1753, 0.0
  %v1810 = vmax.f32 %v1754, 0.0
  %v1811 = vmax.f32 %v1755, 0.0
  %v1812 = vmax.f32 %v1756, 0.0
  %v1813 = vmax.f32 %v1757, 0.0
  %v1814 = vmax.f32 %v1758, 0.0
  %v1815 = vmax.f32 %v1759, 0.0
  %v1816 = vmax.f32 %v1760, 0.0
  %v1817 = vmax.f32 %v1761, 0.0
  %v1818 = vmax.f32 %v1762, 0.0
  %v1819 = vmax.f32 %v1763, 0.0
  %v1820 = vmax.f32 %v1764, 0.0
  %v1821 = vmax.f32 %v1765, 0.0
  %v1822 = vmax.f32 %v1766, 0.0
  %v1823 = vmax.f32 %v1767, 0.0
  %v1824 = vmax.f32 %v1768, 0.0
  %v1825 = vmax.f32 %v1769, 0.0
  %v1826 = vmax.f32 %v1770, 0.0
  %v1827 = vmax.f32 %v1771, 0.0
  %v1828 = vmax.f32 %v1772, 0.0
  %v1829 = vmax.f32 %v1773, 0.0
  %v1830 = vmax.f32 %v1774, 0.0
  %v1831 = vmax.f32 %v1775, 0.0
  %v1832 = vmax.f32 %v1776, 0.0
  %v1833 = vmax.f32 %v1777, 0.0
  %v1834 = vmax.f32 %v1778, 0.0
  %v1835 = vmax.f32 %v1779, 0.0
  %v1836 = vmax.f32 %v1780, 0.0
  %v1837 = vmax.f32 %v1781, 0.0
  %v1838 = vmax.f32 %v1782, 0.0
  %v1839 = vmax.f32 %v1783, 0.0
  %v1840 = vmax.f32 %v1784, 0.0
  %v1841 = vmax.f32 %v1785, 0.0
  %v1842 = vmax.f32 %v1786, 0.0
  %v1843 = vmax.f32 %v1787, 0.0
  %v1844 = vmax.f32 %v1788, 0.0
  %v1845 = vmax.f32 %v1789, 0.0
  %v1846 = vmax.f32 %v1790, 0.0
  %v1847 = vmax.f32 %v1791, 0.0
  %v1848 = vmax.f32 %v1792, 0.0
  %v1849 = vmax.f32 %v1793, 0.0
  %v1850 = vmax.f32 %v1794, 0.0
  %v1851 = vmax.f32 %v1795, 0.0
  %v1852 = vmax.f32 %v1796, 0.0
  %v1853 = vmax.f32 %v1797, 0.0
  %v1854 = vmax.f32 %v1798, 0.0
  %v1855 = vmax.f32 %v1799, 0.0
  %v1856 = vmax.f32 %v1800, 0.0
  %v1857 = vmax.f32 %v1801, 0.0
  %v1858 = vmax.f32 %v1802, 0.0
  %v1859 = vmax.f32 %v1803, 0.0
  %v1860 = vmax.f32 %v1804, 0.0
  %v1861 = vmax.f32 %v1805, 0.0
  %v1862 = vmax.f32 %v1806, 0.0
  %v1863 = vmax.f32 %v1807, %v1809
  %v1864 = vmax.f32 %v1808, %v1810
  %v1865 = vmax.f32 %v1811, %v1813
  %v1866 = vmax.f32 %v1812, %v1814
  %v1867 = vmax.f32 %v1815, %v1817
  %v1868 = vmax.f32 %v1816, %v1818
  %v1869 = vmax.f32 %v1819, %v1821
  %v1870 = vmax.f32 %v1820, %v1822
  %v1871 = vmax.f32 %v1823, %v1825
  %v1872 = vmax.f32 %v1824, %v1826
  %v1873 = vmax.f32 %v1827, %v1829
  %v1874 = vmax.f32 %v1828, %v1830
  %v1875 = vmax.f32 %v1831, %v1833
  %v1876 = vmax.f32 %v1832, %v1834
  %v1877 = vmax.f32 %v1835, %v1837
  %v1878 = vmax.f32 %v1836, %v1838
  %v1879 = vmax.f32 %v1839, %v1841
  %v1880 = vmax.f32 %v1840, %v1842
  %v1881 = vmax.f32 %v1843, %v1845
  %v1882 = vmax.f32 %v1844, %v1846
  %v1883 = vmax.f32 %v1847, %v1849
  %v1884 = vmax.f32 %v1848, %v1850
  %v1885 = vmax.f32 %v1851, %v1853
  %v1886 = vmax.f32 %v1852, %v1854
  %v1887 = vmax.f32 %v1855, %v1857
  %v1888 = vmax.f32 %v1856, %v1858
  %v1889 = vmax.f32 %v1859, %v1861
  %v1890 = vmax.f32 %v1860, %v1862
  %1919 = vrot.lane.b32.xlu0 %v1863, 120
  %v1920 = vpop.permute.xlu0 %1919
  %1921 = vrot.lane.b32.xlu0 %v1864, 120
  %v1922 = vpop.permute.xlu0 %1921
  %1923 = vrot.lane.b32.xlu0 %v1865, 120
  %v1924 = vpop.permute.xlu0 %1923
  %1925 = vrot.lane.b32.xlu0 %v1866, 120
  %v1926 = vpop.permute.xlu0 %1925
  %1927 = vrot.lane.b32.xlu0 %v1867, 120
  %v1928 = vpop.permute.xlu0 %1927
  %1929 = vrot.lane.b32.xlu0 %v1868, 120
  %v1930 = vpop.permute.xlu0 %1929
  %1931 = vrot.lane.b32.xlu0 %v1869, 120
  %v1932 = vpop.permute.xlu0 %1931
  %1933 = vrot.lane.b32.xlu0 %v1870, 120
  %v1934 = vpop.permute.xlu0 %1933
  %1935 = vrot.lane.b32.xlu0 %v1871, 120
  %v1936 = vpop.permute.xlu0 %1935
  %1937 = vrot.lane.b32.xlu0 %v1872, 120
  %v1938 = vpop.permute.xlu0 %1937
  %1939 = vrot.lane.b32.xlu0 %v1873, 120
  %v1940 = vpop.permute.xlu0 %1939
  %1941 = vrot.lane.b32.xlu0 %v1874, 120
  %v1942 = vpop.permute.xlu0 %1941
  %1943 = vrot.lane.b32.xlu0 %v1875, 120
  %v1944 = vpop.permute.xlu0 %1943
  %1945 = vrot.lane.b32.xlu0 %v1876, 120
  %v1946 = vpop.permute.xlu0 %1945
  %1947 = vrot.lane.b32.xlu0 %v1877, 120
  %v1948 = vpop.permute.xlu0 %1947
  %1949 = vrot.lane.b32.xlu0 %v1878, 120
  %v1950 = vpop.permute.xlu0 %1949
  %1951 = vrot.lane.b32.xlu0 %v1879, 120
  %v1952 = vpop.permute.xlu0 %1951
  %1953 = vrot.lane.b32.xlu0 %v1880, 120
  %v1954 = vpop.permute.xlu0 %1953
  %1955 = vrot.lane.b32.xlu0 %v1881, 120
  %v1956 = vpop.permute.xlu0 %1955
  %1957 = vrot.lane.b32.xlu0 %v1882, 120
  %v1958 = vpop.permute.xlu0 %1957
  %1959 = vrot.lane.b32.xlu0 %v1883, 120
  %v1960 = vpop.permute.xlu0 %1959
  %1961 = vrot.lane.b32.xlu0 %v1884, 120
  %v1962 = vpop.permute.xlu0 %1961
  %1963 = vrot.lane.b32.xlu0 %v1885, 120
  %v1964 = vpop.permute.xlu0 %1963
  %1965 = vrot.lane.b32.xlu0 %v1886, 120
  %v1966 = vpop.permute.xlu0 %1965
  %1967 = vrot.lane.b32.xlu0 %v1887, 120
  %v1968 = vpop.permute.xlu0 %1967
  %1969 = vrot.lane.b32.xlu0 %v1888, 120
  %v1970 = vpop.permute.xlu0 %1969
  %1971 = vrot.lane.b32.xlu0 %v1889, 120
  %v1972 = vpop.permute.xlu0 %1971
  %1973 = vrot.lane.b32.xlu0 %v1890, 120
  %v1974 = vpop.permute.xlu0 %1973
  %vm1975 = vcmask 982016
  %v1976 = vsel %vm1975, %v1920, %v1922
  %v1977 = vsel %vm1975, %v1924, %v1926
  %v1978 = vsel %vm1975, %v1928, %v1930
  %v1979 = vsel %vm1975, %v1932, %v1934
  %v1980 = vsel %vm1975, %v1936, %v1938
  %v1981 = vsel %vm1975, %v1940, %v1942
  %v1982 = vsel %vm1975, %v1944, %v1946
  %v1983 = vsel %vm1975, %v1948, %v1950
  %v1984 = vsel %vm1975, %v1952, %v1954
  %v1985 = vsel %vm1975, %v1956, %v1958
  %v1986 = vsel %vm1975, %v1960, %v1962
  %v1987 = vsel %vm1975, %v1964, %v1966
  %v1988 = vsel %vm1975, %v1968, %v1970
  %v1989 = vsel %vm1975, %v1972, %v1974
  %v2018 = vsel %vm1975, %v1922, 0.0
  %v2019 = vsel %vm1975, %v1926, 0.0
  %v2020 = vsel %vm1975, %v1930, 0.0
  %v2021 = vsel %vm1975, %v1934, 0.0
  %v2022 = vsel %vm1975, %v1938, 0.0
  %v2023 = vsel %vm1975, %v1942, 0.0
  %v2024 = vsel %vm1975, %v1946, 0.0
  %v2025 = vsel %vm1975, %v1950, 0.0
  %v2026 = vsel %vm1975, %v1954, 0.0
  %v2027 = vsel %vm1975, %v1958, 0.0
  %v2028 = vsel %vm1975, %v1962, 0.0
  %v2029 = vsel %vm1975, %v1966, 0.0
  %v2030 = vsel %vm1975, %v1970, 0.0
  %v2031 = vsel %vm1975, %v1974, 0.0
  %v2032 = vmax.f32 %v1863, %v1976
  %v2033 = vmax.f32 %v1864, %v2018
  %v2034 = vmax.f32 %v1865, %v1977
  %v2035 = vmax.f32 %v1866, %v2019
  %v2036 = vmax.f32 %v1867, %v1978
  %v2037 = vmax.f32 %v1868, %v2020
  %v2038 = vmax.f32 %v1869, %v1979
  %v2039 = vmax.f32 %v1870, %v2021
  %v2040 = vmax.f32 %v1871, %v1980
  %v2041 = vmax.f32 %v1872, %v2022
  %v2042 = vmax.f32 %v1873, %v1981
  %v2043 = vmax.f32 %v1874, %v2023
  %v2044 = vmax.f32 %v1875, %v1982
  %v2045 = vmax.f32 %v1876, %v2024
  %v2046 = vmax.f32 %v1877, %v1983
  %v2047 = vmax.f32 %v1878, %v2025
  %v2048 = vmax.f32 %v1879, %v1984
  %v2049 = vmax.f32 %v1880, %v2026
  %v2050 = vmax.f32 %v1881, %v1985
  %v2051 = vmax.f32 %v1882, %v2027
  %v2052 = vmax.f32 %v1883, %v1986
  %v2053 = vmax.f32 %v1884, %v2028
  %v2054 = vmax.f32 %v1885, %v1987
  %v2055 = vmax.f32 %v1886, %v2029
  %v2056 = vmax.f32 %v1887, %v1988
  %v2057 = vmax.f32 %v1888, %v2030
  %v2058 = vmax.f32 %v1889, %v1989
  %v2059 = vmax.f32 %v1890, %v2031
  %v2060 = vpack.c.bf16 %v2034, %v2032
  %v2061 = vpack.c.bf16 %v2035, %v2033
  %v2062 = vpack.c.bf16 %v2038, %v2036
  %v2063 = vpack.c.bf16 %v2039, %v2037
  %v2064 = vpack.c.bf16 %v2042, %v2040
  %v2065 = vpack.c.bf16 %v2043, %v2041
  %v2066 = vpack.c.bf16 %v2046, %v2044
  %v2067 = vpack.c.bf16 %v2047, %v2045
  %v2068 = vpack.c.bf16 %v2050, %v2048
  %v2069 = vpack.c.bf16 %v2051, %v2049
  %v2070 = vld [vmem:[%s3] sm:$0xff]
  %v2071 = vld [vmem:[%s3 + $0x8] sm:$0xff]
  %v2072 = vld [vmem:[%s3 + $0x10] sm:$0xff]
  %v2073 = vld [vmem:[%s3 + $0x18] sm:$0xff]
  %v2074 = vld [vmem:[%s3 + $0x20] sm:$0xff]
  %v2075 = vld [vmem:[%s3 + $0x28] sm:$0xff]
  %v2076 = vld [vmem:[%s3 + $0x30] sm:$0xff]
  %v2077 = vld [vmem:[%s3 + $0x38] sm:$0xff]
  %v2078 = vld [vmem:[%s3 + $0x40] sm:$0xff]
  %v2079 = vld [vmem:[%s3 + $0x48] sm:$0xff]
  %v2080 = vld [vmem:[%s3 + $0x50] sm:$0xff]
  %v2081 = vld [vmem:[%s3 + $0x58] sm:$0xff]
  %v2082 = vld [vmem:[%s3 + $0x60] sm:$0xff]
  %v2083 = vld [vmem:[%s3 + $0x68] sm:$0xff]
  %v2084 = vld [vmem:[%s3 + $0x70] sm:$0xff]
  %v2085 = vld [vmem:[%s3 + $0x78] sm:$0xff]
  %v2086 = vld [vmem:[%s3 + $0x80] sm:$0xff]
  %v2087 = vld [vmem:[%s3 + $0x88] sm:$0xff]
  %v2088 = vld [vmem:[%s3 + $0x90] sm:$0xff]
  %v2089 = vld [vmem:[%s3 + $0x98] sm:$0xff]
  %v2090 = vld [vmem:[%s3 + $0xa0] sm:$0xff]
  %v2091 = vld [vmem:[%s3 + $0xa8] sm:$0xff]
  %v2092 = vld [vmem:[%s3 + $0xb0] sm:$0xff]
  %v2093 = vld [vmem:[%s3 + $0xb8] sm:$0xff]
  %v2094 = vld [vmem:[%s3 + $0xc0] sm:$0xff]
  %v2095 = vld [vmem:[%s3 + $0xc8] sm:$0xff]
  %v2096 = vld [vmem:[%s3 + $0xd0] sm:$0xff]
  %v2097 = vld [vmem:[%s3 + $0xd8] sm:$0xff]
  %v2098 = vld [vmem:[%s3 + $0xe0] sm:$0xff]
  %v2099 = vld [vmem:[%s3 + $0xe8] sm:$0xff]
  %v2100 = vld [vmem:[%s3 + $0xf0] sm:$0xff]
  %v2101 = vld [vmem:[%s3 + $0xf8] sm:$0xff]
  %v2102 = vpack.c.bf16 %v2036, %v2034
  %v2103 = vpack.c.bf16 %v2037, %v2035
  %v2104 = vpack.c.bf16 %v2040, %v2038
  %v2105 = vpack.c.bf16 %v2041, %v2039
  %v2106 = vpack.c.bf16 %v2044, %v2042
  %v2107 = vpack.c.bf16 %v2045, %v2043
  %v2108 = vpack.c.bf16 %v2048, %v2046
  %v2109 = vpack.c.bf16 %v2049, %v2047
  %v2110 = vpack.c.bf16 %v2052, %v2050
  %v2111 = vpack.c.bf16 %v2053, %v2051
  %s2112 = scalar_lea.vmem %s3, 256
  %v2113 = vld [vmem:[%s2112] sm:$0xff]
  %v2114 = vld [vmem:[%s2112 + $0x8] sm:$0xff]
  %v2115 = vld [vmem:[%s2112 + $0x10] sm:$0xff]
  %v2116 = vld [vmem:[%s2112 + $0x18] sm:$0xff]
  %v2117 = vld [vmem:[%s2112 + $0x20] sm:$0xff]
  %v2118 = vld [vmem:[%s2112 + $0x28] sm:$0xff]
  %v2119 = vld [vmem:[%s2112 + $0x30] sm:$0xff]
  %v2120 = vld [vmem:[%s2112 + $0x38] sm:$0xff]
  %v2121 = vld [vmem:[%s2112 + $0x40] sm:$0xff]
  %v2122 = vld [vmem:[%s2112 + $0x48] sm:$0xff]
  %v2123 = vld [vmem:[%s2112 + $0x50] sm:$0xff]
  %v2124 = vld [vmem:[%s2112 + $0x58] sm:$0xff]
  %v2125 = vld [vmem:[%s2112 + $0x60] sm:$0xff]
  %v2126 = vld [vmem:[%s2112 + $0x68] sm:$0xff]
  %v2127 = vld [vmem:[%s2112 + $0x70] sm:$0xff]
  %v2128 = vld [vmem:[%s2112 + $0x78] sm:$0xff]
  %v2129 = vld [vmem:[%s2112 + $0x80] sm:$0xff]
  %v2130 = vld [vmem:[%s2112 + $0x88] sm:$0xff]
  %v2131 = vld [vmem:[%s2112 + $0x90] sm:$0xff]
  %v2132 = vld [vmem:[%s2112 + $0x98] sm:$0xff]
  %v2133 = vld [vmem:[%s2112 + $0xa0] sm:$0xff]
  %v2134 = vld [vmem:[%s2112 + $0xa8] sm:$0xff]
  %v2135 = vld [vmem:[%s2112 + $0xb0] sm:$0xff]
  %v2136 = vld [vmem:[%s2112 + $0xb8] sm:$0xff]
  %v2137 = vld [vmem:[%s2112 + $0xc0] sm:$0xff]
  %v2138 = vld [vmem:[%s2112 + $0xc8] sm:$0xff]
  %v2139 = vld [vmem:[%s2112 + $0xd0] sm:$0xff]
  %v2140 = vld [vmem:[%s2112 + $0xd8] sm:$0xff]
  %v2141 = vld [vmem:[%s2112 + $0xe0] sm:$0xff]
  %v2142 = vld [vmem:[%s2112 + $0xe8] sm:$0xff]
  %v2143 = vld [vmem:[%s2112 + $0xf0] sm:$0xff]
  %v2144 = vld [vmem:[%s2112 + $0xf8] sm:$0xff]
  %v2177 = vunpack.c.l.b16 %v2113
  %v2178 = vunpack.c.h.b16 %v2113
  %v2179 = vunpack.c.l.b16 %v2114
  %v2180 = vunpack.c.h.b16 %v2114
  %v2181 = vunpack.c.l.b16 %v2115
  %v2182 = vunpack.c.h.b16 %v2115
  %v2183 = vunpack.c.l.b16 %v2116
  %v2184 = vunpack.c.h.b16 %v2116
  %v2185 = vunpack.c.l.b16 %v2117
  %v2186 = vunpack.c.h.b16 %v2117
  %v2187 = vunpack.c.l.b16 %v2118
  %v2188 = vunpack.c.h.b16 %v2118
  %v2189 = vunpack.c.l.b16 %v2119
  %v2190 = vunpack.c.h.b16 %v2119
  %v2191 = vunpack.c.l.b16 %v2120
  %v2192 = vunpack.c.h.b16 %v2120
  %v2193 = vunpack.c.l.b16 %v2121
  %v2194 = vunpack.c.h.b16 %v2121
  %v2195 = vunpack.c.l.b16 %v2122
  %v2196 = vunpack.c.h.b16 %v2122
  %v2197 = vunpack.c.l.b16 %v2123
  %v2198 = vunpack.c.h.b16 %v2123
  %v2199 = vunpack.c.l.b16 %v2124
  %v2200 = vunpack.c.h.b16 %v2124
  %v2201 = vunpack.c.l.b16 %v2125
  %v2202 = vunpack.c.h.b16 %v2125
  %v2203 = vunpack.c.l.b16 %v2126
  %v2204 = vunpack.c.h.b16 %v2126
  %v2205 = vunpack.c.l.b16 %v2127
  %v2206 = vunpack.c.h.b16 %v2127
  %v2207 = vunpack.c.l.b16 %v2128
  %v2208 = vunpack.c.h.b16 %v2128
  %v2209 = vunpack.c.l.b16 %v2129
  %v2210 = vunpack.c.h.b16 %v2129
  %v2211 = vunpack.c.l.b16 %v2130
  %v2212 = vunpack.c.h.b16 %v2130
  %v2213 = vunpack.c.l.b16 %v2131
  %v2214 = vunpack.c.h.b16 %v2131
  %v2215 = vunpack.c.l.b16 %v2132
  %v2216 = vunpack.c.h.b16 %v2132
  %v2217 = vunpack.c.l.b16 %v2133
  %v2218 = vunpack.c.h.b16 %v2133
  %v2219 = vunpack.c.l.b16 %v2134
  %v2220 = vunpack.c.h.b16 %v2134
  %v2221 = vunpack.c.l.b16 %v2135
  %v2222 = vunpack.c.h.b16 %v2135
  %v2223 = vunpack.c.l.b16 %v2136
  %v2224 = vunpack.c.h.b16 %v2136
  %v2225 = vunpack.c.l.b16 %v2137
  %v2226 = vunpack.c.h.b16 %v2137
  %v2227 = vunpack.c.l.b16 %v2138
  %v2228 = vunpack.c.h.b16 %v2138
  %v2229 = vunpack.c.l.b16 %v2139
  %v2230 = vunpack.c.h.b16 %v2139
  %v2231 = vunpack.c.l.b16 %v2140
  %v2232 = vunpack.c.h.b16 %v2140
  %v2233 = vunpack.c.l.b16 %v2141
  %v2234 = vunpack.c.h.b16 %v2141
  %v2235 = vunpack.c.l.b16 %v2142
  %v2236 = vunpack.c.h.b16 %v2142
  %v2237 = vunpack.c.l.b16 %v2143
  %v2238 = vunpack.c.h.b16 %v2143
  %v2239 = vunpack.c.l.b16 %v2144
  %v2240 = vunpack.c.h.b16 %v2144
  %v2241 = vpack.c.b16 %v2179, %v2177
  %v2242 = vpack.c.b16 %v2180, %v2178
  %v2243 = vpack.c.b16 %v2183, %v2181
  %v2244 = vpack.c.b16 %v2184, %v2182
  %v2245 = vpack.c.b16 %v2187, %v2185
  %v2246 = vpack.c.b16 %v2188, %v2186
  %v2247 = vpack.c.b16 %v2191, %v2189
  %v2248 = vpack.c.b16 %v2192, %v2190
  %v2249 = vpack.c.b16 %v2195, %v2193
  %v2250 = vpack.c.b16 %v2196, %v2194
  %v2251 = vpack.c.b16 %v2199, %v2197
  %v2252 = vpack.c.b16 %v2200, %v2198
  %v2253 = vpack.c.b16 %v2203, %v2201
  %v2254 = vpack.c.b16 %v2204, %v2202
  %v2255 = vpack.c.b16 %v2207, %v2205
  %v2256 = vpack.c.b16 %v2208, %v2206
  %v2257 = vpack.c.b16 %v2211, %v2209
  %v2258 = vpack.c.b16 %v2212, %v2210
  %v2259 = vpack.c.b16 %v2215, %v2213
  %v2260 = vpack.c.b16 %v2216, %v2214
  %v2261 = vpack.c.b16 %v2219, %v2217
  %v2262 = vpack.c.b16 %v2220, %v2218
  %v2263 = vpack.c.b16 %v2223, %v2221
  %v2264 = vpack.c.b16 %v2224, %v2222
  %v2265 = vpack.c.b16 %v2227, %v2225
  %v2266 = vpack.c.b16 %v2228, %v2226
  %v2267 = vpack.c.b16 %v2231, %v2229
  %v2268 = vpack.c.b16 %v2232, %v2230
  %v2269 = vpack.c.b16 %v2235, %v2233
  %v2270 = vpack.c.b16 %v2236, %v2234
  %v2271 = vpack.c.b16 %v2239, %v2237
  %v2272 = vpack.c.b16 %v2240, %v2238
  %2305 = vmatprep.subr.bf16.mxu0 %v2242
  %2306 = vmatpush1.bf16.msra.mxu0 %v2241
  %2307 = vmatprep.subr.bf16.mxu0 %v2244
  %2308 = vmatpush1.bf16.msra.mxu0 %v2243
  %2309 = vmatprep.subr.bf16.mxu0 %v2246
  %2310 = vmatpush1.bf16.msra.mxu0 %v2245
  %2311 = vmatprep.subr.bf16.mxu0 %v2248
  %2312 = vmatpush1.bf16.msra.mxu0 %v2247
  %2313 = vmatprep.subr.bf16.mxu0 %v2250
  %2314 = vmatpush1.bf16.msra.mxu0 %v2249
  %2315 = vmatprep.subr.bf16.mxu0 %v2252
  %2316 = vmatpush1.bf16.msra.mxu0 %v2251
  %2317 = vmatprep.subr.bf16.mxu0 %v2254
  %2318 = vmatpush1.bf16.msra.mxu0 %v2253
  %2319 = vmatprep.subr.bf16.mxu0 %v2256
  %2320 = vmatpush1.bf16.msra.mxu0 %v2255
  %2321 = vmatprep.subr.bf16.mxu0 %v2258
  %2322 = vmatpush1.bf16.msra.mxu0 %v2257
  %2323 = vmatprep.subr.bf16.mxu0 %v2260
  %2324 = vmatpush1.bf16.msra.mxu0 %v2259
  %2325 = vmatprep.subr.bf16.mxu0 %v2262
  %2326 = vmatpush1.bf16.msra.mxu0 %v2261
  %2327 = vmatprep.subr.bf16.mxu0 %v2264
  %2328 = vmatpush1.bf16.msra.mxu0 %v2263
  %2329 = vmatprep.subr.bf16.mxu0 %v2266
  %2330 = vmatpush1.bf16.msra.mxu0 %v2265
  %2331 = vmatprep.subr.bf16.mxu0 %v2268
  %2332 = vmatpush1.bf16.msra.mxu0 %v2267
  %2333 = vmatprep.subr.bf16.mxu0 %v2270
  %2334 = vmatpush1.bf16.msra.mxu0 %v2269
  %2335 = vmatprep.subr.bf16.mxu0 %v2272
  %2336 = vmatpush1.bf16.msra.mxu0 %v2271
  %2337 = vmatprep.mubr.bf16.mxu0 %v2103
  %2338 = vmatmul.mubr.bf16.gmra.mrb[0].mxu0 %v2102
  %v2339 = vpop.f32.mrb[0].mxu0
  %v2340 = vadd.f32 0.0, %v2339
  %v2341 = vpop.f32.mrb[0].mxu0
  %v2342 = vadd.f32 0.0, %v2341
  %v2343 = vpop.f32.mrb[0].mxu0
  %v2344 = vadd.f32 0.0, %v2343
  %v2345 = vpop.f32.mrb[0].mxu0
  %v2346 = vadd.f32 0.0, %v2345
  %2347 = vmatprep.mubr.bf16.mxu0 %v2105
  %2348 = vmatmul.mubr.bf16.gmra.mrb[0].mxu0 %v2104
  %v2349 = vpop.f32.mrb[0].mxu0
  %v2350 = vadd.f32 0.0, %v2349
  %v2351 = vpop.f32.mrb[0].mxu0
  %v2352 = vadd.f32 0.0, %v2351
  %v2353 = vpop.f32.mrb[0].mxu0
  %v2354 = vadd.f32 0.0, %v2353
  %v2355 = vpop.f32.mrb[0].mxu0
  %v2356 = vadd.f32 0.0, %v2355
  %2357 = vmatprep.mubr.bf16.mxu0 %v2107
  %2358 = vmatmul.mubr.bf16.gmra.mrb[0].mxu0 %v2106
  %v2359 = vpop.f32.mrb[0].mxu0
  %v2360 = vadd.f32 0.0, %v2359
  %v2361 = vpop.f32.mrb[0].mxu0
  %v2362 = vadd.f32 0.0, %v2361
  %v2363 = vpop.f32.mrb[0].mxu0
  %v2364 = vadd.f32 0.0, %v2363
  %v2365 = vpop.f32.mrb[0].mxu0
  %v2366 = vadd.f32 0.0, %v2365
  %2367 = vmatprep.mubr.bf16.mxu0 %v2109
  %2368 = vmatmul.mubr.bf16.gmra.mrb[0].mxu0 %v2108
  %v2369 = vpop.f32.mrb[0].mxu0
  %v2370 = vadd.f32 0.0, %v2369
  %v2371 = vpop.f32.mrb[0].mxu0
  %v2372 = vadd.f32 0.0, %v2371
  %v2373 = vpop.f32.mrb[0].mxu0
  %v2374 = vadd.f32 0.0, %v2373
  %v2375 = vpop.f32.mrb[0].mxu0
  %v2376 = vadd.f32 0.0, %v2375
  %2377 = vmatprep.mubr.bf16.mxu0 %v2111
  %2378 = vmatmul.mubr.bf16.gmra.mrb[0].mxu0 %v2110
  %v2379 = vpop.f32.mrb[0].mxu0
  %v2380 = vadd.f32 0.0, %v2379
  %v2381 = vpop.f32.mrb[0].mxu0
  %v2382 = vadd.f32 0.0, %v2381
  %v2383 = vpop.f32.mrb[0].mxu0
  %v2384 = vadd.f32 0.0, %v2383
  %v2385 = vpop.f32.mrb[0].mxu0
  %v2386 = vadd.f32 0.0, %v2385
  %2387 = vdwg.mxu0
  %v2420 = vunpack.c.l.b16 %v2070
  %v2421 = vunpack.c.h.b16 %v2070
  %v2422 = vunpack.c.l.b16 %v2071
  %v2423 = vunpack.c.h.b16 %v2071
  %v2424 = vunpack.c.l.b16 %v2072
  %v2425 = vunpack.c.h.b16 %v2072
  %v2426 = vunpack.c.l.b16 %v2073
  %v2427 = vunpack.c.h.b16 %v2073
  %v2428 = vunpack.c.l.b16 %v2074
  %v2429 = vunpack.c.h.b16 %v2074
  %v2430 = vunpack.c.l.b16 %v2075
  %v2431 = vunpack.c.h.b16 %v2075
  %v2432 = vunpack.c.l.b16 %v2076
  %v2433 = vunpack.c.h.b16 %v2076
  %v2434 = vunpack.c.l.b16 %v2077
  %v2435 = vunpack.c.h.b16 %v2077
  %v2436 = vunpack.c.l.b16 %v2078
  %v2437 = vunpack.c.h.b16 %v2078
  %v2438 = vunpack.c.l.b16 %v2079
  %v2439 = vunpack.c.h.b16 %v2079
  %v2440 = vunpack.c.l.b16 %v2080
  %v2441 = vunpack.c.h.b16 %v2080
  %v2442 = vunpack.c.l.b16 %v2081
  %v2443 = vunpack.c.h.b16 %v2081
  %v2444 = vunpack.c.l.b16 %v2082
  %v2445 = vunpack.c.h.b16 %v2082
  %v2446 = vunpack.c.l.b16 %v2083
  %v2447 = vunpack.c.h.b16 %v2083
  %v2448 = vunpack.c.l.b16 %v2084
  %v2449 = vunpack.c.h.b16 %v2084
  %v2450 = vunpack.c.l.b16 %v2085
  %v2451 = vunpack.c.h.b16 %v2085
  %v2452 = vunpack.c.l.b16 %v2086
  %v2453 = vunpack.c.h.b16 %v2086
  %v2454 = vunpack.c.l.b16 %v2087
  %v2455 = vunpack.c.h.b16 %v2087
  %v2456 = vunpack.c.l.b16 %v2088
  %v2457 = vunpack.c.h.b16 %v2088
  %v2458 = vunpack.c.l.b16 %v2089
  %v2459 = vunpack.c.h.b16 %v2089
  %v2460 = vunpack.c.l.b16 %v2090
  %v2461 = vunpack.c.h.b16 %v2090
  %v2462 = vunpack.c.l.b16 %v2091
  %v2463 = vunpack.c.h.b16 %v2091
  %v2464 = vunpack.c.l.b16 %v2092
  %v2465 = vunpack.c.h.b16 %v2092
  %v2466 = vunpack.c.l.b16 %v2093
  %v2467 = vunpack.c.h.b16 %v2093
  %v2468 = vunpack.c.l.b16 %v2094
  %v2469 = vunpack.c.h.b16 %v2094
  %v2470 = vunpack.c.l.b16 %v2095
  %v2471 = vunpack.c.h.b16 %v2095
  %v2472 = vunpack.c.l.b16 %v2096
  %v2473 = vunpack.c.h.b16 %v2096
  %v2474 = vunpack.c.l.b16 %v2097
  %v2475 = vunpack.c.h.b16 %v2097
  %v2476 = vunpack.c.l.b16 %v2098
  %v2477 = vunpack.c.h.b16 %v2098
  %v2478 = vunpack.c.l.b16 %v2099
  %v2479 = vunpack.c.h.b16 %v2099
  %v2480 = vunpack.c.l.b16 %v2100
  %v2481 = vunpack.c.h.b16 %v2100
  %v2482 = vunpack.c.l.b16 %v2101
  %v2483 = vunpack.c.h.b16 %v2101
  %v2484 = vpack.c.b16 %v2422, %v2420
  %v2485 = vpack.c.b16 %v2423, %v2421
  %v2486 = vpack.c.b16 %v2426, %v2424
  %v2487 = vpack.c.b16 %v2427, %v2425
  %v2488 = vpack.c.b16 %v2430, %v2428
  %v2489 = vpack.c.b16 %v2431, %v2429
  %v2490 = vpack.c.b16 %v2434, %v2432
  %v2491 = vpack.c.b16 %v2435, %v2433
  %v2492 = vpack.c.b16 %v2438, %v2436
  %v2493 = vpack.c.b16 %v2439, %v2437
  %v2494 = vpack.c.b16 %v2442, %v2440
  %v2495 = vpack.c.b16 %v2443, %v2441
  %v2496 = vpack.c.b16 %v2446, %v2444
  %v2497 = vpack.c.b16 %v2447, %v2445
  %v2498 = vpack.c.b16 %v2450, %v2448
  %v2499 = vpack.c.b16 %v2451, %v2449
  %v2500 = vpack.c.b16 %v2454, %v2452
  %v2501 = vpack.c.b16 %v2455, %v2453
  %v2502 = vpack.c.b16 %v2458, %v2456
  %v2503 = vpack.c.b16 %v2459, %v2457
  %v2504 = vpack.c.b16 %v2462, %v2460
  %v2505 = vpack.c.b16 %v2463, %v2461
  %v2506 = vpack.c.b16 %v2466, %v2464
  %v2507 = vpack.c.b16 %v2467, %v2465
  %v2508 = vpack.c.b16 %v2470, %v2468
  %v2509 = vpack.c.b16 %v2471, %v2469
  %v2510 = vpack.c.b16 %v2474, %v2472
  %v2511 = vpack.c.b16 %v2475, %v2473
  %v2512 = vpack.c.b16 %v2478, %v2476
  %v2513 = vpack.c.b16 %v2479, %v2477
  %v2514 = vpack.c.b16 %v2482, %v2480
  %v2515 = vpack.c.b16 %v2483, %v2481
  %2548 = vmatprep.subr.bf16.mxu0 %v2485
  %2549 = vmatpush1.bf16.msra.mxu0 %v2484
  %2550 = vmatprep.subr.bf16.mxu0 %v2487
  %2551 = vmatpush1.bf16.msra.mxu0 %v2486
  %2552 = vmatprep.subr.bf16.mxu0 %v2489
  %2553 = vmatpush1.bf16.msra.mxu0 %v2488
  %2554 = vmatprep.subr.bf16.mxu0 %v2491
  %2555 = vmatpush1.bf16.msra.mxu0 %v2490
  %2556 = vmatprep.subr.bf16.mxu0 %v2493
  %2557 = vmatpush1.bf16.msra.mxu0 %v2492
  %2558 = vmatprep.subr.bf16.mxu0 %v2495
  %2559 = vmatpush1.bf16.msra.mxu0 %v2494
  %2560 = vmatprep.subr.bf16.mxu0 %v2497
  %2561 = vmatpush1.bf16.msra.mxu0 %v2496
  %2562 = vmatprep.subr.bf16.mxu0 %v2499
  %2563 = vmatpush1.bf16.msra.mxu0 %v2498
  %2564 = vmatprep.subr.bf16.mxu0 %v2501
  %2565 = vmatpush1.bf16.msra.mxu0 %v2500
  %2566 = vmatprep.subr.bf16.mxu0 %v2503
  %2567 = vmatpush1.bf16.msra.mxu0 %v2502
  %2568 = vmatprep.subr.bf16.mxu0 %v2505
  %2569 = vmatpush1.bf16.msra.mxu0 %v2504
  %2570 = vmatprep.subr.bf16.mxu0 %v2507
  %2571 = vmatpush1.bf16.msra.mxu0 %v2506
  %2572 = vmatprep.subr.bf16.mxu0 %v2509
  %2573 = vmatpush1.bf16.msra.mxu0 %v2508
  %2574 = vmatprep.subr.bf16.mxu0 %v2511
  %2575 = vmatpush1.bf16.msra.mxu0 %v2510
  %2576 = vmatprep.subr.bf16.mxu0 %v2513
  %2577 = vmatpush1.bf16.msra.mxu0 %v2512
  %2578 = vmatprep.subr.bf16.mxu0 %v2515
  %2579 = vmatpush1.bf16.msra.mxu0 %v2514
  %2580 = vmatprep.mubr.bf16.mxu0 %v2061
  %2581 = vmatmul.mubr.bf16.gmra.mrb[0].mxu0 %v2060
  %v2582 = vpop.f32.mrb[0].mxu0
  %v2583 = vadd.f32 %v2340, %v2582
  %v2584 = vpop.f32.mrb[0].mxu0
  %v2585 = vadd.f32 %v2342, %v2584
  %v2586 = vpop.f32.mrb[0].mxu0
  %v2587 = vadd.f32 %v2344, %v2586
  %v2588 = vpop.f32.mrb[0].mxu0
  %v2589 = vadd.f32 %v2346, %v2588
  %2590 = vmatprep.mubr.bf16.mxu0 %v2063
  %2591 = vmatmul.mubr.bf16.gmra.mrb[0].mxu0 %v2062
  %v2592 = vpop.f32.mrb[0].mxu0
  %v2593 = vadd.f32 %v2350, %v2592
  %v2594 = vpop.f32.mrb[0].mxu0
  %v2595 = vadd.f32 %v2352, %v2594
  %v2596 = vpop.f32.mrb[0].mxu0
  %v2597 = vadd.f32 %v2354, %v2596
  %v2598 = vpop.f32.mrb[0].mxu0
  %v2599 = vadd.f32 %v2356, %v2598
  %2600 = vmatprep.mubr.bf16.mxu0 %v2065
  %2601 = vmatmul.mubr.bf16.gmra.mrb[0].mxu0 %v2064
  %v2602 = vpop.f32.mrb[0].mxu0
  %v2603 = vadd.f32 %v2360, %v2602
  %v2604 = vpop.f32.mrb[0].mxu0
  %v2605 = vadd.f32 %v2362, %v2604
  %v2606 = vpop.f32.mrb[0].mxu0
  %v2607 = vadd.f32 %v2364, %v2606
  %v2608 = vpop.f32.mrb[0].mxu0
  %v2609 = vadd.f32 %v2366, %v2608
  %2610 = vmatprep.mubr.bf16.mxu0 %v2067
  %2611 = vmatmul.mubr.bf16.gmra.mrb[0].mxu0 %v2066
  %v2612 = vpop.f32.mrb[0].mxu0
  %v2613 = vadd.f32 %v2370, %v2612
  %v2614 = vpop.f32.mrb[0].mxu0
  %v2615 = vadd.f32 %v2372, %v2614
  %v2616 = vpop.f32.mrb[0].mxu0
  %v2617 = vadd.f32 %v2374, %v2616
  %v2618 = vpop.f32.mrb[0].mxu0
  %v2619 = vadd.f32 %v2376, %v2618
  %2620 = vmatprep.mubr.bf16.mxu0 %v2069
  %2621 = vmatmul.mubr.bf16.gmra.mrb[0].mxu0 %v2068
  %v2622 = vpop.f32.mrb[0].mxu0
  %v2623 = vadd.f32 %v2380, %v2622
  %v2624 = vpop.f32.mrb[0].mxu0
  %v2625 = vadd.f32 %v2382, %v2624
  %v2626 = vpop.f32.mrb[0].mxu0
  %v2627 = vadd.f32 %v2384, %v2626
  %v2628 = vpop.f32.mrb[0].mxu0
  %v2629 = vadd.f32 %v2386, %v2628
  %2630 = vdwg.mxu0
  %v2631 = vpack.c.bf16 %v2054, %v2052
  %v2632 = vpack.c.bf16 %v2055, %v2053
  %s2633 = scalar_lea.vmem %s3, 512
  %v2634 = vld [vmem:[%s2633] sm:$0xff]
  %v2635 = vld [vmem:[%s2633 + $0x8] sm:$0xff]
  %v2636 = vld [vmem:[%s2633 + $0x10] sm:$0xff]
  %v2637 = vld [vmem:[%s2633 + $0x18] sm:$0xff]
  %v2638 = vld [vmem:[%s2633 + $0x20] sm:$0xff]
  %v2639 = vld [vmem:[%s2633 + $0x28] sm:$0xff]
  %v2640 = vld [vmem:[%s2633 + $0x30] sm:$0xff]
  %v2641 = vld [vmem:[%s2633 + $0x38] sm:$0xff]
  %v2642 = vld [vmem:[%s2633 + $0x40] sm:$0xff]
  %v2643 = vld [vmem:[%s2633 + $0x48] sm:$0xff]
  %v2644 = vld [vmem:[%s2633 + $0x50] sm:$0xff]
  %v2645 = vld [vmem:[%s2633 + $0x58] sm:$0xff]
  %v2646 = vld [vmem:[%s2633 + $0x60] sm:$0xff]
  %v2647 = vld [vmem:[%s2633 + $0x68] sm:$0xff]
  %v2648 = vld [vmem:[%s2633 + $0x70] sm:$0xff]
  %v2649 = vld [vmem:[%s2633 + $0x78] sm:$0xff]
  %v2650 = vld [vmem:[%s2633 + $0x80] sm:$0xff]
  %v2651 = vld [vmem:[%s2633 + $0x88] sm:$0xff]
  %v2652 = vld [vmem:[%s2633 + $0x90] sm:$0xff]
  %v2653 = vld [vmem:[%s2633 + $0x98] sm:$0xff]
  %v2654 = vld [vmem:[%s2633 + $0xa0] sm:$0xff]
  %v2655 = vld [vmem:[%s2633 + $0xa8] sm:$0xff]
  %v2656 = vld [vmem:[%s2633 + $0xb0] sm:$0xff]
  %v2657 = vld [vmem:[%s2633 + $0xb8] sm:$0xff]
  %v2658 = vld [vmem:[%s2633 + $0xc0] sm:$0xff]
  %v2659 = vld [vmem:[%s2633 + $0xc8] sm:$0xff]
  %v2660 = vld [vmem:[%s2633 + $0xd0] sm:$0xff]
  %v2661 = vld [vmem:[%s2633 + $0xd8] sm:$0xff]
  %v2662 = vld [vmem:[%s2633 + $0xe0] sm:$0xff]
  %v2663 = vld [vmem:[%s2633 + $0xe8] sm:$0xff]
  %v2664 = vld [vmem:[%s2633 + $0xf0] sm:$0xff]
  %v2665 = vld [vmem:[%s2633 + $0xf8] sm:$0xff]
  %v2698 = vunpack.c.l.b16 %v2634
  %v2699 = vunpack.c.h.b16 %v2634
  %v2700 = vunpack.c.l.b16 %v2635
  %v2701 = vunpack.c.h.b16 %v2635
  %v2702 = vunpack.c.l.b16 %v2636
  %v2703 = vunpack.c.h.b16 %v2636
  %v2704 = vunpack.c.l.b16 %v2637
  %v2705 = vunpack.c.h.b16 %v2637
  %v2706 = vunpack.c.l.b16 %v2638
  %v2707 = vunpack.c.h.b16 %v2638
  %v2708 = vunpack.c.l.b16 %v2639
  %v2709 = vunpack.c.h.b16 %v2639
  %v2710 = vunpack.c.l.b16 %v2640
  %v2711 = vunpack.c.h.b16 %v2640
  %v2712 = vunpack.c.l.b16 %v2641
  %v2713 = vunpack.c.h.b16 %v2641
  %v2714 = vunpack.c.l.b16 %v2642
  %v2715 = vunpack.c.h.b16 %v2642
  %v2716 = vunpack.c.l.b16 %v2643
  %v2717 = vunpack.c.h.b16 %v2643
  %v2718 = vunpack.c.l.b16 %v2644
  %v2719 = vunpack.c.h.b16 %v2644
  %v2720 = vunpack.c.l.b16 %v2645
  %v2721 = vunpack.c.h.b16 %v2645
  %v2722 = vunpack.c.l.b16 %v2646
  %v2723 = vunpack.c.h.b16 %v2646
  %v2724 = vunpack.c.l.b16 %v2647
  %v2725 = vunpack.c.h.b16 %v2647
  %v2726 = vunpack.c.l.b16 %v2648
  %v2727 = vunpack.c.h.b16 %v2648
  %v2728 = vunpack.c.l.b16 %v2649
  %v2729 = vunpack.c.h.b16 %v2649
  %v2730 = vunpack.c.l.b16 %v2650
  %v2731 = vunpack.c.h.b16 %v2650
  %v2732 = vunpack.c.l.b16 %v2651
  %v2733 = vunpack.c.h.b16 %v2651
  %v2734 = vunpack.c.l.b16 %v2652
  %v2735 = vunpack.c.h.b16 %v2652
  %v2736 = vunpack.c.l.b16 %v2653
  %v2737 = vunpack.c.h.b16 %v2653
  %v2738 = vunpack.c.l.b16 %v2654
  %v2739 = vunpack.c.h.b16 %v2654
  %v2740 = vunpack.c.l.b16 %v2655
  %v2741 = vunpack.c.h.b16 %v2655
  %v2742 = vunpack.c.l.b16 %v2656
  %v2743 = vunpack.c.h.b16 %v2656
  %v2744 = vunpack.c.l.b16 %v2657
  %v2745 = vunpack.c.h.b16 %v2657
  %v2746 = vunpack.c.l.b16 %v2658
  %v2747 = vunpack.c.h.b16 %v2658
  %v2748 = vunpack.c.l.b16 %v2659
  %v2749 = vunpack.c.h.b16 %v2659
  %v2750 = vunpack.c.l.b16 %v2660
  %v2751 = vunpack.c.h.b16 %v2660
  %v2752 = vunpack.c.l.b16 %v2661
  %v2753 = vunpack.c.h.b16 %v2661
  %v2754 = vunpack.c.l.b16 %v2662
  %v2755 = vunpack.c.h.b16 %v2662
  %v2756 = vunpack.c.l.b16 %v2663
  %v2757 = vunpack.c.h.b16 %v2663
  %v2758 = vunpack.c.l.b16 %v2664
  %v2759 = vunpack.c.h.b16 %v2664
  %v2760 = vunpack.c.l.b16 %v2665
  %v2761 = vunpack.c.h.b16 %v2665
  %v2762 = vpack.c.b16 %v2700, %v2698
  %v2763 = vpack.c.b16 %v2701, %v2699
  %v2764 = vpack.c.b16 %v2704, %v2702
  %v2765 = vpack.c.b16 %v2705, %v2703
  %v2766 = vpack.c.b16 %v2708, %v2706
  %v2767 = vpack.c.b16 %v2709, %v2707
  %v2768 = vpack.c.b16 %v2712, %v2710
  %v2769 = vpack.c.b16 %v2713, %v2711
  %v2770 = vpack.c.b16 %v2716, %v2714
  %v2771 = vpack.c.b16 %v2717, %v2715
  %v2772 = vpack.c.b16 %v2720, %v2718
  %v2773 = vpack.c.b16 %v2721, %v2719
  %v2774 = vpack.c.b16 %v2724, %v2722
  %v2775 = vpack.c.b16 %v2725, %v2723
  %v2776 = vpack.c.b16 %v2728, %v2726
  %v2777 = vpack.c.b16 %v2729, %v2727
  %v2778 = vpack.c.b16 %v2732, %v2730
  %v2779 = vpack.c.b16 %v2733, %v2731
  %v2780 = vpack.c.b16 %v2736, %v2734
  %v2781 = vpack.c.b16 %v2737, %v2735
  %v2782 = vpack.c.b16 %v2740, %v2738
  %v2783 = vpack.c.b16 %v2741, %v2739
  %v2784 = vpack.c.b16 %v2744, %v2742
  %v2785 = vpack.c.b16 %v2745, %v2743
  %v2786 = vpack.c.b16 %v2748, %v2746
  %v2787 = vpack.c.b16 %v2749, %v2747
  %v2788 = vpack.c.b16 %v2752, %v2750
  %v2789 = vpack.c.b16 %v2753, %v2751
  %v2790 = vpack.c.b16 %v2756, %v2754
  %v2791 = vpack.c.b16 %v2757, %v2755
  %v2792 = vpack.c.b16 %v2760, %v2758
  %v2793 = vpack.c.b16 %v2761, %v2759
  %2826 = vmatprep.subr.bf16.mxu0 %v2763
  %2827 = vmatpush1.bf16.msra.mxu0 %v2762
  %2828 = vmatprep.subr.bf16.mxu0 %v2765
  %2829 = vmatpush1.bf16.msra.mxu0 %v2764
  %2830 = vmatprep.subr.bf16.mxu0 %v2767
  %2831 = vmatpush1.bf16.msra.mxu0 %v2766
  %2832 = vmatprep.subr.bf16.mxu0 %v2769
  %2833 = vmatpush1.bf16.msra.mxu0 %v2768
  %2834 = vmatprep.subr.bf16.mxu0 %v2771
  %2835 = vmatpush1.bf16.msra.mxu0 %v2770
  %2836 = vmatprep.subr.bf16.mxu0 %v2773
  %2837 = vmatpush1.bf16.msra.mxu0 %v2772
  %2838 = vmatprep.subr.bf16.mxu0 %v2775
  %2839 = vmatpush1.bf16.msra.mxu0 %v2774
  %2840 = vmatprep.subr.bf16.mxu0 %v2777
  %2841 = vmatpush1.bf16.msra.mxu0 %v2776
  %2842 = vmatprep.subr.bf16.mxu0 %v2779
  %2843 = vmatpush1.bf16.msra.mxu0 %v2778
  %2844 = vmatprep.subr.bf16.mxu0 %v2781
  %2845 = vmatpush1.bf16.msra.mxu0 %v2780
  %2846 = vmatprep.subr.bf16.mxu0 %v2783
  %2847 = vmatpush1.bf16.msra.mxu0 %v2782
  %2848 = vmatprep.subr.bf16.mxu0 %v2785
  %2849 = vmatpush1.bf16.msra.mxu0 %v2784
  %2850 = vmatprep.subr.bf16.mxu0 %v2787
  %2851 = vmatpush1.bf16.msra.mxu0 %v2786
  %2852 = vmatprep.subr.bf16.mxu0 %v2789
  %2853 = vmatpush1.bf16.msra.mxu0 %v2788
  %2854 = vmatprep.subr.bf16.mxu0 %v2791
  %2855 = vmatpush1.bf16.msra.mxu0 %v2790
  %2856 = vmatprep.subr.bf16.mxu0 %v2793
  %2857 = vmatpush1.bf16.msra.mxu0 %v2792
  %2858 = vmatprep.mubr.bf16.mxu0 %v2063
  %2859 = vmatmul.mubr.bf16.gmra.mrb[0].mxu0 %v2062
  %v2860 = vpop.f32.mrb[0].mxu0
  %v2861 = vadd.f32 0.0, %v2860
  %v2862 = vpop.f32.mrb[0].mxu0
  %v2863 = vadd.f32 0.0, %v2862
  %v2864 = vpop.f32.mrb[0].mxu0
  %v2865 = vadd.f32 0.0, %v2864
  %v2866 = vpop.f32.mrb[0].mxu0
  %v2867 = vadd.f32 0.0, %v2866
  %2868 = vmatprep.mubr.bf16.mxu0 %v2065
  %2869 = vmatmul.mubr.bf16.gmra.mrb[0].mxu0 %v2064
  %v2870 = vpop.f32.mrb[0].mxu0
  %v2871 = vadd.f32 0.0, %v2870
  %v2872 = vpop.f32.mrb[0].mxu0
  %v2873 = vadd.f32 0.0, %v2872
  %v2874 = vpop.f32.mrb[0].mxu0
  %v2875 = vadd.f32 0.0, %v2874
  %v2876 = vpop.f32.mrb[0].mxu0
  %v2877 = vadd.f32 0.0, %v2876
  %2878 = vmatprep.mubr.bf16.mxu0 %v2067
  %2879 = vmatmul.mubr.bf16.gmra.mrb[0].mxu0 %v2066
  %v2880 = vpop.f32.mrb[0].mxu0
  %v2881 = vadd.f32 0.0, %v2880
  %v2882 = vpop.f32.mrb[0].mxu0
  %v2883 = vadd.f32 0.0, %v2882
  %v2884 = vpop.f32.mrb[0].mxu0
  %v2885 = vadd.f32 0.0, %v2884
  %v2886 = vpop.f32.mrb[0].mxu0
  %v2887 = vadd.f32 0.0, %v2886
  %2888 = vmatprep.mubr.bf16.mxu0 %v2069
  %2889 = vmatmul.mubr.bf16.gmra.mrb[0].mxu0 %v2068
  %v2890 = vpop.f32.mrb[0].mxu0
  %v2891 = vadd.f32 0.0, %v2890
  %v2892 = vpop.f32.mrb[0].mxu0
  %v2893 = vadd.f32 0.0, %v2892
  %v2894 = vpop.f32.mrb[0].mxu0
  %v2895 = vadd.f32 0.0, %v2894
  %v2896 = vpop.f32.mrb[0].mxu0
  %v2897 = vadd.f32 0.0, %v2896
  %2898 = vmatprep.mubr.bf16.mxu0 %v2632
  %2899 = vmatmul.mubr.bf16.gmra.mrb[0].mxu0 %v2631
  %v2900 = vpop.f32.mrb[0].mxu0
  %v2901 = vadd.f32 0.0, %v2900
  %v2902 = vpop.f32.mrb[0].mxu0
  %v2903 = vadd.f32 0.0, %v2902
  %v2904 = vpop.f32.mrb[0].mxu0
  %v2905 = vadd.f32 0.0, %v2904
  %v2906 = vpop.f32.mrb[0].mxu0
  %v2907 = vadd.f32 0.0, %v2906
  %2908 = vdwg.mxu0
  %v2909 = vadd.f32 %v2583, %v2861
  %v2910 = vadd.f32 %v2585, %v2863
  %v2911 = vadd.f32 %v2587, %v2865
  %v2912 = vadd.f32 %v2589, %v2867
  %v2913 = vadd.f32 %v2593, %v2871
  %v2914 = vadd.f32 %v2595, %v2873
  %v2915 = vadd.f32 %v2597, %v2875
  %v2916 = vadd.f32 %v2599, %v2877
  %v2917 = vadd.f32 %v2603, %v2881
  %v2918 = vadd.f32 %v2605, %v2883
  %v2919 = vadd.f32 %v2607, %v2885
  %v2920 = vadd.f32 %v2609, %v2887
  %v2921 = vadd.f32 %v2613, %v2891
  %v2922 = vadd.f32 %v2615, %v2893
  %v2923 = vadd.f32 %v2617, %v2895
  %v2924 = vadd.f32 %v2619, %v2897
  %v2925 = vadd.f32 %v2623, %v2901
  %v2926 = vadd.f32 %v2625, %v2903
  %v2927 = vadd.f32 %v2627, %v2905
  %v2928 = vadd.f32 %v2629, %v2907
  %v2929 = vpack.c.bf16 %v2056, %v2054
  %v2930 = vpack.c.bf16 %v2057, %v2055
  %s2931 = scalar_lea.vmem %s3, 768
  %v2932 = vld [vmem:[%s2931] sm:$0xff]
  %v2933 = vld [vmem:[%s2931 + $0x8] sm:$0xff]
  %v2934 = vld [vmem:[%s2931 + $0x10] sm:$0xff]
  %v2935 = vld [vmem:[%s2931 + $0x18] sm:$0xff]
  %v2936 = vld [vmem:[%s2931 + $0x20] sm:$0xff]
  %v2937 = vld [vmem:[%s2931 + $0x28] sm:$0xff]
  %v2938 = vld [vmem:[%s2931 + $0x30] sm:$0xff]
  %v2939 = vld [vmem:[%s2931 + $0x38] sm:$0xff]
  %v2940 = vld [vmem:[%s2931 + $0x40] sm:$0xff]
  %v2941 = vld [vmem:[%s2931 + $0x48] sm:$0xff]
  %v2942 = vld [vmem:[%s2931 + $0x50] sm:$0xff]
  %v2943 = vld [vmem:[%s2931 + $0x58] sm:$0xff]
  %v2944 = vld [vmem:[%s2931 + $0x60] sm:$0xff]
  %v2945 = vld [vmem:[%s2931 + $0x68] sm:$0xff]
  %v2946 = vld [vmem:[%s2931 + $0x70] sm:$0xff]
  %v2947 = vld [vmem:[%s2931 + $0x78] sm:$0xff]
  %v2948 = vld [vmem:[%s2931 + $0x80] sm:$0xff]
  %v2949 = vld [vmem:[%s2931 + $0x88] sm:$0xff]
  %v2950 = vld [vmem:[%s2931 + $0x90] sm:$0xff]
  %v2951 = vld [vmem:[%s2931 + $0x98] sm:$0xff]
  %v2952 = vld [vmem:[%s2931 + $0xa0] sm:$0xff]
  %v2953 = vld [vmem:[%s2931 + $0xa8] sm:$0xff]
  %v2954 = vld [vmem:[%s2931 + $0xb0] sm:$0xff]
  %v2955 = vld [vmem:[%s2931 + $0xb8] sm:$0xff]
  %v2956 = vld [vmem:[%s2931 + $0xc0] sm:$0xff]
  %v2957 = vld [vmem:[%s2931 + $0xc8] sm:$0xff]
  %v2958 = vld [vmem:[%s2931 + $0xd0] sm:$0xff]
  %v2959 = vld [vmem:[%s2931 + $0xd8] sm:$0xff]
  %v2960 = vld [vmem:[%s2931 + $0xe0] sm:$0xff]
  %v2961 = vld [vmem:[%s2931 + $0xe8] sm:$0xff]
  %v2962 = vld [vmem:[%s2931 + $0xf0] sm:$0xff]
  %v2963 = vld [vmem:[%s2931 + $0xf8] sm:$0xff]
  %v2996 = vunpack.c.l.b16 %v2932
  %v2997 = vunpack.c.h.b16 %v2932
  %v2998 = vunpack.c.l.b16 %v2933
  %v2999 = vunpack.c.h.b16 %v2933
  %v3000 = vunpack.c.l.b16 %v2934
  %v3001 = vunpack.c.h.b16 %v2934
  %v3002 = vunpack.c.l.b16 %v2935
  %v3003 = vunpack.c.h.b16 %v2935
  %v3004 = vunpack.c.l.b16 %v2936
  %v3005 = vunpack.c.h.b16 %v2936
  %v3006 = vunpack.c.l.b16 %v2937
  %v3007 = vunpack.c.h.b16 %v2937
  %v3008 = vunpack.c.l.b16 %v2938
  %v3009 = vunpack.c.h.b16 %v2938
  %v3010 = vunpack.c.l.b16 %v2939
  %v3011 = vunpack.c.h.b16 %v2939
  %v3012 = vunpack.c.l.b16 %v2940
  %v3013 = vunpack.c.h.b16 %v2940
  %v3014 = vunpack.c.l.b16 %v2941
  %v3015 = vunpack.c.h.b16 %v2941
  %v3016 = vunpack.c.l.b16 %v2942
  %v3017 = vunpack.c.h.b16 %v2942
  %v3018 = vunpack.c.l.b16 %v2943
  %v3019 = vunpack.c.h.b16 %v2943
  %v3020 = vunpack.c.l.b16 %v2944
  %v3021 = vunpack.c.h.b16 %v2944
  %v3022 = vunpack.c.l.b16 %v2945
  %v3023 = vunpack.c.h.b16 %v2945
  %v3024 = vunpack.c.l.b16 %v2946
  %v3025 = vunpack.c.h.b16 %v2946
  %v3026 = vunpack.c.l.b16 %v2947
  %v3027 = vunpack.c.h.b16 %v2947
  %v3028 = vunpack.c.l.b16 %v2948
  %v3029 = vunpack.c.h.b16 %v2948
  %v3030 = vunpack.c.l.b16 %v2949
  %v3031 = vunpack.c.h.b16 %v2949
  %v3032 = vunpack.c.l.b16 %v2950
  %v3033 = vunpack.c.h.b16 %v2950
  %v3034 = vunpack.c.l.b16 %v2951
  %v3035 = vunpack.c.h.b16 %v2951
  %v3036 = vunpack.c.l.b16 %v2952
  %v3037 = vunpack.c.h.b16 %v2952
  %v3038 = vunpack.c.l.b16 %v2953
  %v3039 = vunpack.c.h.b16 %v2953
  %v3040 = vunpack.c.l.b16 %v2954
  %v3041 = vunpack.c.h.b16 %v2954
  %v3042 = vunpack.c.l.b16 %v2955
  %v3043 = vunpack.c.h.b16 %v2955
  %v3044 = vunpack.c.l.b16 %v2956
  %v3045 = vunpack.c.h.b16 %v2956
  %v3046 = vunpack.c.l.b16 %v2957
  %v3047 = vunpack.c.h.b16 %v2957
  %v3048 = vunpack.c.l.b16 %v2958
  %v3049 = vunpack.c.h.b16 %v2958
  %v3050 = vunpack.c.l.b16 %v2959
  %v3051 = vunpack.c.h.b16 %v2959
  %v3052 = vunpack.c.l.b16 %v2960
  %v3053 = vunpack.c.h.b16 %v2960
  %v3054 = vunpack.c.l.b16 %v2961
  %v3055 = vunpack.c.h.b16 %v2961
  %v3056 = vunpack.c.l.b16 %v2962
  %v3057 = vunpack.c.h.b16 %v2962
  %v3058 = vunpack.c.l.b16 %v2963
  %v3059 = vunpack.c.h.b16 %v2963
  %v3060 = vpack.c.b16 %v2998, %v2996
  %v3061 = vpack.c.b16 %v2999, %v2997
  %v3062 = vpack.c.b16 %v3002, %v3000
  %v3063 = vpack.c.b16 %v3003, %v3001
  %v3064 = vpack.c.b16 %v3006, %v3004
  %v3065 = vpack.c.b16 %v3007, %v3005
  %v3066 = vpack.c.b16 %v3010, %v3008
  %v3067 = vpack.c.b16 %v3011, %v3009
  %v3068 = vpack.c.b16 %v3014, %v3012
  %v3069 = vpack.c.b16 %v3015, %v3013
  %v3070 = vpack.c.b16 %v3018, %v3016
  %v3071 = vpack.c.b16 %v3019, %v3017
  %v3072 = vpack.c.b16 %v3022, %v3020
  %v3073 = vpack.c.b16 %v3023, %v3021
  %v3074 = vpack.c.b16 %v3026, %v3024
  %v3075 = vpack.c.b16 %v3027, %v3025
  %v3076 = vpack.c.b16 %v3030, %v3028
  %v3077 = vpack.c.b16 %v3031, %v3029
  %v3078 = vpack.c.b16 %v3034, %v3032
  %v3079 = vpack.c.b16 %v3035, %v3033
  %v3080 = vpack.c.b16 %v3038, %v3036
  %v3081 = vpack.c.b16 %v3039, %v3037
  %v3082 = vpack.c.b16 %v3042, %v3040
  %v3083 = vpack.c.b16 %v3043, %v3041
  %v3084 = vpack.c.b16 %v3046, %v3044
  %v3085 = vpack.c.b16 %v3047, %v3045
  %v3086 = vpack.c.b16 %v3050, %v3048
  %v3087 = vpack.c.b16 %v3051, %v3049
  %v3088 = vpack.c.b16 %v3054, %v3052
  %v3089 = vpack.c.b16 %v3055, %v3053
  %v3090 = vpack.c.b16 %v3058, %v3056
  %v3091 = vpack.c.b16 %v3059, %v3057
  %3124 = vmatprep.subr.bf16.mxu0 %v3061
  %3125 = vmatpush1.bf16.msra.mxu0 %v3060
  %3126 = vmatprep.subr.bf16.mxu0 %v3063
  %3127 = vmatpush1.bf16.msra.mxu0 %v3062
  %3128 = vmatprep.subr.bf16.mxu0 %v3065
  %3129 = vmatpush1.bf16.msra.mxu0 %v3064
  %3130 = vmatprep.subr.bf16.mxu0 %v3067
  %3131 = vmatpush1.bf16.msra.mxu0 %v3066
  %3132 = vmatprep.subr.bf16.mxu0 %v3069
  %3133 = vmatpush1.bf16.msra.mxu0 %v3068
  %3134 = vmatprep.subr.bf16.mxu0 %v3071
  %3135 = vmatpush1.bf16.msra.mxu0 %v3070
  %3136 = vmatprep.subr.bf16.mxu0 %v3073
  %3137 = vmatpush1.bf16.msra.mxu0 %v3072
  %3138 = vmatprep.subr.bf16.mxu0 %v3075
  %3139 = vmatpush1.bf16.msra.mxu0 %v3074
  %3140 = vmatprep.subr.bf16.mxu0 %v3077
  %3141 = vmatpush1.bf16.msra.mxu0 %v3076
  %3142 = vmatprep.subr.bf16.mxu0 %v3079
  %3143 = vmatpush1.bf16.msra.mxu0 %v3078
  %3144 = vmatprep.subr.bf16.mxu0 %v3081
  %3145 = vmatpush1.bf16.msra.mxu0 %v3080
  %3146 = vmatprep.subr.bf16.mxu0 %v3083
  %3147 = vmatpush1.bf16.msra.mxu0 %v3082
  %3148 = vmatprep.subr.bf16.mxu0 %v3085
  %3149 = vmatpush1.bf16.msra.mxu0 %v3084
  %3150 = vmatprep.subr.bf16.mxu0 %v3087
  %3151 = vmatpush1.bf16.msra.mxu0 %v3086
  %3152 = vmatprep.subr.bf16.mxu0 %v3089
  %3153 = vmatpush1.bf16.msra.mxu0 %v3088
  %3154 = vmatprep.subr.bf16.mxu0 %v3091
  %3155 = vmatpush1.bf16.msra.mxu0 %v3090
  %3156 = vmatprep.mubr.bf16.mxu0 %v2105
  %3157 = vmatmul.mubr.bf16.gmra.mrb[0].mxu0 %v2104
  %v3158 = vpop.f32.mrb[0].mxu0
  %v3159 = vadd.f32 0.0, %v3158
  %v3160 = vpop.f32.mrb[0].mxu0
  %v3161 = vadd.f32 0.0, %v3160
  %v3162 = vpop.f32.mrb[0].mxu0
  %v3163 = vadd.f32 0.0, %v3162
  %v3164 = vpop.f32.mrb[0].mxu0
  %v3165 = vadd.f32 0.0, %v3164
  %3166 = vmatprep.mubr.bf16.mxu0 %v2107
  %3167 = vmatmul.mubr.bf16.gmra.mrb[0].mxu0 %v2106
  %v3168 = vpop.f32.mrb[0].mxu0
  %v3169 = vadd.f32 0.0, %v3168
  %v3170 = vpop.f32.mrb[0].mxu0
  %v3171 = vadd.f32 0.0, %v3170
  %v3172 = vpop.f32.mrb[0].mxu0
  %v3173 = vadd.f32 0.0, %v3172
  %v3174 = vpop.f32.mrb[0].mxu0
  %v3175 = vadd.f32 0.0, %v3174
  %3176 = vmatprep.mubr.bf16.mxu0 %v2109
  %3177 = vmatmul.mubr.bf16.gmra.mrb[0].mxu0 %v2108
  %v3178 = vpop.f32.mrb[0].mxu0
  %v3179 = vadd.f32 0.0, %v3178
  %v3180 = vpop.f32.mrb[0].mxu0
  %v3181 = vadd.f32 0.0, %v3180
  %v3182 = vpop.f32.mrb[0].mxu0
  %v3183 = vadd.f32 0.0, %v3182
  %v3184 = vpop.f32.mrb[0].mxu0
  %v3185 = vadd.f32 0.0, %v3184
  %3186 = vmatprep.mubr.bf16.mxu0 %v2111
  %3187 = vmatmul.mubr.bf16.gmra.mrb[0].mxu0 %v2110
  %v3188 = vpop.f32.mrb[0].mxu0
  %v3189 = vadd.f32 0.0, %v3188
  %v3190 = vpop.f32.mrb[0].mxu0
  %v3191 = vadd.f32 0.0, %v3190
  %v3192 = vpop.f32.mrb[0].mxu0
  %v3193 = vadd.f32 0.0, %v3192
  %v3194 = vpop.f32.mrb[0].mxu0
  %v3195 = vadd.f32 0.0, %v3194
  %3196 = vmatprep.mubr.bf16.mxu0 %v2930
  %3197 = vmatmul.mubr.bf16.gmra.mrb[0].mxu0 %v2929
  %v3198 = vpop.f32.mrb[0].mxu0
  %v3199 = vadd.f32 0.0, %v3198
  %v3200 = vpop.f32.mrb[0].mxu0
  %v3201 = vadd.f32 0.0, %v3200
  %v3202 = vpop.f32.mrb[0].mxu0
  %v3203 = vadd.f32 0.0, %v3202
  %v3204 = vpop.f32.mrb[0].mxu0
  %v3205 = vadd.f32 0.0, %v3204
  %3206 = vdwg.mxu0
  %v3207 = vadd.f32 %v2909, %v3159
  %v3208 = vadd.f32 %v2910, %v3161
  %v3209 = vadd.f32 %v2911, %v3163
  %v3210 = vadd.f32 %v2912, %v3165
  %v3211 = vadd.f32 %v2913, %v3169
  %v3212 = vadd.f32 %v2914, %v3171
  %v3213 = vadd.f32 %v2915, %v3173
  %v3214 = vadd.f32 %v2916, %v3175
  %v3215 = vadd.f32 %v2917, %v3179
  %v3216 = vadd.f32 %v2918, %v3181
  %v3217 = vadd.f32 %v2919, %v3183
  %v3218 = vadd.f32 %v2920, %v3185
  %v3219 = vadd.f32 %v2921, %v3189
  %v3220 = vadd.f32 %v2922, %v3191
  %v3221 = vadd.f32 %v2923, %v3193
  %v3222 = vadd.f32 %v2924, %v3195
  %v3223 = vadd.f32 %v2925, %v3199
  %v3224 = vadd.f32 %v2926, %v3201
  %v3225 = vadd.f32 %v2927, %v3203
  %v3226 = vadd.f32 %v2928, %v3205
  %v3227 = vpack.c.bf16 %v2058, %v2056
  %v3228 = vpack.c.bf16 %v2059, %v2057
  %s3229 = scalar_lea.vmem %s3, 1024
  %v3230 = vld [vmem:[%s3229] sm:$0xff]
  %v3231 = vld [vmem:[%s3229 + $0x8] sm:$0xff]
  %v3232 = vld [vmem:[%s3229 + $0x10] sm:$0xff]
  %v3233 = vld [vmem:[%s3229 + $0x18] sm:$0xff]
  %v3234 = vld [vmem:[%s3229 + $0x20] sm:$0xff]
  %v3235 = vld [vmem:[%s3229 + $0x28] sm:$0xff]
  %v3236 = vld [vmem:[%s3229 + $0x30] sm:$0xff]
  %v3237 = vld [vmem:[%s3229 + $0x38] sm:$0xff]
  %v3238 = vld [vmem:[%s3229 + $0x40] sm:$0xff]
  %v3239 = vld [vmem:[%s3229 + $0x48] sm:$0xff]
  %v3240 = vld [vmem:[%s3229 + $0x50] sm:$0xff]
  %v3241 = vld [vmem:[%s3229 + $0x58] sm:$0xff]
  %v3242 = vld [vmem:[%s3229 + $0x60] sm:$0xff]
  %v3243 = vld [vmem:[%s3229 + $0x68] sm:$0xff]
  %v3244 = vld [vmem:[%s3229 + $0x70] sm:$0xff]
  %v3245 = vld [vmem:[%s3229 + $0x78] sm:$0xff]
  %v3246 = vld [vmem:[%s3229 + $0x80] sm:$0xff]
  %v3247 = vld [vmem:[%s3229 + $0x88] sm:$0xff]
  %v3248 = vld [vmem:[%s3229 + $0x90] sm:$0xff]
  %v3249 = vld [vmem:[%s3229 + $0x98] sm:$0xff]
  %v3250 = vld [vmem:[%s3229 + $0xa0] sm:$0xff]
  %v3251 = vld [vmem:[%s3229 + $0xa8] sm:$0xff]
  %v3252 = vld [vmem:[%s3229 + $0xb0] sm:$0xff]
  %v3253 = vld [vmem:[%s3229 + $0xb8] sm:$0xff]
  %v3254 = vld [vmem:[%s3229 + $0xc0] sm:$0xff]
  %v3255 = vld [vmem:[%s3229 + $0xc8] sm:$0xff]
  %v3256 = vld [vmem:[%s3229 + $0xd0] sm:$0xff]
  %v3257 = vld [vmem:[%s3229 + $0xd8] sm:$0xff]
  %v3258 = vld [vmem:[%s3229 + $0xe0] sm:$0xff]
  %v3259 = vld [vmem:[%s3229 + $0xe8] sm:$0xff]
  %v3260 = vld [vmem:[%s3229 + $0xf0] sm:$0xff]
  %v3261 = vld [vmem:[%s3229 + $0xf8] sm:$0xff]
  %v3294 = vunpack.c.l.b16 %v3230
  %v3295 = vunpack.c.h.b16 %v3230
  %v3296 = vunpack.c.l.b16 %v3231
  %v3297 = vunpack.c.h.b16 %v3231
  %v3298 = vunpack.c.l.b16 %v3232
  %v3299 = vunpack.c.h.b16 %v3232
  %v3300 = vunpack.c.l.b16 %v3233
  %v3301 = vunpack.c.h.b16 %v3233
  %v3302 = vunpack.c.l.b16 %v3234
  %v3303 = vunpack.c.h.b16 %v3234
  %v3304 = vunpack.c.l.b16 %v3235
  %v3305 = vunpack.c.h.b16 %v3235
  %v3306 = vunpack.c.l.b16 %v3236
  %v3307 = vunpack.c.h.b16 %v3236
  %v3308 = vunpack.c.l.b16 %v3237
  %v3309 = vunpack.c.h.b16 %v3237
  %v3310 = vunpack.c.l.b16 %v3238
  %v3311 = vunpack.c.h.b16 %v3238
  %v3312 = vunpack.c.l.b16 %v3239
  %v3313 = vunpack.c.h.b16 %v3239
  %v3314 = vunpack.c.l.b16 %v3240
  %v3315 = vunpack.c.h.b16 %v3240
  %v3316 = vunpack.c.l.b16 %v3241
  %v3317 = vunpack.c.h.b16 %v3241
  %v3318 = vunpack.c.l.b16 %v3242
  %v3319 = vunpack.c.h.b16 %v3242
  %v3320 = vunpack.c.l.b16 %v3243
  %v3321 = vunpack.c.h.b16 %v3243
  %v3322 = vunpack.c.l.b16 %v3244
  %v3323 = vunpack.c.h.b16 %v3244
  %v3324 = vunpack.c.l.b16 %v3245
  %v3325 = vunpack.c.h.b16 %v3245
  %v3326 = vunpack.c.l.b16 %v3246
  %v3327 = vunpack.c.h.b16 %v3246
  %v3328 = vunpack.c.l.b16 %v3247
  %v3329 = vunpack.c.h.b16 %v3247
  %v3330 = vunpack.c.l.b16 %v3248
  %v3331 = vunpack.c.h.b16 %v3248
  %v3332 = vunpack.c.l.b16 %v3249
  %v3333 = vunpack.c.h.b16 %v3249
  %v3334 = vunpack.c.l.b16 %v3250
  %v3335 = vunpack.c.h.b16 %v3250
  %v3336 = vunpack.c.l.b16 %v3251
  %v3337 = vunpack.c.h.b16 %v3251
  %v3338 = vunpack.c.l.b16 %v3252
  %v3339 = vunpack.c.h.b16 %v3252
  %v3340 = vunpack.c.l.b16 %v3253
  %v3341 = vunpack.c.h.b16 %v3253
  %v3342 = vunpack.c.l.b16 %v3254
  %v3343 = vunpack.c.h.b16 %v3254
  %v3344 = vunpack.c.l.b16 %v3255
  %v3345 = vunpack.c.h.b16 %v3255
  %v3346 = vunpack.c.l.b16 %v3256
  %v3347 = vunpack.c.h.b16 %v3256
  %v3348 = vunpack.c.l.b16 %v3257
  %v3349 = vunpack.c.h.b16 %v3257
  %v3350 = vunpack.c.l.b16 %v3258
  %v3351 = vunpack.c.h.b16 %v3258
  %v3352 = vunpack.c.l.b16 %v3259
  %v3353 = vunpack.c.h.b16 %v3259
  %v3354 = vunpack.c.l.b16 %v3260
  %v3355 = vunpack.c.h.b16 %v3260
  %v3356 = vunpack.c.l.b16 %v3261
  %v3357 = vunpack.c.h.b16 %v3261
  %v3358 = vpack.c.b16 %v3296, %v3294
  %v3359 = vpack.c.b16 %v3297, %v3295
  %v3360 = vpack.c.b16 %v3300, %v3298
  %v3361 = vpack.c.b16 %v3301, %v3299
  %v3362 = vpack.c.b16 %v3304, %v3302
  %v3363 = vpack.c.b16 %v3305, %v3303
  %v3364 = vpack.c.b16 %v3308, %v3306
  %v3365 = vpack.c.b16 %v3309, %v3307
  %v3366 = vpack.c.b16 %v3312, %v3310
  %v3367 = vpack.c.b16 %v3313, %v3311
  %v3368 = vpack.c.b16 %v3316, %v3314
  %v3369 = vpack.c.b16 %v3317, %v3315
  %v3370 = vpack.c.b16 %v3320, %v3318
  %v3371 = vpack.c.b16 %v3321, %v3319
  %v3372 = vpack.c.b16 %v3324, %v3322
  %v3373 = vpack.c.b16 %v3325, %v3323
  %v3374 = vpack.c.b16 %v3328, %v3326
  %v3375 = vpack.c.b16 %v3329, %v3327
  %v3376 = vpack.c.b16 %v3332, %v3330
  %v3377 = vpack.c.b16 %v3333, %v3331
  %v3378 = vpack.c.b16 %v3336, %v3334
  %v3379 = vpack.c.b16 %v3337, %v3335
  %v3380 = vpack.c.b16 %v3340, %v3338
  %v3381 = vpack.c.b16 %v3341, %v3339
  %v3382 = vpack.c.b16 %v3344, %v3342
  %v3383 = vpack.c.b16 %v3345, %v3343
  %v3384 = vpack.c.b16 %v3348, %v3346
  %v3385 = vpack.c.b16 %v3349, %v3347
  %v3386 = vpack.c.b16 %v3352, %v3350
  %v3387 = vpack.c.b16 %v3353, %v3351
  %v3388 = vpack.c.b16 %v3356, %v3354
  %v3389 = vpack.c.b16 %v3357, %v3355
  %3422 = vmatprep.subr.bf16.mxu0 %v3359
  %3423 = vmatpush1.bf16.msra.mxu0 %v3358
  %3424 = vmatprep.subr.bf16.mxu0 %v3361
  %3425 = vmatpush1.bf16.msra.mxu0 %v3360
  %3426 = vmatprep.subr.bf16.mxu0 %v3363
  %3427 = vmatpush1.bf16.msra.mxu0 %v3362
  %3428 = vmatprep.subr.bf16.mxu0 %v3365
  %3429 = vmatpush1.bf16.msra.mxu0 %v3364
  %3430 = vmatprep.subr.bf16.mxu0 %v3367
  %3431 = vmatpush1.bf16.msra.mxu0 %v3366
  %3432 = vmatprep.subr.bf16.mxu0 %v3369
  %3433 = vmatpush1.bf16.msra.mxu0 %v3368
  %3434 = vmatprep.subr.bf16.mxu0 %v3371
  %3435 = vmatpush1.bf16.msra.mxu0 %v3370
  %3436 = vmatprep.subr.bf16.mxu0 %v3373
  %3437 = vmatpush1.bf16.msra.mxu0 %v3372
  %3438 = vmatprep.subr.bf16.mxu0 %v3375
  %3439 = vmatpush1.bf16.msra.mxu0 %v3374
  %3440 = vmatprep.subr.bf16.mxu0 %v3377
  %3441 = vmatpush1.bf16.msra.mxu0 %v3376
  %3442 = vmatprep.subr.bf16.mxu0 %v3379
  %3443 = vmatpush1.bf16.msra.mxu0 %v3378
  %3444 = vmatprep.subr.bf16.mxu0 %v3381
  %3445 = vmatpush1.bf16.msra.mxu0 %v3380
  %3446 = vmatprep.subr.bf16.mxu0 %v3383
  %3447 = vmatpush1.bf16.msra.mxu0 %v3382
  %3448 = vmatprep.subr.bf16.mxu0 %v3385
  %3449 = vmatpush1.bf16.msra.mxu0 %v3384
  %3450 = vmatprep.subr.bf16.mxu0 %v3387
  %3451 = vmatpush1.bf16.msra.mxu0 %v3386
  %3452 = vmatprep.subr.bf16.mxu0 %v3389
  %3453 = vmatpush1.bf16.msra.mxu0 %v3388
  %3454 = vmatprep.mubr.bf16.mxu0 %v2065
  %3455 = vmatmul.mubr.bf16.gmra.mrb[0].mxu0 %v2064
  %v3456 = vpop.f32.mrb[0].mxu0
  %v3457 = vadd.f32 0.0, %v3456
  %v3458 = vpop.f32.mrb[0].mxu0
  %v3459 = vadd.f32 0.0, %v3458
  %v3460 = vpop.f32.mrb[0].mxu0
  %v3461 = vadd.f32 0.0, %v3460
  %v3462 = vpop.f32.mrb[0].mxu0
  %v3463 = vadd.f32 0.0, %v3462
  %3464 = vmatprep.mubr.bf16.mxu0 %v2067
  %3465 = vmatmul.mubr.bf16.gmra.mrb[0].mxu0 %v2066
  %v3466 = vpop.f32.mrb[0].mxu0
  %v3467 = vadd.f32 0.0, %v3466
  %v3468 = vpop.f32.mrb[0].mxu0
  %v3469 = vadd.f32 0.0, %v3468
  %v3470 = vpop.f32.mrb[0].mxu0
  %v3471 = vadd.f32 0.0, %v3470
  %v3472 = vpop.f32.mrb[0].mxu0
  %v3473 = vadd.f32 0.0, %v3472
  %3474 = vmatprep.mubr.bf16.mxu0 %v2069
  %3475 = vmatmul.mubr.bf16.gmra.mrb[0].mxu0 %v2068
  %v3476 = vpop.f32.mrb[0].mxu0
  %v3477 = vadd.f32 0.0, %v3476
  %v3478 = vpop.f32.mrb[0].mxu0
  %v3479 = vadd.f32 0.0, %v3478
  %v3480 = vpop.f32.mrb[0].mxu0
  %v3481 = vadd.f32 0.0, %v3480
  %v3482 = vpop.f32.mrb[0].mxu0
  %v3483 = vadd.f32 0.0, %v3482
  %3484 = vmatprep.mubr.bf16.mxu0 %v2632
  %3485 = vmatmul.mubr.bf16.gmra.mrb[0].mxu0 %v2631
  %v3486 = vpop.f32.mrb[0].mxu0
  %v3487 = vadd.f32 0.0, %v3486
  %v3488 = vpop.f32.mrb[0].mxu0
  %v3489 = vadd.f32 0.0, %v3488
  %v3490 = vpop.f32.mrb[0].mxu0
  %v3491 = vadd.f32 0.0, %v3490
  %v3492 = vpop.f32.mrb[0].mxu0
  %v3493 = vadd.f32 0.0, %v3492
  %3494 = vmatprep.mubr.bf16.mxu0 %v3228
  %3495 = vmatmul.mubr.bf16.gmra.mrb[0].mxu0 %v3227
  %v3496 = vpop.f32.mrb[0].mxu0
  %v3497 = vadd.f32 0.0, %v3496
  %v3498 = vpop.f32.mrb[0].mxu0
  %v3499 = vadd.f32 0.0, %v3498
  %v3500 = vpop.f32.mrb[0].mxu0
  %v3501 = vadd.f32 0.0, %v3500
  %v3502 = vpop.f32.mrb[0].mxu0
  %v3503 = vadd.f32 0.0, %v3502
  %3504 = vdwg.mxu0
  %v3505 = vadd.f32 %v3207, %v3457
  %v3506 = vadd.f32 %v3208, %v3459
  %v3507 = vadd.f32 %v3209, %v3461
  %v3508 = vadd.f32 %v3210, %v3463
  %v3509 = vadd.f32 %v3211, %v3467
  %v3510 = vadd.f32 %v3212, %v3469
  %v3511 = vadd.f32 %v3213, %v3471
  %v3512 = vadd.f32 %v3214, %v3473
  %v3513 = vadd.f32 %v3215, %v3477
  %v3514 = vadd.f32 %v3216, %v3479
  %v3515 = vadd.f32 %v3217, %v3481
  %v3516 = vadd.f32 %v3218, %v3483
  %v3517 = vadd.f32 %v3219, %v3487
  %v3518 = vadd.f32 %v3220, %v3489
  %v3519 = vadd.f32 %v3221, %v3491
  %v3520 = vadd.f32 %v3222, %v3493
  %v3521 = vadd.f32 %v3223, %v3497
  %v3522 = vadd.f32 %v3224, %v3499
  %v3523 = vadd.f32 %v3225, %v3501
  %v3524 = vadd.f32 %v3226, %v3503
  %v3525 = vld [vmem:[%s4] sm:$0x3]
  %v3527 = vlaneseq
  %v3528 = vshrl.u32 %v3527, 7
  %v3529 = vsub.s32 0, %v3528
  %v3530 = vrot.slane %v3525, %v3529
  %v3531 = vlaneseq
  %v3532 = vshrl.u32 %v3531, 7
  %v3533 = vsub.s32 1, %v3532
  %v3534 = vrot.slane %v3525, %v3533
  %v3537 = vadd.f32 %v3505, %v3530
  %v3538 = vadd.f32 %v3506, %v3534
  %v3539 = vadd.f32 %v3507, %v3530
  %v3540 = vadd.f32 %v3508, %v3534
  %v3541 = vadd.f32 %v3509, %v3530
  %v3542 = vadd.f32 %v3510, %v3534
  %v3543 = vadd.f32 %v3511, %v3530
  %v3544 = vadd.f32 %v3512, %v3534
  %v3545 = vadd.f32 %v3513, %v3530
  %v3546 = vadd.f32 %v3514, %v3534
  %v3547 = vadd.f32 %v3515, %v3530
  %v3548 = vadd.f32 %v3516, %v3534
  %v3549 = vadd.f32 %v3517, %v3530
  %v3550 = vadd.f32 %v3518, %v3534
  %v3551 = vadd.f32 %v3519, %v3530
  %v3552 = vadd.f32 %v3520, %v3534
  %v3553 = vadd.f32 %v3521, %v3530
  %v3554 = vadd.f32 %v3522, %v3534
  %v3555 = vadd.f32 %v3523, %v3530
  %v3556 = vadd.f32 %v3524, %v3534
  %v3557 = vmax.f32 %v3537, 0.0
  %v3558 = vmax.f32 %v3538, 0.0
  %v3559 = vmax.f32 %v3539, 0.0
  %v3560 = vmax.f32 %v3540, 0.0
  %v3561 = vmax.f32 %v3541, 0.0
  %v3562 = vmax.f32 %v3542, 0.0
  %v3563 = vmax.f32 %v3543, 0.0
  %v3564 = vmax.f32 %v3544, 0.0
  %v3565 = vmax.f32 %v3545, 0.0
  %v3566 = vmax.f32 %v3546, 0.0
  %v3567 = vmax.f32 %v3547, 0.0
  %v3568 = vmax.f32 %v3548, 0.0
  %v3569 = vmax.f32 %v3549, 0.0
  %v3570 = vmax.f32 %v3550, 0.0
  %v3571 = vmax.f32 %v3551, 0.0
  %v3572 = vmax.f32 %v3552, 0.0
  %v3573 = vmax.f32 %v3553, 0.0
  %v3574 = vmax.f32 %v3554, 0.0
  %v3575 = vmax.f32 %v3555, 0.0
  %v3576 = vmax.f32 %v3556, 0.0
  %v3577 = vmax.f32 %v3557, %v3559
  %v3578 = vmax.f32 %v3558, %v3560
  %v3579 = vmax.f32 %v3561, %v3563
  %v3580 = vmax.f32 %v3562, %v3564
  %v3581 = vmax.f32 %v3565, %v3567
  %v3582 = vmax.f32 %v3566, %v3568
  %v3583 = vmax.f32 %v3569, %v3571
  %v3584 = vmax.f32 %v3570, %v3572
  %v3585 = vmax.f32 %v3573, %v3575
  %v3586 = vmax.f32 %v3574, %v3576
  %3597 = vrot.lane.b32.xlu0 %v3577, 112
  %v3598 = vpop.permute.xlu0 %3597
  %3599 = vrot.lane.b32.xlu0 %v3578, 112
  %v3600 = vpop.permute.xlu0 %3599
  %3601 = vrot.lane.b32.xlu0 %v3579, 112
  %v3602 = vpop.permute.xlu0 %3601
  %3603 = vrot.lane.b32.xlu0 %v3580, 112
  %v3604 = vpop.permute.xlu0 %3603
  %3605 = vrot.lane.b32.xlu0 %v3581, 112
  %v3606 = vpop.permute.xlu0 %3605
  %3607 = vrot.lane.b32.xlu0 %v3582, 112
  %v3608 = vpop.permute.xlu0 %3607
  %3609 = vrot.lane.b32.xlu0 %v3583, 112
  %v3610 = vpop.permute.xlu0 %3609
  %3611 = vrot.lane.b32.xlu0 %v3584, 112
  %v3612 = vpop.permute.xlu0 %3611
  %3613 = vrot.lane.b32.xlu0 %v3585, 112
  %v3614 = vpop.permute.xlu0 %3613
  %3615 = vrot.lane.b32.xlu0 %v3586, 112
  %v3616 = vpop.permute.xlu0 %3615
  %vm3617 = vcmask 916480
  %v3618 = vsel %vm3617, %v3598, %v3600
  %v3619 = vsel %vm3617, %v3602, %v3604
  %v3620 = vsel %vm3617, %v3606, %v3608
  %v3621 = vsel %vm3617, %v3610, %v3612
  %v3622 = vsel %vm3617, %v3614, %v3616
  %v3633 = vsel %vm3617, %v3600, 0.0
  %v3634 = vsel %vm3617, %v3604, 0.0
  %v3635 = vsel %vm3617, %v3608, 0.0
  %v3636 = vsel %vm3617, %v3612, 0.0
  %v3637 = vsel %vm3617, %v3616, 0.0
  %v3638 = vmax.f32 %v3577, %v3618
  %v3639 = vmax.f32 %v3578, %v3633
  %v3640 = vmax.f32 %v3579, %v3619
  %v3641 = vmax.f32 %v3580, %v3634
  %v3642 = vmax.f32 %v3581, %v3620
  %v3643 = vmax.f32 %v3582, %v3635
  %v3644 = vmax.f32 %v3583, %v3621
  %v3645 = vmax.f32 %v3584, %v3636
  %v3646 = vmax.f32 %v3585, %v3622
  %v3647 = vmax.f32 %v3586, %v3637
  %v3648 = vpack.c.bf16 %v3638, %v3638
  %v3649 = vpack.c.bf16 %v3639, %v3639
  %v3650 = vld [vmem:[%s5] sm:$0xf]
  %v3651 = vld [vmem:[%s5 + $0x4] sm:$0xf]
  %v3652 = vld [vmem:[%s5 + $0x8] sm:$0xf]
  %v3653 = vld [vmem:[%s5 + $0xc] sm:$0xf]
  %v3654 = vld [vmem:[%s5 + $0x10] sm:$0xf]
  %v3655 = vld [vmem:[%s5 + $0x14] sm:$0xf]
  %v3656 = vld [vmem:[%s5 + $0x18] sm:$0xf]
  %v3657 = vld [vmem:[%s5 + $0x1c] sm:$0xf]
  %v3658 = vld [vmem:[%s5 + $0x20] sm:$0xf]
  %v3659 = vld [vmem:[%s5 + $0x24] sm:$0xf]
  %v3660 = vld [vmem:[%s5 + $0x28] sm:$0xf]
  %v3661 = vld [vmem:[%s5 + $0x2c] sm:$0xf]
  %v3662 = vld [vmem:[%s5 + $0x30] sm:$0xf]
  %v3663 = vld [vmem:[%s5 + $0x34] sm:$0xf]
  %v3664 = vld [vmem:[%s5 + $0x38] sm:$0xf]
  %v3665 = vld [vmem:[%s5 + $0x3c] sm:$0xf]
  %v3666 = vld [vmem:[%s5 + $0x40] sm:$0xf]
  %v3667 = vld [vmem:[%s5 + $0x44] sm:$0xf]
  %v3668 = vld [vmem:[%s5 + $0x48] sm:$0xf]
  %v3669 = vld [vmem:[%s5 + $0x4c] sm:$0xf]
  %v3670 = vld [vmem:[%s5 + $0x50] sm:$0xf]
  %v3671 = vld [vmem:[%s5 + $0x54] sm:$0xf]
  %v3672 = vld [vmem:[%s5 + $0x58] sm:$0xf]
  %v3673 = vld [vmem:[%s5 + $0x5c] sm:$0xf]
  %v3674 = vld [vmem:[%s5 + $0x60] sm:$0xf]
  %v3675 = vld [vmem:[%s5 + $0x64] sm:$0xf]
  %v3676 = vld [vmem:[%s5 + $0x68] sm:$0xf]
  %v3677 = vld [vmem:[%s5 + $0x6c] sm:$0xf]
  %v3678 = vld [vmem:[%s5 + $0x70] sm:$0xf]
  %v3679 = vld [vmem:[%s5 + $0x74] sm:$0xf]
  %v3680 = vld [vmem:[%s5 + $0x78] sm:$0xf]
  %v3681 = vld [vmem:[%s5 + $0x7c] sm:$0xf]
  %v3682 = vpack.c.bf16 %v3640, %v3640
  %v3683 = vpack.c.bf16 %v3641, %v3641
  %s3684 = scalar_lea.vmem %s5, 128
  %v3685 = vld [vmem:[%s3684] sm:$0xf]
  %v3686 = vld [vmem:[%s3684 + $0x4] sm:$0xf]
  %v3687 = vld [vmem:[%s3684 + $0x8] sm:$0xf]
  %v3688 = vld [vmem:[%s3684 + $0xc] sm:$0xf]
  %v3689 = vld [vmem:[%s3684 + $0x10] sm:$0xf]
  %v3690 = vld [vmem:[%s3684 + $0x14] sm:$0xf]
  %v3691 = vld [vmem:[%s3684 + $0x18] sm:$0xf]
  %v3692 = vld [vmem:[%s3684 + $0x1c] sm:$0xf]
  %v3693 = vld [vmem:[%s3684 + $0x20] sm:$0xf]
  %v3694 = vld [vmem:[%s3684 + $0x24] sm:$0xf]
  %v3695 = vld [vmem:[%s3684 + $0x28] sm:$0xf]
  %v3696 = vld [vmem:[%s3684 + $0x2c] sm:$0xf]
  %v3697 = vld [vmem:[%s3684 + $0x30] sm:$0xf]
  %v3698 = vld [vmem:[%s3684 + $0x34] sm:$0xf]
  %v3699 = vld [vmem:[%s3684 + $0x38] sm:$0xf]
  %v3700 = vld [vmem:[%s3684 + $0x3c] sm:$0xf]
  %v3701 = vld [vmem:[%s3684 + $0x40] sm:$0xf]
  %v3702 = vld [vmem:[%s3684 + $0x44] sm:$0xf]
  %v3703 = vld [vmem:[%s3684 + $0x48] sm:$0xf]
  %v3704 = vld [vmem:[%s3684 + $0x4c] sm:$0xf]
  %v3705 = vld [vmem:[%s3684 + $0x50] sm:$0xf]
  %v3706 = vld [vmem:[%s3684 + $0x54] sm:$0xf]
  %v3707 = vld [vmem:[%s3684 + $0x58] sm:$0xf]
  %v3708 = vld [vmem:[%s3684 + $0x5c] sm:$0xf]
  %v3709 = vld [vmem:[%s3684 + $0x60] sm:$0xf]
  %v3710 = vld [vmem:[%s3684 + $0x64] sm:$0xf]
  %v3711 = vld [vmem:[%s3684 + $0x68] sm:$0xf]
  %v3712 = vld [vmem:[%s3684 + $0x6c] sm:$0xf]
  %v3713 = vld [vmem:[%s3684 + $0x70] sm:$0xf]
  %v3714 = vld [vmem:[%s3684 + $0x74] sm:$0xf]
  %v3715 = vld [vmem:[%s3684 + $0x78] sm:$0xf]
  %v3716 = vld [vmem:[%s3684 + $0x7c] sm:$0xf]
  %v3749 = vunpack.c.l.b16 %v3685
  %v3750 = vunpack.c.l.b16 %v3686
  %v3751 = vunpack.c.l.b16 %v3687
  %v3752 = vunpack.c.l.b16 %v3688
  %v3753 = vunpack.c.l.b16 %v3689
  %v3754 = vunpack.c.l.b16 %v3690
  %v3755 = vunpack.c.l.b16 %v3691
  %v3756 = vunpack.c.l.b16 %v3692
  %v3757 = vunpack.c.l.b16 %v3693
  %v3758 = vunpack.c.l.b16 %v3694
  %v3759 = vunpack.c.l.b16 %v3695
  %v3760 = vunpack.c.l.b16 %v3696
  %v3761 = vunpack.c.l.b16 %v3697
  %v3762 = vunpack.c.l.b16 %v3698
  %v3763 = vunpack.c.l.b16 %v3699
  %v3764 = vunpack.c.l.b16 %v3700
  %v3765 = vunpack.c.l.b16 %v3701
  %v3766 = vunpack.c.l.b16 %v3702
  %v3767 = vunpack.c.l.b16 %v3703
  %v3768 = vunpack.c.l.b16 %v3704
  %v3769 = vunpack.c.l.b16 %v3705
  %v3770 = vunpack.c.l.b16 %v3706
  %v3771 = vunpack.c.l.b16 %v3707
  %v3772 = vunpack.c.l.b16 %v3708
  %v3773 = vunpack.c.l.b16 %v3709
  %v3774 = vunpack.c.l.b16 %v3710
  %v3775 = vunpack.c.l.b16 %v3711
  %v3776 = vunpack.c.l.b16 %v3712
  %v3777 = vunpack.c.l.b16 %v3713
  %v3778 = vunpack.c.l.b16 %v3714
  %v3779 = vunpack.c.l.b16 %v3715
  %v3780 = vunpack.c.l.b16 %v3716
  %v3781 = vpack.c.b16 %v3750, %v3749
  %v3782 = vpack.c.b16 %v3752, %v3751
  %v3783 = vpack.c.b16 %v3754, %v3753
  %v3784 = vpack.c.b16 %v3756, %v3755
  %v3785 = vpack.c.b16 %v3758, %v3757
  %v3786 = vpack.c.b16 %v3760, %v3759
  %v3787 = vpack.c.b16 %v3762, %v3761
  %v3788 = vpack.c.b16 %v3764, %v3763
  %v3789 = vpack.c.b16 %v3766, %v3765
  %v3790 = vpack.c.b16 %v3768, %v3767
  %v3791 = vpack.c.b16 %v3770, %v3769
  %v3792 = vpack.c.b16 %v3772, %v3771
  %v3793 = vpack.c.b16 %v3774, %v3773
  %v3794 = vpack.c.b16 %v3776, %v3775
  %v3795 = vpack.c.b16 %v3778, %v3777
  %v3796 = vpack.c.b16 %v3780, %v3779
  %3813 = vmatprep.subr.bf16.mxu0 0
  %3814 = vmatpush1.bf16.msra.mxu0 %v3781
  %3815 = vmatprep.subr.bf16.mxu0 0
  %3816 = vmatpush1.bf16.msra.mxu0 %v3782
  %3817 = vmatprep.subr.bf16.mxu0 0
  %3818 = vmatpush1.bf16.msra.mxu0 %v3783
  %3819 = vmatprep.subr.bf16.mxu0 0
  %3820 = vmatpush1.bf16.msra.mxu0 %v3784
  %3821 = vmatprep.subr.bf16.mxu0 0
  %3822 = vmatpush1.bf16.msra.mxu0 %v3785
  %3823 = vmatprep.subr.bf16.mxu0 0
  %3824 = vmatpush1.bf16.msra.mxu0 %v3786
  %3825 = vmatprep.subr.bf16.mxu0 0
  %3826 = vmatpush1.bf16.msra.mxu0 %v3787
  %3827 = vmatprep.subr.bf16.mxu0 0
  %3828 = vmatpush1.bf16.msra.mxu0 %v3788
  %3829 = vmatprep.subr.bf16.mxu0 0
  %3830 = vmatpush1.bf16.msra.mxu0 %v3789
  %3831 = vmatprep.subr.bf16.mxu0 0
  %3832 = vmatpush1.bf16.msra.mxu0 %v3790
  %3833 = vmatprep.subr.bf16.mxu0 0
  %3834 = vmatpush1.bf16.msra.mxu0 %v3791
  %3835 = vmatprep.subr.bf16.mxu0 0
  %3836 = vmatpush1.bf16.msra.mxu0 %v3792
  %3837 = vmatprep.subr.bf16.mxu0 0
  %3838 = vmatpush1.bf16.msra.mxu0 %v3793
  %3839 = vmatprep.subr.bf16.mxu0 0
  %3840 = vmatpush1.bf16.msra.mxu0 %v3794
  %3841 = vmatprep.subr.bf16.mxu0 0
  %3842 = vmatpush1.bf16.msra.mxu0 %v3795
  %3843 = vmatprep.subr.bf16.mxu0 0
  %3844 = vmatpush1.bf16.msra.mxu0 %v3796
  %3845 = vmatprep.mubr.bf16.mxu0 %v3683
  %3846 = vmatmul.mubr.bf16.gmra.mrb[0].mxu0 %v3682
  %v3847 = vpop.f32.mrb[0].mxu0
  %v3848 = vadd.f32 0.0, %v3847
  %v3849 = vpop.f32.mrb[0].mxu0
  %v3850 = vpop.f32.mrb[0].mxu0
  %v3851 = vpop.f32.mrb[0].mxu0
  %3852 = vdwg.mxu0
  %v3885 = vunpack.c.l.b16 %v3650
  %v3886 = vunpack.c.l.b16 %v3651
  %v3887 = vunpack.c.l.b16 %v3652
  %v3888 = vunpack.c.l.b16 %v3653
  %v3889 = vunpack.c.l.b16 %v3654
  %v3890 = vunpack.c.l.b16 %v3655
  %v3891 = vunpack.c.l.b16 %v3656
  %v3892 = vunpack.c.l.b16 %v3657
  %v3893 = vunpack.c.l.b16 %v3658
  %v3894 = vunpack.c.l.b16 %v3659
  %v3895 = vunpack.c.l.b16 %v3660
  %v3896 = vunpack.c.l.b16 %v3661
  %v3897 = vunpack.c.l.b16 %v3662
  %v3898 = vunpack.c.l.b16 %v3663
  %v3899 = vunpack.c.l.b16 %v3664
  %v3900 = vunpack.c.l.b16 %v3665
  %v3901 = vunpack.c.l.b16 %v3666
  %v3902 = vunpack.c.l.b16 %v3667
  %v3903 = vunpack.c.l.b16 %v3668
  %v3904 = vunpack.c.l.b16 %v3669
  %v3905 = vunpack.c.l.b16 %v3670
  %v3906 = vunpack.c.l.b16 %v3671
  %v3907 = vunpack.c.l.b16 %v3672
  %v3908 = vunpack.c.l.b16 %v3673
  %v3909 = vunpack.c.l.b16 %v3674
  %v3910 = vunpack.c.l.b16 %v3675
  %v3911 = vunpack.c.l.b16 %v3676
  %v3912 = vunpack.c.l.b16 %v3677
  %v3913 = vunpack.c.l.b16 %v3678
  %v3914 = vunpack.c.l.b16 %v3679
  %v3915 = vunpack.c.l.b16 %v3680
  %v3916 = vunpack.c.l.b16 %v3681
  %v3917 = vpack.c.b16 %v3886, %v3885
  %v3918 = vpack.c.b16 %v3888, %v3887
  %v3919 = vpack.c.b16 %v3890, %v3889
  %v3920 = vpack.c.b16 %v3892, %v3891
  %v3921 = vpack.c.b16 %v3894, %v3893
  %v3922 = vpack.c.b16 %v3896, %v3895
  %v3923 = vpack.c.b16 %v3898, %v3897
  %v3924 = vpack.c.b16 %v3900, %v3899
  %v3925 = vpack.c.b16 %v3902, %v3901
  %v3926 = vpack.c.b16 %v3904, %v3903
  %v3927 = vpack.c.b16 %v3906, %v3905
  %v3928 = vpack.c.b16 %v3908, %v3907
  %v3929 = vpack.c.b16 %v3910, %v3909
  %v3930 = vpack.c.b16 %v3912, %v3911
  %v3931 = vpack.c.b16 %v3914, %v3913
  %v3932 = vpack.c.b16 %v3916, %v3915
  %3949 = vmatprep.subr.bf16.mxu0 0
  %3950 = vmatpush1.bf16.msra.mxu0 %v3917
  %3951 = vmatprep.subr.bf16.mxu0 0
  %3952 = vmatpush1.bf16.msra.mxu0 %v3918
  %3953 = vmatprep.subr.bf16.mxu0 0
  %3954 = vmatpush1.bf16.msra.mxu0 %v3919
  %3955 = vmatprep.subr.bf16.mxu0 0
  %3956 = vmatpush1.bf16.msra.mxu0 %v3920
  %3957 = vmatprep.subr.bf16.mxu0 0
  %3958 = vmatpush1.bf16.msra.mxu0 %v3921
  %3959 = vmatprep.subr.bf16.mxu0 0
  %3960 = vmatpush1.bf16.msra.mxu0 %v3922
  %3961 = vmatprep.subr.bf16.mxu0 0
  %3962 = vmatpush1.bf16.msra.mxu0 %v3923
  %3963 = vmatprep.subr.bf16.mxu0 0
  %3964 = vmatpush1.bf16.msra.mxu0 %v3924
  %3965 = vmatprep.subr.bf16.mxu0 0
  %3966 = vmatpush1.bf16.msra.mxu0 %v3925
  %3967 = vmatprep.subr.bf16.mxu0 0
  %3968 = vmatpush1.bf16.msra.mxu0 %v3926
  %3969 = vmatprep.subr.bf16.mxu0 0
  %3970 = vmatpush1.bf16.msra.mxu0 %v3927
  %3971 = vmatprep.subr.bf16.mxu0 0
  %3972 = vmatpush1.bf16.msra.mxu0 %v3928
  %3973 = vmatprep.subr.bf16.mxu0 0
  %3974 = vmatpush1.bf16.msra.mxu0 %v3929
  %3975 = vmatprep.subr.bf16.mxu0 0
  %3976 = vmatpush1.bf16.msra.mxu0 %v3930
  %3977 = vmatprep.subr.bf16.mxu0 0
  %3978 = vmatpush1.bf16.msra.mxu0 %v3931
  %3979 = vmatprep.subr.bf16.mxu0 0
  %3980 = vmatpush1.bf16.msra.mxu0 %v3932
  %3981 = vmatprep.mubr.bf16.mxu0 %v3649
  %3982 = vmatmul.mubr.bf16.gmra.mrb[0].mxu0 %v3648
  %v3983 = vpop.f32.mrb[0].mxu0
  %v3984 = vadd.f32 %v3848, %v3983
  %v3985 = vpop.f32.mrb[0].mxu0
  %v3986 = vpop.f32.mrb[0].mxu0
  %v3987 = vpop.f32.mrb[0].mxu0
  %3988 = vdwg.mxu0
  %v3989 = vpack.c.bf16 %v3642, %v3642
  %v3990 = vpack.c.bf16 %v3643, %v3643
  %s3991 = scalar_lea.vmem %s5, 256
  %v3992 = vld [vmem:[%s3991] sm:$0xf]
  %v3993 = vld [vmem:[%s3991 + $0x4] sm:$0xf]
  %v3994 = vld [vmem:[%s3991 + $0x8] sm:$0xf]
  %v3995 = vld [vmem:[%s3991 + $0xc] sm:$0xf]
  %v3996 = vld [vmem:[%s3991 + $0x10] sm:$0xf]
  %v3997 = vld [vmem:[%s3991 + $0x14] sm:$0xf]
  %v3998 = vld [vmem:[%s3991 + $0x18] sm:$0xf]
  %v3999 = vld [vmem:[%s3991 + $0x1c] sm:$0xf]
  %v4000 = vld [vmem:[%s3991 + $0x20] sm:$0xf]
  %v4001 = vld [vmem:[%s3991 + $0x24] sm:$0xf]
  %v4002 = vld [vmem:[%s3991 + $0x28] sm:$0xf]
  %v4003 = vld [vmem:[%s3991 + $0x2c] sm:$0xf]
  %v4004 = vld [vmem:[%s3991 + $0x30] sm:$0xf]
  %v4005 = vld [vmem:[%s3991 + $0x34] sm:$0xf]
  %v4006 = vld [vmem:[%s3991 + $0x38] sm:$0xf]
  %v4007 = vld [vmem:[%s3991 + $0x3c] sm:$0xf]
  %v4008 = vld [vmem:[%s3991 + $0x40] sm:$0xf]
  %v4009 = vld [vmem:[%s3991 + $0x44] sm:$0xf]
  %v4010 = vld [vmem:[%s3991 + $0x48] sm:$0xf]
  %v4011 = vld [vmem:[%s3991 + $0x4c] sm:$0xf]
  %v4012 = vld [vmem:[%s3991 + $0x50] sm:$0xf]
  %v4013 = vld [vmem:[%s3991 + $0x54] sm:$0xf]
  %v4014 = vld [vmem:[%s3991 + $0x58] sm:$0xf]
  %v4015 = vld [vmem:[%s3991 + $0x5c] sm:$0xf]
  %v4016 = vld [vmem:[%s3991 + $0x60] sm:$0xf]
  %v4017 = vld [vmem:[%s3991 + $0x64] sm:$0xf]
  %v4018 = vld [vmem:[%s3991 + $0x68] sm:$0xf]
  %v4019 = vld [vmem:[%s3991 + $0x6c] sm:$0xf]
  %v4020 = vld [vmem:[%s3991 + $0x70] sm:$0xf]
  %v4021 = vld [vmem:[%s3991 + $0x74] sm:$0xf]
  %v4022 = vld [vmem:[%s3991 + $0x78] sm:$0xf]
  %v4023 = vld [vmem:[%s3991 + $0x7c] sm:$0xf]
  %v4056 = vunpack.c.l.b16 %v3992
  %v4057 = vunpack.c.l.b16 %v3993
  %v4058 = vunpack.c.l.b16 %v3994
  %v4059 = vunpack.c.l.b16 %v3995
  %v4060 = vunpack.c.l.b16 %v3996
  %v4061 = vunpack.c.l.b16 %v3997
  %v4062 = vunpack.c.l.b16 %v3998
  %v4063 = vunpack.c.l.b16 %v3999
  %v4064 = vunpack.c.l.b16 %v4000
  %v4065 = vunpack.c.l.b16 %v4001
  %v4066 = vunpack.c.l.b16 %v4002
  %v4067 = vunpack.c.l.b16 %v4003
  %v4068 = vunpack.c.l.b16 %v4004
  %v4069 = vunpack.c.l.b16 %v4005
  %v4070 = vunpack.c.l.b16 %v4006
  %v4071 = vunpack.c.l.b16 %v4007
  %v4072 = vunpack.c.l.b16 %v4008
  %v4073 = vunpack.c.l.b16 %v4009
  %v4074 = vunpack.c.l.b16 %v4010
  %v4075 = vunpack.c.l.b16 %v4011
  %v4076 = vunpack.c.l.b16 %v4012
  %v4077 = vunpack.c.l.b16 %v4013
  %v4078 = vunpack.c.l.b16 %v4014
  %v4079 = vunpack.c.l.b16 %v4015
  %v4080 = vunpack.c.l.b16 %v4016
  %v4081 = vunpack.c.l.b16 %v4017
  %v4082 = vunpack.c.l.b16 %v4018
  %v4083 = vunpack.c.l.b16 %v4019
  %v4084 = vunpack.c.l.b16 %v4020
  %v4085 = vunpack.c.l.b16 %v4021
  %v4086 = vunpack.c.l.b16 %v4022
  %v4087 = vunpack.c.l.b16 %v4023
  %v4088 = vpack.c.b16 %v4057, %v4056
  %v4089 = vpack.c.b16 %v4059, %v4058
  %v4090 = vpack.c.b16 %v4061, %v4060
  %v4091 = vpack.c.b16 %v4063, %v4062
  %v4092 = vpack.c.b16 %v4065, %v4064
  %v4093 = vpack.c.b16 %v4067, %v4066
  %v4094 = vpack.c.b16 %v4069, %v4068
  %v4095 = vpack.c.b16 %v4071, %v4070
  %v4096 = vpack.c.b16 %v4073, %v4072
  %v4097 = vpack.c.b16 %v4075, %v4074
  %v4098 = vpack.c.b16 %v4077, %v4076
  %v4099 = vpack.c.b16 %v4079, %v4078
  %v4100 = vpack.c.b16 %v4081, %v4080
  %v4101 = vpack.c.b16 %v4083, %v4082
  %v4102 = vpack.c.b16 %v4085, %v4084
  %v4103 = vpack.c.b16 %v4087, %v4086
  %4120 = vmatprep.subr.bf16.mxu0 0
  %4121 = vmatpush1.bf16.msra.mxu0 %v4088
  %4122 = vmatprep.subr.bf16.mxu0 0
  %4123 = vmatpush1.bf16.msra.mxu0 %v4089
  %4124 = vmatprep.subr.bf16.mxu0 0
  %4125 = vmatpush1.bf16.msra.mxu0 %v4090
  %4126 = vmatprep.subr.bf16.mxu0 0
  %4127 = vmatpush1.bf16.msra.mxu0 %v4091
  %4128 = vmatprep.subr.bf16.mxu0 0
  %4129 = vmatpush1.bf16.msra.mxu0 %v4092
  %4130 = vmatprep.subr.bf16.mxu0 0
  %4131 = vmatpush1.bf16.msra.mxu0 %v4093
  %4132 = vmatprep.subr.bf16.mxu0 0
  %4133 = vmatpush1.bf16.msra.mxu0 %v4094
  %4134 = vmatprep.subr.bf16.mxu0 0
  %4135 = vmatpush1.bf16.msra.mxu0 %v4095
  %4136 = vmatprep.subr.bf16.mxu0 0
  %4137 = vmatpush1.bf16.msra.mxu0 %v4096
  %4138 = vmatprep.subr.bf16.mxu0 0
  %4139 = vmatpush1.bf16.msra.mxu0 %v4097
  %4140 = vmatprep.subr.bf16.mxu0 0
  %4141 = vmatpush1.bf16.msra.mxu0 %v4098
  %4142 = vmatprep.subr.bf16.mxu0 0
  %4143 = vmatpush1.bf16.msra.mxu0 %v4099
  %4144 = vmatprep.subr.bf16.mxu0 0
  %4145 = vmatpush1.bf16.msra.mxu0 %v4100
  %4146 = vmatprep.subr.bf16.mxu0 0
  %4147 = vmatpush1.bf16.msra.mxu0 %v4101
  %4148 = vmatprep.subr.bf16.mxu0 0
  %4149 = vmatpush1.bf16.msra.mxu0 %v4102
  %4150 = vmatprep.subr.bf16.mxu0 0
  %4151 = vmatpush1.bf16.msra.mxu0 %v4103
  %4152 = vmatprep.mubr.bf16.mxu0 %v3990
  %4153 = vmatmul.mubr.bf16.gmra.mrb[0].mxu0 %v3989
  %v4154 = vpop.f32.mrb[0].mxu0
  %v4155 = vadd.f32 0.0, %v4154
  %v4156 = vpop.f32.mrb[0].mxu0
  %v4157 = vpop.f32.mrb[0].mxu0
  %v4158 = vpop.f32.mrb[0].mxu0
  %4159 = vdwg.mxu0
  %v4160 = vadd.f32 %v3984, %v4155
  %v4161 = vpack.c.bf16 %v3644, %v3644
  %v4162 = vpack.c.bf16 %v3645, %v3645
  %s4163 = scalar_lea.vmem %s5, 384
  %v4164 = vld [vmem:[%s4163] sm:$0xf]
  %v4165 = vld [vmem:[%s4163 + $0x4] sm:$0xf]
  %v4166 = vld [vmem:[%s4163 + $0x8] sm:$0xf]
  %v4167 = vld [vmem:[%s4163 + $0xc] sm:$0xf]
  %v4168 = vld [vmem:[%s4163 + $0x10] sm:$0xf]
  %v4169 = vld [vmem:[%s4163 + $0x14] sm:$0xf]
  %v4170 = vld [vmem:[%s4163 + $0x18] sm:$0xf]
  %v4171 = vld [vmem:[%s4163 + $0x1c] sm:$0xf]
  %v4172 = vld [vmem:[%s4163 + $0x20] sm:$0xf]
  %v4173 = vld [vmem:[%s4163 + $0x24] sm:$0xf]
  %v4174 = vld [vmem:[%s4163 + $0x28] sm:$0xf]
  %v4175 = vld [vmem:[%s4163 + $0x2c] sm:$0xf]
  %v4176 = vld [vmem:[%s4163 + $0x30] sm:$0xf]
  %v4177 = vld [vmem:[%s4163 + $0x34] sm:$0xf]
  %v4178 = vld [vmem:[%s4163 + $0x38] sm:$0xf]
  %v4179 = vld [vmem:[%s4163 + $0x3c] sm:$0xf]
  %v4180 = vld [vmem:[%s4163 + $0x40] sm:$0xf]
  %v4181 = vld [vmem:[%s4163 + $0x44] sm:$0xf]
  %v4182 = vld [vmem:[%s4163 + $0x48] sm:$0xf]
  %v4183 = vld [vmem:[%s4163 + $0x4c] sm:$0xf]
  %v4184 = vld [vmem:[%s4163 + $0x50] sm:$0xf]
  %v4185 = vld [vmem:[%s4163 + $0x54] sm:$0xf]
  %v4186 = vld [vmem:[%s4163 + $0x58] sm:$0xf]
  %v4187 = vld [vmem:[%s4163 + $0x5c] sm:$0xf]
  %v4188 = vld [vmem:[%s4163 + $0x60] sm:$0xf]
  %v4189 = vld [vmem:[%s4163 + $0x64] sm:$0xf]
  %v4190 = vld [vmem:[%s4163 + $0x68] sm:$0xf]
  %v4191 = vld [vmem:[%s4163 + $0x6c] sm:$0xf]
  %v4192 = vld [vmem:[%s4163 + $0x70] sm:$0xf]
  %v4193 = vld [vmem:[%s4163 + $0x74] sm:$0xf]
  %v4194 = vld [vmem:[%s4163 + $0x78] sm:$0xf]
  %v4195 = vld [vmem:[%s4163 + $0x7c] sm:$0xf]
  %v4228 = vunpack.c.l.b16 %v4164
  %v4229 = vunpack.c.l.b16 %v4165
  %v4230 = vunpack.c.l.b16 %v4166
  %v4231 = vunpack.c.l.b16 %v4167
  %v4232 = vunpack.c.l.b16 %v4168
  %v4233 = vunpack.c.l.b16 %v4169
  %v4234 = vunpack.c.l.b16 %v4170
  %v4235 = vunpack.c.l.b16 %v4171
  %v4236 = vunpack.c.l.b16 %v4172
  %v4237 = vunpack.c.l.b16 %v4173
  %v4238 = vunpack.c.l.b16 %v4174
  %v4239 = vunpack.c.l.b16 %v4175
  %v4240 = vunpack.c.l.b16 %v4176
  %v4241 = vunpack.c.l.b16 %v4177
  %v4242 = vunpack.c.l.b16 %v4178
  %v4243 = vunpack.c.l.b16 %v4179
  %v4244 = vunpack.c.l.b16 %v4180
  %v4245 = vunpack.c.l.b16 %v4181
  %v4246 = vunpack.c.l.b16 %v4182
  %v4247 = vunpack.c.l.b16 %v4183
  %v4248 = vunpack.c.l.b16 %v4184
  %v4249 = vunpack.c.l.b16 %v4185
  %v4250 = vunpack.c.l.b16 %v4186
  %v4251 = vunpack.c.l.b16 %v4187
  %v4252 = vunpack.c.l.b16 %v4188
  %v4253 = vunpack.c.l.b16 %v4189
  %v4254 = vunpack.c.l.b16 %v4190
  %v4255 = vunpack.c.l.b16 %v4191
  %v4256 = vunpack.c.l.b16 %v4192
  %v4257 = vunpack.c.l.b16 %v4193
  %v4258 = vunpack.c.l.b16 %v4194
  %v4259 = vunpack.c.l.b16 %v4195
  %v4260 = vpack.c.b16 %v4229, %v4228
  %v4261 = vpack.c.b16 %v4231, %v4230
  %v4262 = vpack.c.b16 %v4233, %v4232
  %v4263 = vpack.c.b16 %v4235, %v4234
  %v4264 = vpack.c.b16 %v4237, %v4236
  %v4265 = vpack.c.b16 %v4239, %v4238
  %v4266 = vpack.c.b16 %v4241, %v4240
  %v4267 = vpack.c.b16 %v4243, %v4242
  %v4268 = vpack.c.b16 %v4245, %v4244
  %v4269 = vpack.c.b16 %v4247, %v4246
  %v4270 = vpack.c.b16 %v4249, %v4248
  %v4271 = vpack.c.b16 %v4251, %v4250
  %v4272 = vpack.c.b16 %v4253, %v4252
  %v4273 = vpack.c.b16 %v4255, %v4254
  %v4274 = vpack.c.b16 %v4257, %v4256
  %v4275 = vpack.c.b16 %v4259, %v4258
  %4292 = vmatprep.subr.bf16.mxu0 0
  %4293 = vmatpush1.bf16.msra.mxu0 %v4260
  %4294 = vmatprep.subr.bf16.mxu0 0
  %4295 = vmatpush1.bf16.msra.mxu0 %v4261
  %4296 = vmatprep.subr.bf16.mxu0 0
  %4297 = vmatpush1.bf16.msra.mxu0 %v4262
  %4298 = vmatprep.subr.bf16.mxu0 0
  %4299 = vmatpush1.bf16.msra.mxu0 %v4263
  %4300 = vmatprep.subr.bf16.mxu0 0
  %4301 = vmatpush1.bf16.msra.mxu0 %v4264
  %4302 = vmatprep.subr.bf16.mxu0 0
  %4303 = vmatpush1.bf16.msra.mxu0 %v4265
  %4304 = vmatprep.subr.bf16.mxu0 0
  %4305 = vmatpush1.bf16.msra.mxu0 %v4266
  %4306 = vmatprep.subr.bf16.mxu0 0
  %4307 = vmatpush1.bf16.msra.mxu0 %v4267
  %4308 = vmatprep.subr.bf16.mxu0 0
  %4309 = vmatpush1.bf16.msra.mxu0 %v4268
  %4310 = vmatprep.subr.bf16.mxu0 0
  %4311 = vmatpush1.bf16.msra.mxu0 %v4269
  %4312 = vmatprep.subr.bf16.mxu0 0
  %4313 = vmatpush1.bf16.msra.mxu0 %v4270
  %4314 = vmatprep.subr.bf16.mxu0 0
  %4315 = vmatpush1.bf16.msra.mxu0 %v4271
  %4316 = vmatprep.subr.bf16.mxu0 0
  %4317 = vmatpush1.bf16.msra.mxu0 %v4272
  %4318 = vmatprep.subr.bf16.mxu0 0
  %4319 = vmatpush1.bf16.msra.mxu0 %v4273
  %4320 = vmatprep.subr.bf16.mxu0 0
  %4321 = vmatpush1.bf16.msra.mxu0 %v4274
  %4322 = vmatprep.subr.bf16.mxu0 0
  %4323 = vmatpush1.bf16.msra.mxu0 %v4275
  %4324 = vmatprep.mubr.bf16.mxu0 %v4162
  %4325 = vmatmul.mubr.bf16.gmra.mrb[0].mxu0 %v4161
  %v4326 = vpop.f32.mrb[0].mxu0
  %v4327 = vadd.f32 0.0, %v4326
  %v4328 = vpop.f32.mrb[0].mxu0
  %v4329 = vpop.f32.mrb[0].mxu0
  %v4330 = vpop.f32.mrb[0].mxu0
  %4331 = vdwg.mxu0
  %v4332 = vadd.f32 %v4160, %v4327
  %v4333 = vpack.c.bf16 %v3646, %v3646
  %v4334 = vpack.c.bf16 %v3647, %v3647
  %s4335 = scalar_lea.vmem %s5, 512
  %v4336 = vld [vmem:[%s4335] sm:$0xf]
  %v4337 = vld [vmem:[%s4335 + $0x4] sm:$0xf]
  %v4338 = vld [vmem:[%s4335 + $0x8] sm:$0xf]
  %v4339 = vld [vmem:[%s4335 + $0xc] sm:$0xf]
  %v4340 = vld [vmem:[%s4335 + $0x10] sm:$0xf]
  %v4341 = vld [vmem:[%s4335 + $0x14] sm:$0xf]
  %v4342 = vld [vmem:[%s4335 + $0x18] sm:$0xf]
  %v4343 = vld [vmem:[%s4335 + $0x1c] sm:$0xf]
  %v4344 = vld [vmem:[%s4335 + $0x20] sm:$0xf]
  %v4345 = vld [vmem:[%s4335 + $0x24] sm:$0xf]
  %v4346 = vld [vmem:[%s4335 + $0x28] sm:$0xf]
  %v4347 = vld [vmem:[%s4335 + $0x2c] sm:$0xf]
  %v4348 = vld [vmem:[%s4335 + $0x30] sm:$0xf]
  %v4349 = vld [vmem:[%s4335 + $0x34] sm:$0xf]
  %v4350 = vld [vmem:[%s4335 + $0x38] sm:$0xf]
  %v4351 = vld [vmem:[%s4335 + $0x3c] sm:$0xf]
  %v4352 = vld [vmem:[%s4335 + $0x40] sm:$0xf]
  %v4353 = vld [vmem:[%s4335 + $0x44] sm:$0xf]
  %v4354 = vld [vmem:[%s4335 + $0x48] sm:$0xf]
  %v4355 = vld [vmem:[%s4335 + $0x4c] sm:$0xf]
  %v4356 = vld [vmem:[%s4335 + $0x50] sm:$0xf]
  %v4357 = vld [vmem:[%s4335 + $0x54] sm:$0xf]
  %v4358 = vld [vmem:[%s4335 + $0x58] sm:$0xf]
  %v4359 = vld [vmem:[%s4335 + $0x5c] sm:$0xf]
  %v4360 = vld [vmem:[%s4335 + $0x60] sm:$0xf]
  %v4361 = vld [vmem:[%s4335 + $0x64] sm:$0xf]
  %v4362 = vld [vmem:[%s4335 + $0x68] sm:$0xf]
  %v4363 = vld [vmem:[%s4335 + $0x6c] sm:$0xf]
  %v4364 = vld [vmem:[%s4335 + $0x70] sm:$0xf]
  %v4365 = vld [vmem:[%s4335 + $0x74] sm:$0xf]
  %v4366 = vld [vmem:[%s4335 + $0x78] sm:$0xf]
  %v4367 = vld [vmem:[%s4335 + $0x7c] sm:$0xf]
  %v4400 = vunpack.c.l.b16 %v4336
  %v4401 = vunpack.c.l.b16 %v4337
  %v4402 = vunpack.c.l.b16 %v4338
  %v4403 = vunpack.c.l.b16 %v4339
  %v4404 = vunpack.c.l.b16 %v4340
  %v4405 = vunpack.c.l.b16 %v4341
  %v4406 = vunpack.c.l.b16 %v4342
  %v4407 = vunpack.c.l.b16 %v4343
  %v4408 = vunpack.c.l.b16 %v4344
  %v4409 = vunpack.c.l.b16 %v4345
  %v4410 = vunpack.c.l.b16 %v4346
  %v4411 = vunpack.c.l.b16 %v4347
  %v4412 = vunpack.c.l.b16 %v4348
  %v4413 = vunpack.c.l.b16 %v4349
  %v4414 = vunpack.c.l.b16 %v4350
  %v4415 = vunpack.c.l.b16 %v4351
  %v4416 = vunpack.c.l.b16 %v4352
  %v4417 = vunpack.c.l.b16 %v4353
  %v4418 = vunpack.c.l.b16 %v4354
  %v4419 = vunpack.c.l.b16 %v4355
  %v4420 = vunpack.c.l.b16 %v4356
  %v4421 = vunpack.c.l.b16 %v4357
  %v4422 = vunpack.c.l.b16 %v4358
  %v4423 = vunpack.c.l.b16 %v4359
  %v4424 = vunpack.c.l.b16 %v4360
  %v4425 = vunpack.c.l.b16 %v4361
  %v4426 = vunpack.c.l.b16 %v4362
  %v4427 = vunpack.c.l.b16 %v4363
  %v4428 = vunpack.c.l.b16 %v4364
  %v4429 = vunpack.c.l.b16 %v4365
  %v4430 = vunpack.c.l.b16 %v4366
  %v4431 = vunpack.c.l.b16 %v4367
  %v4432 = vpack.c.b16 %v4401, %v4400
  %v4433 = vpack.c.b16 %v4403, %v4402
  %v4434 = vpack.c.b16 %v4405, %v4404
  %v4435 = vpack.c.b16 %v4407, %v4406
  %v4436 = vpack.c.b16 %v4409, %v4408
  %v4437 = vpack.c.b16 %v4411, %v4410
  %v4438 = vpack.c.b16 %v4413, %v4412
  %v4439 = vpack.c.b16 %v4415, %v4414
  %v4440 = vpack.c.b16 %v4417, %v4416
  %v4441 = vpack.c.b16 %v4419, %v4418
  %v4442 = vpack.c.b16 %v4421, %v4420
  %v4443 = vpack.c.b16 %v4423, %v4422
  %v4444 = vpack.c.b16 %v4425, %v4424
  %v4445 = vpack.c.b16 %v4427, %v4426
  %v4446 = vpack.c.b16 %v4429, %v4428
  %v4447 = vpack.c.b16 %v4431, %v4430
  %4464 = vmatprep.subr.bf16.mxu0 0
  %4465 = vmatpush1.bf16.msra.mxu0 %v4432
  %4466 = vmatprep.subr.bf16.mxu0 0
  %4467 = vmatpush1.bf16.msra.mxu0 %v4433
  %4468 = vmatprep.subr.bf16.mxu0 0
  %4469 = vmatpush1.bf16.msra.mxu0 %v4434
  %4470 = vmatprep.subr.bf16.mxu0 0
  %4471 = vmatpush1.bf16.msra.mxu0 %v4435
  %4472 = vmatprep.subr.bf16.mxu0 0
  %4473 = vmatpush1.bf16.msra.mxu0 %v4436
  %4474 = vmatprep.subr.bf16.mxu0 0
  %4475 = vmatpush1.bf16.msra.mxu0 %v4437
  %4476 = vmatprep.subr.bf16.mxu0 0
  %4477 = vmatpush1.bf16.msra.mxu0 %v4438
  %4478 = vmatprep.subr.bf16.mxu0 0
  %4479 = vmatpush1.bf16.msra.mxu0 %v4439
  %4480 = vmatprep.subr.bf16.mxu0 0
  %4481 = vmatpush1.bf16.msra.mxu0 %v4440
  %4482 = vmatprep.subr.bf16.mxu0 0
  %4483 = vmatpush1.bf16.msra.mxu0 %v4441
  %4484 = vmatprep.subr.bf16.mxu0 0
  %4485 = vmatpush1.bf16.msra.mxu0 %v4442
  %4486 = vmatprep.subr.bf16.mxu0 0
  %4487 = vmatpush1.bf16.msra.mxu0 %v4443
  %4488 = vmatprep.subr.bf16.mxu0 0
  %4489 = vmatpush1.bf16.msra.mxu0 %v4444
  %4490 = vmatprep.subr.bf16.mxu0 0
  %4491 = vmatpush1.bf16.msra.mxu0 %v4445
  %4492 = vmatprep.subr.bf16.mxu0 0
  %4493 = vmatpush1.bf16.msra.mxu0 %v4446
  %4494 = vmatprep.subr.bf16.mxu0 0
  %4495 = vmatpush1.bf16.msra.mxu0 %v4447
  %4496 = vmatprep.mubr.bf16.mxu0 %v4334
  %4497 = vmatmul.mubr.bf16.gmra.mrb[0].mxu0 %v4333
  %v4498 = vpop.f32.mrb[0].mxu0
  %v4499 = vadd.f32 0.0, %v4498
  %v4500 = vpop.f32.mrb[0].mxu0
  %v4501 = vpop.f32.mrb[0].mxu0
  %v4502 = vpop.f32.mrb[0].mxu0
  %4503 = vdwg.mxu0
  %v4504 = vadd.f32 %v4332, %v4499
  %v4505 = vld [vmem:[%s6] sm:$0x1]
  %v4507 = vlaneseq
  %v4508 = vshrl.u32 %v4507, 7
  %v4509 = vsub.s32 0, %v4508
  %v4510 = vrot.slane %v4505, %v4509
  %v4512 = vadd.f32 %v4504, %v4510
  %v4513 = vmax.f32 %v4512, 0.0
  %v4514 = vpack.c.bf16 %v4513, %v4513
  %v4515 = vld [vmem:[%s7] sm:$0xf]
  %v4516 = vld [vmem:[%s7 + $0x4] sm:$0xf]
  %v4517 = vld [vmem:[%s7 + $0x8] sm:$0xf]
  %v4518 = vld [vmem:[%s7 + $0xc] sm:$0xf]
  %v4519 = vld [vmem:[%s7 + $0x10] sm:$0xf]
  %v4520 = vld [vmem:[%s7 + $0x14] sm:$0xf]
  %v4521 = vld [vmem:[%s7 + $0x18] sm:$0xf]
  %v4522 = vld [vmem:[%s7 + $0x1c] sm:$0xf]
  %v4523 = vld [vmem:[%s7 + $0x20] sm:$0xf]
  %v4524 = vld [vmem:[%s7 + $0x24] sm:$0xf]
  %v4525 = vld [vmem:[%s7 + $0x28] sm:$0xf]
  %v4526 = vld [vmem:[%s7 + $0x2c] sm:$0xf]
  %v4527 = vld [vmem:[%s7 + $0x30] sm:$0xf]
  %v4528 = vld [vmem:[%s7 + $0x34] sm:$0xf]
  %v4529 = vld [vmem:[%s7 + $0x38] sm:$0xf]
  %v4530 = vld [vmem:[%s7 + $0x3c] sm:$0xf]
  %v4531 = vld [vmem:[%s8] sm:$0x1]
  %v4533 = vlaneseq
  %v4534 = vshrl.u32 %v4533, 7
  %v4535 = vsub.s32 0, %v4534
  %v4536 = vrot.slane %v4531, %v4535
  %v4554 = vunpack.c.l.b16 %v4515
  %v4555 = vunpack.c.l.b16 %v4516
  %v4556 = vunpack.c.l.b16 %v4517
  %v4557 = vunpack.c.l.b16 %v4518
  %v4558 = vunpack.c.l.b16 %v4519
  %v4559 = vunpack.c.l.b16 %v4520
  %v4560 = vunpack.c.l.b16 %v4521
  %v4561 = vunpack.c.l.b16 %v4522
  %v4562 = vunpack.c.l.b16 %v4523
  %v4563 = vunpack.c.l.b16 %v4524
  %v4564 = vunpack.c.l.b16 %v4525
  %v4565 = vunpack.c.l.b16 %v4526
  %v4566 = vunpack.c.l.b16 %v4527
  %v4567 = vunpack.c.l.b16 %v4528
  %v4568 = vunpack.c.l.b16 %v4529
  %v4569 = vunpack.c.l.b16 %v4530
  %v4570 = vpack.c.b16 %v4555, %v4554
  %v4571 = vpack.c.b16 %v4557, %v4556
  %v4572 = vpack.c.b16 %v4559, %v4558
  %v4573 = vpack.c.b16 %v4561, %v4560
  %v4574 = vpack.c.b16 %v4563, %v4562
  %v4575 = vpack.c.b16 %v4565, %v4564
  %v4576 = vpack.c.b16 %v4567, %v4566
  %v4577 = vpack.c.b16 %v4569, %v4568
  %4586 = vmatprep.subr.bf16.mxu0 0
  %4587 = vmatpush1.bf16.msra.mxu0 %v4570
  %4588 = vmatprep.subr.bf16.mxu0 0
  %4589 = vmatpush1.bf16.msra.mxu0 %v4571
  %4590 = vmatprep.subr.bf16.mxu0 0
  %4591 = vmatpush1.bf16.msra.mxu0 %v4572
  %4592 = vmatprep.subr.bf16.mxu0 0
  %4593 = vmatpush1.bf16.msra.mxu0 %v4573
  %4594 = vmatprep.subr.bf16.mxu0 0
  %4595 = vmatpush1.bf16.msra.mxu0 %v4574
  %4596 = vmatprep.subr.bf16.mxu0 0
  %4597 = vmatpush1.bf16.msra.mxu0 %v4575
  %4598 = vmatprep.subr.bf16.mxu0 0
  %4599 = vmatpush1.bf16.msra.mxu0 %v4576
  %4600 = vmatprep.subr.bf16.mxu0 0
  %4601 = vmatpush1.bf16.msra.mxu0 %v4577
  %4602 = vmatprep.subr.bf16.mxu0 0
  %4603 = vmatpush1.bf16.msra.mxu0 0
  %4604 = vmatprep.subr.bf16.mxu0 0
  %4605 = vmatpush1.bf16.msra.mxu0 0
  %4606 = vmatprep.subr.bf16.mxu0 0
  %4607 = vmatpush1.bf16.msra.mxu0 0
  %4608 = vmatprep.subr.bf16.mxu0 0
  %4609 = vmatpush1.bf16.msra.mxu0 0
  %4610 = vmatprep.subr.bf16.mxu0 0
  %4611 = vmatpush1.bf16.msra.mxu0 0
  %4612 = vmatprep.subr.bf16.mxu0 0
  %4613 = vmatpush1.bf16.msra.mxu0 0
  %4614 = vmatprep.subr.bf16.mxu0 0
  %4615 = vmatpush1.bf16.msra.mxu0 0
  %4616 = vmatprep.subr.bf16.mxu0 0
  %4617 = vmatpush1.bf16.msra.mxu0 0
  %4618 = vmatprep.mubr.bf16.mxu0 0
  %4619 = vmatmul.mubr.bf16.gmra.mrb[0].mxu0 %v4514
  %v4620 = vpop.f32.mrb[0].mxu0
  %v4621 = vadd.f32 %v4536, %v4620
  %v4622 = vpop.f32.mrb[0].mxu0
  %v4623 = vpop.f32.mrb[0].mxu0
  %v4624 = vpop.f32.mrb[0].mxu0
  %4625 = vdwg.mxu0
  %v4626 = vmax.f32 %v4621, 0.0
  %v4627 = vpack.c.bf16 %v4626, %v4626
  %v4628 = vld [vmem:[%s9] sm:$0xf]
  %v4629 = vld [vmem:[%s9 + $0x4] sm:$0xf]
  %v4630 = vld [vmem:[%s9 + $0x8] sm:$0xf]
  %v4631 = vld [vmem:[%s9 + $0xc] sm:$0xf]
  %v4632 = vld [vmem:[%s9 + $0x10] sm:$0xf]
  %v4633 = vld [vmem:[%s9 + $0x14] sm:$0xf]
  %v4634 = vld [vmem:[%s9 + $0x18] sm:$0xf]
  %v4635 = vld [vmem:[%s9 + $0x1c] sm:$0xf]
  %v4636 = vld [vmem:[%s9 + $0x20] sm:$0xf]
  %v4637 = vld [vmem:[%s9 + $0x24] sm:$0xf]
  %v4638 = vld [vmem:[%s9 + $0x28] sm:$0xf]
  %v4639 = vld [vmem:[%s9 + $0x2c] sm:$0xf]
  %v4640 = vld [vmem:[%s9 + $0x30] sm:$0xf]
  %v4641 = vld [vmem:[%s9 + $0x34] sm:$0xf]
  %v4642 = vld [vmem:[%s9 + $0x38] sm:$0xf]
  %v4643 = vld [vmem:[%s9 + $0x3c] sm:$0xf]
  %v4644 = vld [vmem:[%s10] sm:$0x1]
  %v4646 = vlaneseq
  %v4647 = vshrl.u32 %v4646, 7
  %v4648 = vsub.s32 0, %v4647
  %v4649 = vrot.slane %v4644, %v4648
  %v4667 = vunpack.c.l.b16 %v4628
  %v4668 = vunpack.c.l.b16 %v4629
  %v4669 = vunpack.c.l.b16 %v4630
  %v4670 = vunpack.c.l.b16 %v4631
  %v4671 = vunpack.c.l.b16 %v4632
  %v4672 = vunpack.c.l.b16 %v4633
  %v4673 = vunpack.c.l.b16 %v4634
  %v4674 = vunpack.c.l.b16 %v4635
  %v4675 = vunpack.c.l.b16 %v4636
  %v4676 = vunpack.c.l.b16 %v4637
  %v4677 = vunpack.c.l.b16 %v4638
  %v4678 = vunpack.c.l.b16 %v4639
  %v4679 = vunpack.c.l.b16 %v4640
  %v4680 = vunpack.c.l.b16 %v4641
  %v4681 = vunpack.c.l.b16 %v4642
  %v4682 = vunpack.c.l.b16 %v4643
  %v4683 = vpack.c.b16 %v4668, %v4667
  %v4684 = vpack.c.b16 %v4670, %v4669
  %v4685 = vpack.c.b16 %v4672, %v4671
  %v4686 = vpack.c.b16 %v4674, %v4673
  %v4687 = vpack.c.b16 %v4676, %v4675
  %v4688 = vpack.c.b16 %v4678, %v4677
  %v4689 = vpack.c.b16 %v4680, %v4679
  %v4690 = vpack.c.b16 %v4682, %v4681
  %4699 = vmatprep.subr.bf16.mxu0 0
  %4700 = vmatpush1.bf16.msra.mxu0 %v4683
  %4701 = vmatprep.subr.bf16.mxu0 0
  %4702 = vmatpush1.bf16.msra.mxu0 %v4684
  %4703 = vmatprep.subr.bf16.mxu0 0
  %4704 = vmatpush1.bf16.msra.mxu0 %v4685
  %4705 = vmatprep.subr.bf16.mxu0 0
  %4706 = vmatpush1.bf16.msra.mxu0 %v4686
  %4707 = vmatprep.subr.bf16.mxu0 0
  %4708 = vmatpush1.bf16.msra.mxu0 %v4687
  %4709 = vmatprep.subr.bf16.mxu0 0
  %4710 = vmatpush1.bf16.msra.mxu0 %v4688
  %4711 = vmatprep.subr.bf16.mxu0 0
  %4712 = vmatpush1.bf16.msra.mxu0 %v4689
  %4713 = vmatprep.subr.bf16.mxu0 0
  %4714 = vmatpush1.bf16.msra.mxu0 %v4690
  %4715 = vmatprep.subr.bf16.mxu0 0
  %4716 = vmatpush1.bf16.msra.mxu0 0
  %4717 = vmatprep.subr.bf16.mxu0 0
  %4718 = vmatpush1.bf16.msra.mxu0 0
  %4719 = vmatprep.subr.bf16.mxu0 0
  %4720 = vmatpush1.bf16.msra.mxu0 0
  %4721 = vmatprep.subr.bf16.mxu0 0
  %4722 = vmatpush1.bf16.msra.mxu0 0
  %4723 = vmatprep.subr.bf16.mxu0 0
  %4724 = vmatpush1.bf16.msra.mxu0 0
  %4725 = vmatprep.subr.bf16.mxu0 0
  %4726 = vmatpush1.bf16.msra.mxu0 0
  %4727 = vmatprep.subr.bf16.mxu0 0
  %4728 = vmatpush1.bf16.msra.mxu0 0
  %4729 = vmatprep.subr.bf16.mxu0 0
  %4730 = vmatpush1.bf16.msra.mxu0 0
  %4731 = vmatprep.mubr.bf16.mxu0 0
  %4732 = vmatmul.mubr.bf16.gmra.mrb[0].mxu0 %v4627
  %v4733 = vpop.f32.mrb[0].mxu0
  %v4734 = vadd.f32 %v4649, %v4733
  %v4735 = vpop.f32.mrb[0].mxu0
  %v4736 = vpop.f32.mrb[0].mxu0
  %v4737 = vpop.f32.mrb[0].mxu0
  %4738 = vdwg.mxu0
  %4739 = vst [vmem:[%s11] sm:$0xff] %v4734
  // Predicated region
  $region46: #{cnn_forward.1} parent=0 // pred_check
    _
  $region47: #{cnn_forward.1} parent=0 // pred_check_branch
    %4741 = sbr.rel (0) target = $region49
  $region48: #{cnn_forward.1} parent=0 // pred_region
    _
  $region49: #{cnn_forward.1} parent=0 // pred_fallthru
    _
  // Predicated region
  $region50: #{cnn_forward.1} parent=0 // pred_check
    _
  $region51: #{cnn_forward.1} parent=0 // pred_check_branch
    %4743 = sbr.rel (0) target = $region53
  $region52: #{cnn_forward.1} parent=0 // pred_region
    _
  $region53: #{cnn_forward.1} parent=0 // pred_fallthru
    _

</llo_original>
